<compile_context>
chip_gen: v7x
topology: tpu7x:2x2x1
jax: 0.10.0
libtpu: 0.0.40
codegen_flags: <defaults>
</compile_context>

<pallas_src>
import functools

import jax
import jax.numpy as jnp
from jax.experimental import pallas as pl
from jax.experimental.pallas import tpu as pltpu

FEAT_DIM = 1280   # efficientnet_v2_s classifier[1].in_features
_BN_EPS = 1e-5
_VMEM_LIMIT = 48 * 1024 * 1024   # safe on v5e/v6e (128 MiB) and v7x (64 MiB)


# ------------------------------ helpers -------------------------------------

def _round_up(v, m):
    return (v + m - 1) // m * m


def _silu(y):
    return y * (1.0 / (1.0 + jnp.exp(-y)))


def _mish(y):
    # x * tanh(softplus(x)), numerically stable softplus, all in f32.
    sp = jnp.maximum(y, 0.0) + jnp.log1p(jnp.exp(-jnp.abs(y)))
    return y * jnp.tanh(sp)


def _apply_act(y, act):
    if act == "silu":
        return _silu(y)
    if act == "mish":
        return _mish(y)
    return y


def _pick_tile(size, candidates):
    for c in candidates:
        if size % c == 0:
            return c
    return size


# ----------------------- tiled fused matmul kernel ---------------------------

def _matmul_kernel(x_ref, w_ref, shift_ref, o_ref, acc_ref, *, act):
    """acc += x @ w over the K grid axis; epilogue: act(acc + shift)."""
    @pl.when(pl.program_id(2) == 0)
    def _():
        acc_ref[...] = jnp.zeros_like(acc_ref)

    acc_ref[...] += jnp.dot(x_ref[...], w_ref[...],
                            preferred_element_type=jnp.float32)

    @pl.when(pl.program_id(2) == pl.num_programs(2) - 1)
    def _():
        y = acc_ref[...] + shift_ref[...]          # f32 epilogue
        o_ref[...] = _apply_act(y, act).astype(o_ref.dtype)


def fused_matmul(x, w, shift, act="none", out_dtype=jnp.float32):
    """act((x @ w) + shift) with BN-scale already folded into w.

    x:[M,K], w:[K,N], shift:[N].  K and N are zero-padded to multiples of 128
    (lane-dense loads/stores), M to a multiple of the M tile; padding is sliced
    off before returning.  MXU runs in bf16, accumulation/epilogue in f32.
    """
    M, K = x.shape
    Kw, N = w.shape
    assert K == Kw
    Kp = _round_up(K, 128)
    Np = _round_up(N, 128)
    tk = _pick_tile(Kp, (512, 256, 128))
    tn = _pick_tile(Np, (256, 128))
    tm = min(_round_up(M, 8), 256)
    Mp = _round_up(M, tm)

    xp = jnp.pad(x, ((0, Mp - M), (0, Kp - K))).astype(jnp.bfloat16)
    wp = jnp.pad(w, ((0, Kp - K), (0, Np - N))).astype(jnp.bfloat16)
    sp = jnp.pad(shift.reshape(1, N), ((0, 0), (0, Np - N))).astype(jnp.float32)

    grid = (Mp // tm, Np // tn, Kp // tk)
    out = pl.pallas_call(
        functools.partial(_matmul_kernel, act=act),
        out_shape=jax.ShapeDtypeStruct((Mp, Np), out_dtype),
        grid_spec=pltpu.PrefetchScalarGridSpec(
            num_scalar_prefetch=0,
            grid=grid,
            in_specs=[
                pl.BlockSpec((tm, tk), lambda i, j, k: (i, k)),
                pl.BlockSpec((tk, tn), lambda i, j, k: (k, j)),
                pl.BlockSpec((1, tn), lambda i, j, k: (0, j)),
            ],
            out_specs=pl.BlockSpec((tm, tn), lambda i, j, k: (i, j)),
            scratch_shapes=[pltpu.VMEM((tm, tn), jnp.float32)],
        ),
        compiler_params=pltpu.CompilerParams(
            dimension_semantics=("parallel", "parallel", "arbitrary"),
            vmem_limit_bytes=_VMEM_LIMIT,
        ),
    )(xp, wp, sp)
    return out[:M, :N]


# --------------- fused 1x1 head conv + BN + SiLU + global-avg-pool -----------

def _head_gap_kernel(x_ref, w_ref, shift_ref, o_ref, acc_ref, *, inv_hw):
    """acc[b, n] += sum_m silu(x[b, m, :] @ w[:, n] + shift[n]); mean at end."""
    m = pl.program_id(1)

    @pl.when(m == 0)
    def _():
        acc_ref[...] = jnp.zeros_like(acc_ref)

    x = x_ref[...]                                   # (B, TM, K) bf16
    b, tm, k = x.shape
    y = jnp.dot(x.reshape(b * tm, k), w_ref[...],
                preferred_element_type=jnp.float32)  # (B*TM, TN) f32
    y = _silu(y + shift_ref[...])
    acc_ref[...] += jnp.sum(y.reshape(b, tm, -1), axis=1)

    @pl.when(m == pl.num_programs(1) - 1)
    def _():
        o_ref[...] = (acc_ref[...] * inv_hw).astype(o_ref.dtype)


def head_conv_gap(x_nhwc, w_io, shift):
    """1x1 Conv(bias=False)+BN(eval)+SiLU fused with AdaptiveAvgPool2d(1)+Flatten.

    The [B, H, W, Cout] activation is never materialized in HBM.
    """
    B, H, W, Cin = x_nhwc.shape
    HW = H * W
    Cout = w_io.shape[1]
    assert Cout % 128 == 0

    x = x_nhwc.reshape(B, HW, Cin).astype(jnp.bfloat16)
    wv = w_io.astype(jnp.bfloat16)
    sh = shift.reshape(1, Cout).astype(jnp.float32)

    tn = _pick_tile(Cout, (256, 128))
    if HW <= 512:
        tm = HW
    else:
        tm = _pick_tile(HW, (512, 256, 128))   # falls back to HW if indivisible

    grid = (Cout // tn, HW // tm)
    return pl.pallas_call(
        functools.partial(_head_gap_kernel, inv_hw=1.0 / HW),
        out_shape=jax.ShapeDtypeStruct((B, Cout), jnp.float32),
        grid_spec=pltpu.PrefetchScalarGridSpec(
            num_scalar_prefetch=0,
            grid=grid,
            in_specs=[
                pl.BlockSpec((B, tm, Cin), lambda n, m: (0, m, 0)),
                pl.BlockSpec((Cin, tn), lambda n, m: (0, n)),
                pl.BlockSpec((1, tn), lambda n, m: (0, n)),
            ],
            out_specs=pl.BlockSpec((B, tn), lambda n, m: (0, n)),
            scratch_shapes=[pltpu.VMEM((B, tn), jnp.float32)],
        ),
        compiler_params=pltpu.CompilerParams(
            dimension_semantics=("parallel", "arbitrary"),
            vmem_limit_bytes=_VMEM_LIMIT,
        ),
    )(x, wv, sh)


# ------------------------- tiny fused domain MLP ------------------------------

def _domain_mlp_kernel(h_ref, w2_ref, sh2_ref, w3_ref, b3_ref, o_ref):
    # h is the *pre-activation* output of Linear(1280,32)+BN (computed in the
    # fused heads matmul).  Apply Mish, then Linear+BN+Mish, then Linear(32,1).
    h = _mish(h_ref[...].astype(jnp.float32))
    h = jnp.dot(h, w2_ref[...], preferred_element_type=jnp.float32) + sh2_ref[...]
    h = _mish(h)
    o_ref[...] = (jnp.dot(h, w3_ref[...], preferred_element_type=jnp.float32)
                  + b3_ref[...]).astype(o_ref.dtype)


def domain_mlp(h1_pre, w2, shift2, w3, b3):
    B = h1_pre.shape[0]
    vmem = pl.BlockSpec(memory_space=pltpu.MemorySpace.VMEM)
    return pl.pallas_call(
        _domain_mlp_kernel,
        out_shape=jax.ShapeDtypeStruct((B, 1), jnp.float32),
        in_specs=[vmem] * 5,
        out_specs=vmem,
    )(
        h1_pre.astype(jnp.float32),
        w2.astype(jnp.float32),
        shift2.reshape(1, -1).astype(jnp.float32),
        w3.astype(jnp.float32),
        b3.reshape(1, 1).astype(jnp.float32),
    )


# ------------------------------ JAX glue -------------------------------------

def _im2col(x_nhwc, kh, kw, stride, pad):
    """Patch extraction (glue). Heavy conv FLOPs happen in the Pallas matmul.

    TODO(synk): patch assembly still happens in XLA/HBM (~2.25x blow-up for
    these stride-2 3x3 convs); in-kernel patch assembly via shifted VMEM reads
    would remove that traffic.
    """
    x = jnp.pad(x_nhwc, ((0, 0), (pad, pad), (pad, pad), (0, 0)))
    N, H, W, C = x.shape
    Ho = (H - kh) // stride + 1
    Wo = (W - kw) // stride + 1
    cols = []
    for i in range(kh):
        for j in range(kw):
            cols.append(x[:, i:i + stride * Ho:stride, j:j + stride * Wo:stride, :])
    patches = jnp.concatenate(cols, axis=-1)          # [N, Ho, Wo, kh*kw*C]
    return patches.reshape(N * Ho * Wo, kh * kw * C), (N, Ho, Wo)


def conv_bn_fold(w2d, bn):
    """Fold eval-mode BatchNorm2d into the conv weight (scale) + shift."""
    gamma, beta, mean, var = bn
    s = gamma / jnp.sqrt(var + _BN_EPS)
    return w2d * s[None, :], beta - mean * s


def linear_bn_fold(w, b, bn):
    """Fold Linear bias + eval-mode BatchNorm1d into (scaled weight, shift)."""
    gamma, beta, mean, var = bn
    s = gamma / jnp.sqrt(var + _BN_EPS)
    return w * s[None, :], b * s + beta - mean * s


def conv_bn_silu(x_nhwc, w_hwio, bn, stride, pad):
    """Conv2d(bias=False) + BatchNorm2d(eval) + SiLU as one tiled Pallas matmul."""
    kh, kw, cin, cout = w_hwio.shape
    cols, (N, Ho, Wo) = _im2col(x_nhwc, kh, kw, stride, pad)
    w2d, shift = conv_bn_fold(w_hwio.reshape(kh * kw * cin, cout), bn)
    y = fused_matmul(cols, w2d, shift, act="silu", out_dtype=jnp.bfloat16)
    return y.reshape(N, Ho, Wo, cout)


# ----------------------------- Parameters ------------------------------------

def _bn_init(key, c):
    k1, k2, k3, k4 = jax.random.split(key, 4)
    gamma = 1.0 + 0.1 * jax.random.normal(k1, (c,), jnp.float32)
    beta = 0.1 * jax.random.normal(k2, (c,), jnp.float32)
    mean = 0.1 * jax.random.normal(k3, (c,), jnp.float32)
    var = 1.0 + jnp.abs(0.1 * jax.random.normal(k4, (c,), jnp.float32))
    return (gamma, beta, mean, var)


def init_params(key, num_class):
    ks = jax.random.split(key, 16)

    def nrm(k, shape, std=0.05):
        return std * jax.random.normal(k, shape, jnp.float32)

    p = {}
    # --- reduced EfficientNetV2-S feature trunk ---
    p["stem_w"] = nrm(ks[0], (3, 3, 3, 24))
    p["stem_bn"] = _bn_init(ks[1], 24)
    p["stage_w"] = nrm(ks[2], (3, 3, 24, 64))
    p["stage_bn"] = _bn_init(ks[3], 64)
    p["head_w"] = nrm(ks[4], (1, 1, 64, FEAT_DIM))
    p["head_bn"] = _bn_init(ks[5], FEAT_DIM)
    # --- class classifier: Dropout(0.2) + Linear(FEAT_DIM, num_class) ---
    p["cls_w"] = nrm(ks[6], (FEAT_DIM, num_class))
    p["cls_b"] = nrm(ks[7], (num_class,), 0.01)
    # --- domain classifier ---
    p["d1_w"] = nrm(ks[8], (FEAT_DIM, 32))
    p["d1_b"] = nrm(ks[9], (32,), 0.01)
    p["d1_bn"] = _bn_init(ks[10], 32)
    p["d2_w"] = nrm(ks[11], (32, 32))
    p["d2_b"] = nrm(ks[12], (32,), 0.01)
    p["d2_bn"] = _bn_init(ks[13], 32)
    p["d3_w"] = nrm(ks[14], (32, 1))
    p["d3_b"] = nrm(ks[15], (1,), 0.01)
    return p


# ------------------------------ Forward --------------------------------------

def dcnn_forward(params, x_nchw):
    # NCHW (PyTorch) -> NHWC (kernel layout)
    x = jnp.transpose(x_nchw, (0, 2, 3, 1)).astype(jnp.float32)

    # feature_extractor: features -> AdaptiveAvgPool2d(1) -> Flatten(1)
    x = conv_bn_silu(x, params["stem_w"], params["stem_bn"], stride=2, pad=1)
    x = conv_bn_silu(x, params["stage_w"], params["stage_bn"], stride=2, pad=1)
    head_w, head_shift = conv_bn_fold(
        params["head_w"].reshape(params["head_w"].shape[2], FEAT_DIM),
        params["head_bn"])
    feats = head_conv_gap(x, head_w, head_shift)            # [B, FEAT_DIM] f32

    # Dropout layers are identity at inference.
    # Fuse class head + first domain Linear(+BN) into one lane-dense matmul.
    num_class = params["cls_w"].shape[1]
    d1_wf, d1_sh = linear_bn_fold(params["d1_w"], params["d1_b"], params["d1_bn"])
    w_heads = jnp.concatenate([params["cls_w"], d1_wf], axis=1)   # [1280, nc+32]
    sh_heads = jnp.concatenate([params["cls_b"], d1_sh], axis=0)
    y = fused_matmul(feats, w_heads, sh_heads, act="none", out_dtype=jnp.float32)
    class_preds = y[:, :num_class]                                # [B, num_class]
    h1_pre = y[:, num_class:num_class + 32]                       # pre-Mish

    # domain classifier tail: Mish -> Linear+BN -> Mish -> Linear(32,1) -> view(-1)
    d2_wf, d2_sh = linear_bn_fold(params["d2_w"], params["d2_b"], params["d2_bn"])
    d = domain_mlp(h1_pre, d2_wf, d2_sh, params["d3_w"], params["d3_b"])
    return class_preds, d.reshape(-1)


# -------------------------------- Main ----------------------------------------

if __name__ == "__main__":
    key = jax.random.PRNGKey(0)
    pkey, xkey = jax.random.split(key)

    num_class = 10
    params = init_params(pkey, num_class)

    # Small input consistent with the module: RGB images, NCHW.
    x = jax.random.normal(xkey, (2, 3, 32, 32), jnp.float32)

    fwd = jax.jit(functools.partial(dcnn_forward, params))
    class_preds, domain_preds = fwd(x)
    jax.block_until_ready((class_preds, domain_preds))

    assert class_preds.shape == (2, num_class), class_preds.shape
    assert domain_preds.shape == (2,), domain_preds.shape
    assert jnp.all(jnp.isfinite(class_preds)) and jnp.all(jnp.isfinite(domain_preds))
    print("KERNEL_OK")
</pallas_src>

<mosaic_0001>
module attributes {stable_mosaic.version = 11 : i64} {
  func.func @_matmul_kernel(%arg0: i32, %arg1: i32, %arg2: i32, %arg3: memref<256x128xbf16, #tpu.memory_space<vmem>>, %arg4: memref<128x128xbf16, #tpu.memory_space<vmem>>, %arg5: memref<1x128xf32, #tpu.memory_space<vmem>>, %arg6: memref<256x128xbf16, #tpu.memory_space<vmem>>, %arg7: memref<256x128xf32, #tpu.memory_space<vmem>>) attributes {dimension_semantics = [#tpu.dimension_semantics<parallel>, #tpu.dimension_semantics<parallel>, #tpu.dimension_semantics<arbitrary>], iteration_bounds = array<i64: 2, 1, 1>, scalar_prefetch = 0 : i64, scratch_operands = 1 : i64, tpu.core_type = #tpu.core_type<tc>, window_params = [{transform_indices = @transform_0, window_bounds = array<i64: 256, 128>}, {transform_indices = @transform_1, window_bounds = array<i64: 128, 128>}, {transform_indices = @transform_2, window_bounds = array<i64: 1, 128>}, {transform_indices = @transform_3, window_bounds = array<i64: 256, 128>}]} {
    %c0_i32 = arith.constant 0 : i32
    %0 = arith.cmpi eq, %arg2, %c0_i32 : i32
    %1 = arith.extui %0 : i1 to i32
    %c0_i32_0 = arith.constant 0 : i32
    %2 = arith.cmpi ne, %1, %c0_i32_0 : i32
    scf.if %2 {
      %cst_10 = arith.constant 0.000000e+00 : f32
      %12 = vector.broadcast %cst_10 : f32 to vector<256x128xf32>
      %c0_11 = arith.constant 0 : index
      %c0_12 = arith.constant 0 : index
      %13 = vector.load %arg7[%c0_11, %c0_12] : memref<256x128xf32, #tpu.memory_space<vmem>>, vector<256x128xf32>
      tpu.vector_store %arg7[%c0_11, %c0_12], %12 {strides = array<i32>} : memref<256x128xf32, #tpu.memory_space<vmem>>, vector<256x128xf32>,
    } else {
    }
    %c0 = arith.constant 0 : index
    %c0_1 = arith.constant 0 : index
    %3 = vector.load %arg7[%c0, %c0_1] : memref<256x128xf32, #tpu.memory_space<vmem>>, vector<256x128xf32>
    %c0_2 = arith.constant 0 : index
    %c0_3 = arith.constant 0 : index
    %4 = vector.load %arg3[%c0_2, %c0_3] : memref<256x128xbf16, #tpu.memory_space<vmem>>, vector<256x128xbf16>
    %c0_4 = arith.constant 0 : index
    %c0_5 = arith.constant 0 : index
    %5 = vector.load %arg4[%c0_4, %c0_5] : memref<128x128xbf16, #tpu.memory_space<vmem>>, vector<128x128xbf16>
    %cst = arith.constant dense<0.000000e+00> : vector<256x128xf32>
    %6 = tpu.matmul %4, %5, %cst {dimension_numbers = #tpu.dot_dimension_numbers<[1], [0], [0], [1], [0, 0, 1, 1], [], []>} : vector<256x128xbf16>, vector<128x128xbf16>, vector<256x128xf32> -> vector<256x128xf32>
    %7 = arith.addf %3, %6 : vector<256x128xf32>
    %c0_6 = arith.constant 0 : index
    %c0_7 = arith.constant 0 : index
    %8 = vector.load %arg7[%c0_6, %c0_7] : memref<256x128xf32, #tpu.memory_space<vmem>>, vector<256x128xf32>
    tpu.vector_store %arg7[%c0_6, %c0_7], %7 {strides = array<i32>} : memref<256x128xf32, #tpu.memory_space<vmem>>, vector<256x128xf32>,
    %c0_i32_8 = arith.constant 0 : i32
    %9 = arith.cmpi eq, %arg2, %c0_i32_8 : i32
    %10 = arith.extui %9 : i1 to i32
    %c0_i32_9 = arith.constant 0 : i32
    %11 = arith.cmpi ne, %10, %c0_i32_9 : i32
    scf.if %11 {
      %c0_10 = arith.constant 0 : index
      %c0_11 = arith.constant 0 : index
      %12 = vector.load %arg7[%c0_10, %c0_11] : memref<256x128xf32, #tpu.memory_space<vmem>>, vector<256x128xf32>
      %c0_12 = arith.constant 0 : index
      %c0_13 = arith.constant 0 : index
      %13 = vector.load %arg5[%c0_12, %c0_13] : memref<1x128xf32, #tpu.memory_space<vmem>>, vector<1x128xf32>
      %14 = vector.broadcast %13 : vector<1x128xf32> to vector<256x128xf32>
      %15 = arith.addf %12, %14 : vector<256x128xf32>
      %cst_14 = arith.constant 0.000000e+00 : f32
      %16 = vector.broadcast %cst_14 : f32 to vector<256x128xf32>
      %17 = arith.subf %16, %15 : vector<256x128xf32>
      %18 = math.exp %17 : vector<256x128xf32>
      %cst_15 = arith.constant 1.000000e+00 : f32
      %19 = vector.broadcast %cst_15 : f32 to vector<256x128xf32>
      %20 = arith.addf %19, %18 : vector<256x128xf32>
      %cst_16 = arith.constant 1.000000e+00 : f32
      %21 = vector.broadcast %cst_16 : f32 to vector<256x128xf32>
      %22 = arith.divf %21, %20 : vector<256x128xf32>
      %23 = arith.mulf %15, %22 : vector<256x128xf32>
      %24 = arith.truncf %23 : vector<256x128xf32> to vector<256x128xbf16>
      %c0_17 = arith.constant 0 : index
      %c0_18 = arith.constant 0 : index
      %25 = vector.load %arg6[%c0_17, %c0_18] : memref<256x128xbf16, #tpu.memory_space<vmem>>, vector<256x128xbf16>
      tpu.vector_store %arg6[%c0_17, %c0_18], %24 {strides = array<i32>} : memref<256x128xbf16, #tpu.memory_space<vmem>>, vector<256x128xbf16>,
    } else {
    }
    return
  }
  func.func @transform_0(%arg0: i32, %arg1: i32, %arg2: i32) -> (i32, i32) {
    %c0_i32 = arith.constant 0 : i32
    return %arg0, %arg2 : i32, i32
  }
  func.func @transform_1(%arg0: i32, %arg1: i32, %arg2: i32) -> (i32, i32) {
    %c0_i32 = arith.constant 0 : i32
    return %arg2, %arg1 : i32, i32
  }
  func.func @transform_2(%arg0: i32, %arg1: i32, %arg2: i32) -> (i32, i32) {
    %c0_i32 = arith.constant 0 : i32
    %c0_i32_0 = arith.constant 0 : i32
    return %c0_i32, %arg1 : i32, i32
  }
  func.func @transform_3(%arg0: i32, %arg1: i32, %arg2: i32) -> (i32, i32) {
    %c0_i32 = arith.constant 0 : i32
    return %arg0, %arg1 : i32, i32
  }
}

module attributes {stable_mosaic.version = 11 : i64} {
  func.func @_matmul_kernel(%arg0: i32, %arg1: i32, %arg2: i32, %arg3: memref<128x256xbf16, #tpu.memory_space<vmem>>, %arg4: memref<256x128xbf16, #tpu.memory_space<vmem>>, %arg5: memref<1x128xf32, #tpu.memory_space<vmem>>, %arg6: memref<128x128xbf16, #tpu.memory_space<vmem>>, %arg7: memref<128x128xf32, #tpu.memory_space<vmem>>) attributes {dimension_semantics = [#tpu.dimension_semantics<parallel>, #tpu.dimension_semantics<parallel>, #tpu.dimension_semantics<arbitrary>], iteration_bounds = array<i64: 1, 1, 1>, scalar_prefetch = 0 : i64, scratch_operands = 1 : i64, tpu.core_type = #tpu.core_type<tc>, window_params = [{transform_indices = @transform_0, window_bounds = array<i64: 128, 256>}, {transform_indices = @transform_1, window_bounds = array<i64: 256, 128>}, {transform_indices = @transform_2, window_bounds = array<i64: 1, 128>}, {transform_indices = @transform_3, window_bounds = array<i64: 128, 128>}]} {
    %c0_i32 = arith.constant 0 : i32
    %0 = arith.cmpi eq, %arg2, %c0_i32 : i32
    %1 = arith.extui %0 : i1 to i32
    %c0_i32_0 = arith.constant 0 : i32
    %2 = arith.cmpi ne, %1, %c0_i32_0 : i32
    scf.if %2 {
      %cst_10 = arith.constant 0.000000e+00 : f32
      %12 = vector.broadcast %cst_10 : f32 to vector<128x128xf32>
      %c0_11 = arith.constant 0 : index
      %c0_12 = arith.constant 0 : index
      %13 = vector.load %arg7[%c0_11, %c0_12] : memref<128x128xf32, #tpu.memory_space<vmem>>, vector<128x128xf32>
      tpu.vector_store %arg7[%c0_11, %c0_12], %12 {strides = array<i32>} : memref<128x128xf32, #tpu.memory_space<vmem>>, vector<128x128xf32>,
    } else {
    }
    %c0 = arith.constant 0 : index
    %c0_1 = arith.constant 0 : index
    %3 = vector.load %arg7[%c0, %c0_1] : memref<128x128xf32, #tpu.memory_space<vmem>>, vector<128x128xf32>
    %c0_2 = arith.constant 0 : index
    %c0_3 = arith.constant 0 : index
    %4 = vector.load %arg3[%c0_2, %c0_3] : memref<128x256xbf16, #tpu.memory_space<vmem>>, vector<128x256xbf16>
    %c0_4 = arith.constant 0 : index
    %c0_5 = arith.constant 0 : index
    %5 = vector.load %arg4[%c0_4, %c0_5] : memref<256x128xbf16, #tpu.memory_space<vmem>>, vector<256x128xbf16>
    %cst = arith.constant dense<0.000000e+00> : vector<128x128xf32>
    %6 = tpu.matmul %4, %5, %cst {dimension_numbers = #tpu.dot_dimension_numbers<[1], [0], [0], [1], [0, 0, 1, 1], [], []>} : vector<128x256xbf16>, vector<256x128xbf16>, vector<128x128xf32> -> vector<128x128xf32>
    %7 = arith.addf %3, %6 : vector<128x128xf32>
    %c0_6 = arith.constant 0 : index
    %c0_7 = arith.constant 0 : index
    %8 = vector.load %arg7[%c0_6, %c0_7] : memref<128x128xf32, #tpu.memory_space<vmem>>, vector<128x128xf32>
    tpu.vector_store %arg7[%c0_6, %c0_7], %7 {strides = array<i32>} : memref<128x128xf32, #tpu.memory_space<vmem>>, vector<128x128xf32>,
    %c0_i32_8 = arith.constant 0 : i32
    %9 = arith.cmpi eq, %arg2, %c0_i32_8 : i32
    %10 = arith.extui %9 : i1 to i32
    %c0_i32_9 = arith.constant 0 : i32
    %11 = arith.cmpi ne, %10, %c0_i32_9 : i32
    scf.if %11 {
      %c0_10 = arith.constant 0 : index
      %c0_11 = arith.constant 0 : index
      %12 = vector.load %arg7[%c0_10, %c0_11] : memref<128x128xf32, #tpu.memory_space<vmem>>, vector<128x128xf32>
      %c0_12 = arith.constant 0 : index
      %c0_13 = arith.constant 0 : index
      %13 = vector.load %arg5[%c0_12, %c0_13] : memref<1x128xf32, #tpu.memory_space<vmem>>, vector<1x128xf32>
      %14 = vector.broadcast %13 : vector<1x128xf32> to vector<128x128xf32>
      %15 = arith.addf %12, %14 : vector<128x128xf32>
      %cst_14 = arith.constant 0.000000e+00 : f32
      %16 = vector.broadcast %cst_14 : f32 to vector<128x128xf32>
      %17 = arith.subf %16, %15 : vector<128x128xf32>
      %18 = math.exp %17 : vector<128x128xf32>
      %cst_15 = arith.constant 1.000000e+00 : f32
      %19 = vector.broadcast %cst_15 : f32 to vector<128x128xf32>
      %20 = arith.addf %19, %18 : vector<128x128xf32>
      %cst_16 = arith.constant 1.000000e+00 : f32
      %21 = vector.broadcast %cst_16 : f32 to vector<128x128xf32>
      %22 = arith.divf %21, %20 : vector<128x128xf32>
      %23 = arith.mulf %15, %22 : vector<128x128xf32>
      %24 = arith.truncf %23 : vector<128x128xf32> to vector<128x128xbf16>
      %c0_17 = arith.constant 0 : index
      %c0_18 = arith.constant 0 : index
      %25 = vector.load %arg6[%c0_17, %c0_18] : memref<128x128xbf16, #tpu.memory_space<vmem>>, vector<128x128xbf16>
      tpu.vector_store %arg6[%c0_17, %c0_18], %24 {strides = array<i32>} : memref<128x128xbf16, #tpu.memory_space<vmem>>, vector<128x128xbf16>,
    } else {
    }
    return
  }
  func.func @transform_0(%arg0: i32, %arg1: i32, %arg2: i32) -> (i32, i32) {
    %c0_i32 = arith.constant 0 : i32
    return %arg0, %arg2 : i32, i32
  }
  func.func @transform_1(%arg0: i32, %arg1: i32, %arg2: i32) -> (i32, i32) {
    %c0_i32 = arith.constant 0 : i32
    return %arg2, %arg1 : i32, i32
  }
  func.func @transform_2(%arg0: i32, %arg1: i32, %arg2: i32) -> (i32, i32) {
    %c0_i32 = arith.constant 0 : i32
    %c0_i32_0 = arith.constant 0 : i32
    return %c0_i32, %arg1 : i32, i32
  }
  func.func @transform_3(%arg0: i32, %arg1: i32, %arg2: i32) -> (i32, i32) {
    %c0_i32 = arith.constant 0 : i32
    return %arg0, %arg1 : i32, i32
  }
}

module attributes {stable_mosaic.version = 11 : i64} {
  func.func @_head_gap_kernel(%arg0: i32, %arg1: i32, %arg2: memref<2x64x64xbf16, #tpu.memory_space<vmem>>, %arg3: memref<64x256xbf16, #tpu.memory_space<vmem>>, %arg4: memref<1x256xf32, #tpu.memory_space<vmem>>, %arg5: memref<2x256xf32, #tpu.memory_space<vmem>>, %arg6: memref<2x256xf32, #tpu.memory_space<vmem>>) attributes {dimension_semantics = [#tpu.dimension_semantics<parallel>, #tpu.dimension_semantics<arbitrary>], iteration_bounds = array<i64: 5, 1>, scalar_prefetch = 0 : i64, scratch_operands = 1 : i64, tpu.core_type = #tpu.core_type<tc>, window_params = [{transform_indices = @transform_0, window_bounds = array<i64: 2, 64, 64>}, {transform_indices = @transform_1, window_bounds = array<i64: 64, 256>}, {transform_indices = @transform_2, window_bounds = array<i64: 1, 256>}, {transform_indices = @transform_3, window_bounds = array<i64: 2, 256>}]} {
    %c0_i32 = arith.constant 0 : i32
    %0 = arith.cmpi eq, %arg1, %c0_i32 : i32
    %1 = arith.extui %0 : i1 to i32
    %c0_i32_0 = arith.constant 0 : i32
    %2 = arith.cmpi ne, %1, %c0_i32_0 : i32
    scf.if %2 {
      %cst_17 = arith.constant 0.000000e+00 : f32
      %26 = vector.broadcast %cst_17 : f32 to vector<2x256xf32>
      %c0_18 = arith.constant 0 : index
      %c0_19 = arith.constant 0 : index
      %27 = vector.load %arg6[%c0_18, %c0_19] : memref<2x256xf32, #tpu.memory_space<vmem>>, vector<2x256xf32>
      tpu.vector_store %arg6[%c0_18, %c0_19], %26 {strides = array<i32>} : memref<2x256xf32, #tpu.memory_space<vmem>>, vector<2x256xf32>,
    } else {
    }
    %c0 = arith.constant 0 : index
    %c0_1 = arith.constant 0 : index
    %c0_2 = arith.constant 0 : index
    %3 = vector.load %arg2[%c0, %c0_1, %c0_2] : memref<2x64x64xbf16, #tpu.memory_space<vmem>>, vector<2x64x64xbf16>
    %4 = vector.shape_cast %3 : vector<2x64x64xbf16> to vector<128x64xbf16>
    %c0_3 = arith.constant 0 : index
    %c0_4 = arith.constant 0 : index
    %5 = vector.load %arg3[%c0_3, %c0_4] : memref<64x256xbf16, #tpu.memory_space<vmem>>, vector<64x256xbf16>
    %cst = arith.constant dense<0.000000e+00> : vector<128x256xf32>
    %6 = tpu.matmul %4, %5, %cst {dimension_numbers = #tpu.dot_dimension_numbers<[1], [0], [0], [1], [0, 0, 1, 1], [], []>} : vector<128x64xbf16>, vector<64x256xbf16>, vector<128x256xf32> -> vector<128x256xf32>
    %c0_5 = arith.constant 0 : index
    %c0_6 = arith.constant 0 : index
    %7 = vector.load %arg4[%c0_5, %c0_6] : memref<1x256xf32, #tpu.memory_space<vmem>>, vector<1x256xf32>
    %8 = vector.broadcast %7 : vector<1x256xf32> to vector<128x256xf32>
    %9 = arith.addf %6, %8 : vector<128x256xf32>
    %cst_7 = arith.constant 0.000000e+00 : f32
    %10 = vector.broadcast %cst_7 : f32 to vector<128x256xf32>
    %11 = arith.subf %10, %9 : vector<128x256xf32>
    %12 = math.exp %11 : vector<128x256xf32>
    %cst_8 = arith.constant 1.000000e+00 : f32
    %13 = vector.broadcast %cst_8 : f32 to vector<128x256xf32>
    %14 = arith.addf %13, %12 : vector<128x256xf32>
    %cst_9 = arith.constant 1.000000e+00 : f32
    %15 = vector.broadcast %cst_9 : f32 to vector<128x256xf32>
    %16 = arith.divf %15, %14 : vector<128x256xf32>
    %17 = arith.mulf %9, %16 : vector<128x256xf32>
    %c0_10 = arith.constant 0 : index
    %c0_11 = arith.constant 0 : index
    %18 = vector.load %arg6[%c0_10, %c0_11] : memref<2x256xf32, #tpu.memory_space<vmem>>, vector<2x256xf32>
    %19 = vector.shape_cast %17 : vector<128x256xf32> to vector<2x64x256xf32>
    %cst_12 = arith.constant dense<0.000000e+00> : vector<2x256xf32>
    %20 = vector.multi_reduction <add>, %19, %cst_12 [1] : vector<2x64x256xf32> to vector<2x256xf32>
    %21 = arith.addf %18, %20 : vector<2x256xf32>
    %c0_13 = arith.constant 0 : index
    %c0_14 = arith.constant 0 : index
    %22 = vector.load %arg6[%c0_13, %c0_14] : memref<2x256xf32, #tpu.memory_space<vmem>>, vector<2x256xf32>
    tpu.vector_store %arg6[%c0_13, %c0_14], %21 {strides = array<i32>} : memref<2x256xf32, #tpu.memory_space<vmem>>, vector<2x256xf32>,
    %c0_i32_15 = arith.constant 0 : i32
    %23 = arith.cmpi eq, %arg1, %c0_i32_15 : i32
    %24 = arith.extui %23 : i1 to i32
    %c0_i32_16 = arith.constant 0 : i32
    %25 = arith.cmpi ne, %24, %c0_i32_16 : i32
    scf.if %25 {
      %c0_17 = arith.constant 0 : index
      %c0_18 = arith.constant 0 : index
      %26 = vector.load %arg6[%c0_17, %c0_18] : memref<2x256xf32, #tpu.memory_space<vmem>>, vector<2x256xf32>
      %cst_19 = arith.constant 1.562500e-02 : f32
      %27 = vector.broadcast %cst_19 : f32 to vector<2x256xf32>
      %28 = arith.mulf %26, %27 : vector<2x256xf32>
      %c0_20 = arith.constant 0 : index
      %c0_21 = arith.constant 0 : index
      %29 = vector.load %arg5[%c0_20, %c0_21] : memref<2x256xf32, #tpu.memory_space<vmem>>, vector<2x256xf32>
      tpu.vector_store %arg5[%c0_20, %c0_21], %28 {strides = array<i32>} : memref<2x256xf32, #tpu.memory_space<vmem>>, vector<2x256xf32>,
    } else {
    }
    return
  }
  func.func @transform_0(%arg0: i32, %arg1: i32) -> (i32, i32, i32) {
    %c0_i32 = arith.constant 0 : i32
    %c0_i32_0 = arith.constant 0 : i32
    %c0_i32_1 = arith.constant 0 : i32
    return %c0_i32, %arg1, %c0_i32_0 : i32, i32, i32
  }
  func.func @transform_1(%arg0: i32, %arg1: i32) -> (i32, i32) {
    %c0_i32 = arith.constant 0 : i32
    %c0_i32_0 = arith.constant 0 : i32
    return %c0_i32, %arg0 : i32, i32
  }
  func.func @transform_2(%arg0: i32, %arg1: i32) -> (i32, i32) {
    %c0_i32 = arith.constant 0 : i32
    %c0_i32_0 = arith.constant 0 : i32
    return %c0_i32, %arg0 : i32, i32
  }
  func.func @transform_3(%arg0: i32, %arg1: i32) -> (i32, i32) {
    %c0_i32 = arith.constant 0 : i32
    %c0_i32_0 = arith.constant 0 : i32
    return %c0_i32, %arg0 : i32, i32
  }
}

module attributes {stable_mosaic.version = 11 : i64} {
  func.func @_matmul_kernel(%arg0: i32, %arg1: i32, %arg2: i32, %arg3: memref<8x256xbf16, #tpu.memory_space<vmem>>, %arg4: memref<256x128xbf16, #tpu.memory_space<vmem>>, %arg5: memref<1x128xf32, #tpu.memory_space<vmem>>, %arg6: memref<8x128xf32, #tpu.memory_space<vmem>>, %arg7: memref<8x128xf32, #tpu.memory_space<vmem>>) attributes {dimension_semantics = [#tpu.dimension_semantics<parallel>, #tpu.dimension_semantics<parallel>, #tpu.dimension_semantics<arbitrary>], iteration_bounds = array<i64: 1, 1, 5>, scalar_prefetch = 0 : i64, scratch_operands = 1 : i64, tpu.core_type = #tpu.core_type<tc>, window_params = [{transform_indices = @transform_0, window_bounds = array<i64: 8, 256>}, {transform_indices = @transform_1, window_bounds = array<i64: 256, 128>}, {transform_indices = @transform_2, window_bounds = array<i64: 1, 128>}, {transform_indices = @transform_3, window_bounds = array<i64: 8, 128>}]} {
    %c0_i32 = arith.constant 0 : i32
    %0 = arith.cmpi eq, %arg2, %c0_i32 : i32
    %1 = arith.extui %0 : i1 to i32
    %c0_i32_0 = arith.constant 0 : i32
    %2 = arith.cmpi ne, %1, %c0_i32_0 : i32
    scf.if %2 {
      %cst_9 = arith.constant 0.000000e+00 : f32
      %12 = vector.broadcast %cst_9 : f32 to vector<8x128xf32>
      %c0_10 = arith.constant 0 : index
      %c0_11 = arith.constant 0 : index
      %13 = vector.load %arg7[%c0_10, %c0_11] : memref<8x128xf32, #tpu.memory_space<vmem>>, vector<8x128xf32>
      tpu.vector_store %arg7[%c0_10, %c0_11], %12 {strides = array<i32>} : memref<8x128xf32, #tpu.memory_space<vmem>>, vector<8x128xf32>,
    } else {
    }
    %c0 = arith.constant 0 : index
    %c0_1 = arith.constant 0 : index
    %3 = vector.load %arg7[%c0, %c0_1] : memref<8x128xf32, #tpu.memory_space<vmem>>, vector<8x128xf32>
    %c0_2 = arith.constant 0 : index
    %c0_3 = arith.constant 0 : index
    %4 = vector.load %arg3[%c0_2, %c0_3] : memref<8x256xbf16, #tpu.memory_space<vmem>>, vector<8x256xbf16>
    %c0_4 = arith.constant 0 : index
    %c0_5 = arith.constant 0 : index
    %5 = vector.load %arg4[%c0_4, %c0_5] : memref<256x128xbf16, #tpu.memory_space<vmem>>, vector<256x128xbf16>
    %cst = arith.constant dense<0.000000e+00> : vector<8x128xf32>
    %6 = tpu.matmul %4, %5, %cst {dimension_numbers = #tpu.dot_dimension_numbers<[1], [0], [0], [1], [0, 0, 1, 1], [], []>} : vector<8x256xbf16>, vector<256x128xbf16>, vector<8x128xf32> -> vector<8x128xf32>
    %7 = arith.addf %3, %6 : vector<8x128xf32>
    %c0_6 = arith.constant 0 : index
    %c0_7 = arith.constant 0 : index
    %8 = vector.load %arg7[%c0_6, %c0_7] : memref<8x128xf32, #tpu.memory_space<vmem>>, vector<8x128xf32>
    tpu.vector_store %arg7[%c0_6, %c0_7], %7 {strides = array<i32>} : memref<8x128xf32, #tpu.memory_space<vmem>>, vector<8x128xf32>,
    %c4_i32 = arith.constant 4 : i32
    %9 = arith.cmpi eq, %arg2, %c4_i32 : i32
    %10 = arith.extui %9 : i1 to i32
    %c0_i32_8 = arith.constant 0 : i32
    %11 = arith.cmpi ne, %10, %c0_i32_8 : i32
    scf.if %11 {
      %c0_9 = arith.constant 0 : index
      %c0_10 = arith.constant 0 : index
      %12 = vector.load %arg7[%c0_9, %c0_10] : memref<8x128xf32, #tpu.memory_space<vmem>>, vector<8x128xf32>
      %c0_11 = arith.constant 0 : index
      %c0_12 = arith.constant 0 : index
      %13 = vector.load %arg5[%c0_11, %c0_12] : memref<1x128xf32, #tpu.memory_space<vmem>>, vector<1x128xf32>
      %14 = vector.broadcast %13 : vector<1x128xf32> to vector<8x128xf32>
      %15 = arith.addf %12, %14 : vector<8x128xf32>
      %c0_13 = arith.constant 0 : index
      %c0_14 = arith.constant 0 : index
      %16 = vector.load %arg6[%c0_13, %c0_14] : memref<8x128xf32, #tpu.memory_space<vmem>>, vector<8x128xf32>
      tpu.vector_store %arg6[%c0_13, %c0_14], %15 {strides = array<i32>} : memref<8x128xf32, #tpu.memory_space<vmem>>, vector<8x128xf32>,
    } else {
    }
    return
  }
  func.func @transform_0(%arg0: i32, %arg1: i32, %arg2: i32) -> (i32, i32) {
    %c0_i32 = arith.constant 0 : i32
    return %arg0, %arg2 : i32, i32
  }
  func.func @transform_1(%arg0: i32, %arg1: i32, %arg2: i32) -> (i32, i32) {
    %c0_i32 = arith.constant 0 : i32
    return %arg2, %arg1 : i32, i32
  }
  func.func @transform_2(%arg0: i32, %arg1: i32, %arg2: i32) -> (i32, i32) {
    %c0_i32 = arith.constant 0 : i32
    %c0_i32_0 = arith.constant 0 : i32
    return %c0_i32, %arg1 : i32, i32
  }
  func.func @transform_3(%arg0: i32, %arg1: i32, %arg2: i32) -> (i32, i32) {
    %c0_i32 = arith.constant 0 : i32
    return %arg0, %arg1 : i32, i32
  }
}

module attributes {stable_mosaic.version = 11 : i64} {
  func.func @_domain_mlp_kernel(%arg0: memref<2x32xf32, #tpu.memory_space<vmem>>, %arg1: memref<32x32xf32, #tpu.memory_space<vmem>>, %arg2: memref<1x32xf32, #tpu.memory_space<vmem>>, %arg3: memref<32x1xf32, #tpu.memory_space<vmem>>, %arg4: memref<1x1xf32, #tpu.memory_space<vmem>>, %arg5: memref<2x1xf32, #tpu.memory_space<vmem>>) attributes {dimension_semantics = [], scalar_prefetch = 0 : i64, scratch_operands = 0 : i64, tpu.core_type = #tpu.core_type<tc>} {
    %c0 = arith.constant 0 : index
    %c0_0 = arith.constant 0 : index
    %0 = vector.load %arg0[%c0, %c0_0] : memref<2x32xf32, #tpu.memory_space<vmem>>, vector<2x32xf32>
    %cst = arith.constant 0.000000e+00 : f32
    %1 = vector.broadcast %cst : f32 to vector<2x32xf32>
    %2 = arith.maximumf %0, %1 : vector<2x32xf32>
    %3 = math.absf %0 : vector<2x32xf32>
    %cst_1 = arith.constant 0.000000e+00 : f32
    %4 = vector.broadcast %cst_1 : f32 to vector<2x32xf32>
    %5 = arith.subf %4, %3 : vector<2x32xf32>
    %6 = math.exp %5 : vector<2x32xf32>
    %7 = math.log1p %6 : vector<2x32xf32>
    %8 = arith.addf %2, %7 : vector<2x32xf32>
    %9 = math.tanh %8 : vector<2x32xf32>
    %10 = arith.mulf %0, %9 : vector<2x32xf32>
    %c0_2 = arith.constant 0 : index
    %c0_3 = arith.constant 0 : index
    %11 = vector.load %arg1[%c0_2, %c0_3] : memref<32x32xf32, #tpu.memory_space<vmem>>, vector<32x32xf32>
    %cst_4 = arith.constant dense<0.000000e+00> : vector<2x32xf32>
    %12 = tpu.matmul %10, %11, %cst_4 {dimension_numbers = #tpu.dot_dimension_numbers<[1], [0], [0], [1], [0, 0, 1, 1], [], []>} : vector<2x32xf32>, vector<32x32xf32>, vector<2x32xf32> -> vector<2x32xf32>
    %c0_5 = arith.constant 0 : index
    %c0_6 = arith.constant 0 : index
    %13 = vector.load %arg2[%c0_5, %c0_6] : memref<1x32xf32, #tpu.memory_space<vmem>>, vector<1x32xf32>
    %14 = vector.broadcast %13 : vector<1x32xf32> to vector<2x32xf32>
    %15 = arith.addf %12, %14 : vector<2x32xf32>
    %cst_7 = arith.constant 0.000000e+00 : f32
    %16 = vector.broadcast %cst_7 : f32 to vector<2x32xf32>
    %17 = arith.maximumf %15, %16 : vector<2x32xf32>
    %18 = math.absf %15 : vector<2x32xf32>
    %cst_8 = arith.constant 0.000000e+00 : f32
    %19 = vector.broadcast %cst_8 : f32 to vector<2x32xf32>
    %20 = arith.subf %19, %18 : vector<2x32xf32>
    %21 = math.exp %20 : vector<2x32xf32>
    %22 = math.log1p %21 : vector<2x32xf32>
    %23 = arith.addf %17, %22 : vector<2x32xf32>
    %24 = math.tanh %23 : vector<2x32xf32>
    %25 = arith.mulf %15, %24 : vector<2x32xf32>
    %c0_9 = arith.constant 0 : index
    %c0_10 = arith.constant 0 : index
    %26 = vector.load %arg3[%c0_9, %c0_10] : memref<32x1xf32, #tpu.memory_space<vmem>>, vector<32x1xf32>
    %cst_11 = arith.constant dense<0.000000e+00> : vector<2x1xf32>
    %27 = tpu.matmul %25, %26, %cst_11 {dimension_numbers = #tpu.dot_dimension_numbers<[1], [0], [0], [1], [0, 0, 1, 1], [], []>} : vector<2x32xf32>, vector<32x1xf32>, vector<2x1xf32> -> vector<2x1xf32>
    %c0_12 = arith.constant 0 : index
    %c0_13 = arith.constant 0 : index
    %28 = vector.load %arg4[%c0_12, %c0_13] : memref<1x1xf32, #tpu.memory_space<vmem>>, vector<1x1xf32>
    %29 = vector.broadcast %28 : vector<1x1xf32> to vector<2x1xf32>
    %30 = arith.addf %27, %29 : vector<2x1xf32>
    %c0_14 = arith.constant 0 : index
    %c0_15 = arith.constant 0 : index
    %31 = vector.load %arg5[%c0_14, %c0_15] : memref<2x1xf32, #tpu.memory_space<vmem>>, vector<2x1xf32>
    tpu.vector_store %arg5[%c0_14, %c0_15], %30 {strides = array<i32>} : memref<2x1xf32, #tpu.memory_space<vmem>>, vector<2x1xf32>,
    return
  }
}

</mosaic_0001>

<llo_original>
// kernel: dcnn_forward.5
$region0: #{dcnn_forward.5}
  #allocation0 [shape = 'u32[]', space=smem, size = 0x4, offset = 0x4, fixed_abs, tag = 'smem constant byte address 0x4 - core index']
  #allocation1 [shape = 'u32[144,128]{1,0:T(1,128)}', space=vmem, size = 0x12000, scoped, tag = 'internal scratch']
  #allocation2 [shape = 'f32[256,128]{1,0:T(8,128)}', space=vmem, size = 0x20000, scoped, tag = 'scratch operand']
  %s0 = inlined_call_operand.vmem [shape: bf16[512,128], index: 0, kind: input, shape index: {}]
  %s1 = inlined_call_operand.vmem [shape: bf16[128,128], index: 1, kind: input, shape index: {}]
  %s2 = inlined_call_operand.vmem [shape: f32[1,128], index: 2, kind: input, shape index: {}]
  %s3 = inlined_call_operand.vmem [shape: bf16[512,128], index: 3, kind: output, shape index: {}]
  %s4 = sld [smem:[#allocation0]]
  $region53: #{dcnn_forward.5} parent=0
    _
  %s6 = ssub.s32 1, %s4
  %s7 = scalar_select 0, %s6, %s4
  loop: start=0, step=1, limit=4
  $region2: #{dcnn_forward.5} parent=0 // loop_pre_header
    _
  $region3: #{dcnn_forward.5} parent=0 // loop_header
    %s9 = sphi 0, %s13
    %p10 = scmp.ge.s32.totalorder %s9, 4
    %s16 = sphi 0, %s35
    %s17 = sphi 0, %s31
    %s18 = sphi 0, %s27
    %s19 = sphi 0, %s16
    %s20 = sphi 0, %s17
    %s21 = sphi 0, %s18
    %s22 = sphi 0, %s19
    %s23 = sphi 0, %s20
    %s24 = sphi 0, %s21
    %s40 = sphi 0, %s42
    %s43 = sphi 0, %s40
    %s44 = sphi 0, %s43
    %s60 = sphi 0, %s44
    %s68 = sphi 0, %s70
    %s71 = sphi 0, %s68
    %s72 = sphi 0, %s71
    %s88 = sphi 0, %s72
    %s94 = sphi 0, %s96
    %s97 = sphi 0, %s94
    %s98 = sphi 0, %s97
    %s114 = sphi 0, %s98
    %s122 = sphi 0, %s124
    %s125 = sphi 0, %s122
    %s126 = sphi 0, %s125
    %s142 = sphi 0, %s126
  $region4: #{dcnn_forward.5} parent=0 // loop_header_branch
    %12 = sbr.rel (%p10) target = $region8
  $region5: #{dcnn_forward.5} parent=0 // loop_body
    %s14 = ssub.s32 %s9, 1
    %s15 = ssub.s32 %s9, 2
    %s25 = sadd.s32 1, %s18
    %p26 = scmp.ge.s32.totalorder %s25, 1
    %s27 = scalar_select %p26, 0, %s25
    %s28 = sadd.s32 1, %s17
    %s29 = scalar_select %p26, %s28, %s17
    %p30 = scmp.ge.s32.totalorder %s29, 1
    %s31 = scalar_select %p30, 0, %s29
    %s32 = sadd.s32 1, %s16
    %s33 = scalar_select %p30, %s32, %s16
    %p34 = scmp.ge.s32.totalorder %s33, 2
    %s35 = scalar_select %p34, 0, %s33
    %s36 = ssub.s32 %s16, %s35
    %s37 = ssub.s32 %s18, %s27
    %s38 = sor.u32 %s36, %s37
    %p39 = scmp.eq.s32.totalorder %s38, 0
    %s41 = sadd.s32 %s40, 1
    %s42 = scalar_select %p39, %s40, %s41
    %p45 = pneg %p39
    %p46 = scmp.eq.s32.totalorder %s9, 1
    %p47 = por %p45, %p46
    %p48 = scmp.ne.s32.totalorder %s40, %s43
    %p49 = scmp.eq.s32.totalorder %s9, 0
    %p50 = por %p48, %p49
    %p51 = scmp.ne.s32.totalorder %s40, %s43
    %p52 = scmp.eq.s32.totalorder %s14, 1
    %p53 = por %p51, %p52
    %p54 = scmp.ne.s32.totalorder %s43, %s44
    %p55 = scmp.eq.s32.totalorder %s14, 0
    %p56 = por %p54, %p55
    %p57 = scmp.ne.s32.totalorder %s43, %s44
    %p58 = scmp.eq.s32.totalorder %s15, 1
    %p59 = por %p57, %p58
    %p61 = scmp.ne.s32.totalorder %s44, %s60
    %p62 = scmp.eq.s32.totalorder %s15, 0
    %p63 = por %p61, %p62
    %s64 = ssub.s32 %s18, %s27
    %s65 = ssub.s32 %s17, %s31
    %s66 = sor.u32 %s64, %s65
    %p67 = scmp.eq.s32.totalorder %s66, 0
    %s69 = sadd.s32 %s68, 1
    %s70 = scalar_select %p67, %s68, %s69
    %p73 = pneg %p67
    %p74 = scmp.eq.s32.totalorder %s9, 1
    %p75 = por %p73, %p74
    %p76 = scmp.ne.s32.totalorder %s68, %s71
    %p77 = scmp.eq.s32.totalorder %s9, 0
    %p78 = por %p76, %p77
    %p79 = scmp.ne.s32.totalorder %s68, %s71
    %p80 = scmp.eq.s32.totalorder %s14, 1
    %p81 = por %p79, %p80
    %p82 = scmp.ne.s32.totalorder %s71, %s72
    %p83 = scmp.eq.s32.totalorder %s14, 0
    %p84 = por %p82, %p83
    %p85 = scmp.ne.s32.totalorder %s71, %s72
    %p86 = scmp.eq.s32.totalorder %s15, 1
    %p87 = por %p85, %p86
    %p89 = scmp.ne.s32.totalorder %s72, %s88
    %p90 = scmp.eq.s32.totalorder %s15, 0
    %p91 = por %p89, %p90
    %s92 = ssub.s32 %s17, %s31
    %p93 = scmp.eq.s32.totalorder %s92, 0
    %s95 = sadd.s32 %s94, 1
    %s96 = scalar_select %p93, %s94, %s95
    %p99 = pneg %p93
    %p100 = scmp.eq.s32.totalorder %s9, 1
    %p101 = por %p99, %p100
    %p102 = scmp.ne.s32.totalorder %s94, %s97
    %p103 = scmp.eq.s32.totalorder %s9, 0
    %p104 = por %p102, %p103
    %p105 = scmp.ne.s32.totalorder %s94, %s97
    %p106 = scmp.eq.s32.totalorder %s14, 1
    %p107 = por %p105, %p106
    %p108 = scmp.ne.s32.totalorder %s97, %s98
    %p109 = scmp.eq.s32.totalorder %s14, 0
    %p110 = por %p108, %p109
    %p111 = scmp.ne.s32.totalorder %s97, %s98
    %p112 = scmp.eq.s32.totalorder %s15, 1
    %p113 = por %p111, %p112
    %p115 = scmp.ne.s32.totalorder %s98, %s114
    %p116 = scmp.eq.s32.totalorder %s15, 0
    %p117 = por %p115, %p116
    %s118 = ssub.s32 %s16, %s35
    %s119 = ssub.s32 %s17, %s31
    %s120 = sor.u32 %s118, %s119
    %p121 = scmp.eq.s32.totalorder %s120, 0
    %s123 = sadd.s32 %s122, 1
    %s124 = scalar_select %p121, %s122, %s123
    %p127 = pneg %p121
    %p128 = scmp.eq.s32.totalorder %s9, 1
    %p129 = por %p127, %p128
    %p130 = scmp.ne.s32.totalorder %s122, %s125
    %p131 = scmp.eq.s32.totalorder %s9, 0
    %p132 = por %p130, %p131
    %p133 = scmp.ne.s32.totalorder %s122, %s125
    %p134 = scmp.eq.s32.totalorder %s14, 1
    %p135 = por %p133, %p134
    %p136 = scmp.ne.s32.totalorder %s125, %s126
    %p137 = scmp.eq.s32.totalorder %s14, 0
    %p138 = por %p136, %p137
    %p139 = scmp.ne.s32.totalorder %s125, %s126
    %p140 = scmp.eq.s32.totalorder %s15, 1
    %p141 = por %p139, %p140
    %p143 = scmp.ne.s32.totalorder %s126, %s142
    %p144 = scmp.eq.s32.totalorder %s15, 0
    %p145 = por %p143, %p144
    %p146 = scmp.le.s32.totalorder 1, %s9
    %p147 = scmp.lt.s32.totalorder %s9, 3
    %p148 = pnand %p146, %p147
    %p149 = pneg %p148
    // Predicated region
    $region9: #{dcnn_forward.5} parent=5 // pred_check
      _
    $region10: #{dcnn_forward.5} parent=5 // pred_check_branch
      %151 = sbr.rel (%p148) target = $region12
    $region11: #{dcnn_forward.5} parent=5 // pred_region
      %s152 = ssub.s32 %s9, 1
      // Predicated region
      $region13: #{dcnn_forward.5} parent=11 // pred_check
        %p153 = pneg %p84
      $region14: #{dcnn_forward.5} parent=11 // pred_check_branch
        %155 = sbr.rel (%p153) target = $region16
      $region15: #{dcnn_forward.5} parent=11 // pred_region
        %s156 = smul.u32 16, %s21
        %p157 = scmp.lt.s32.totalorder %s156, 15
        %s158 = scalar_select %p157, %s156, 15
        %p159 = scmp.lt.s32.totalorder %s20, 0
        %s160 = scalar_select %p159, %s20, 0
        %s161 = sadd.s32 %s160, %s158
        %s162 = smul.addr %s161, 4
        %s163 = scalar_lea.vmem %s1, %s162
        %s164 = smul.u32 16, %s21
      $region16: #{dcnn_forward.5} parent=11 // pred_fallthru
        _
      // Predicated region
      $region17: #{dcnn_forward.5} parent=11 // pred_check
        %p165 = pneg %p110
      $region18: #{dcnn_forward.5} parent=11 // pred_check_branch
        %167 = sbr.rel (%p165) target = $region20
      $region19: #{dcnn_forward.5} parent=11 // pred_region
        %p168 = scmp.lt.s32.totalorder %s20, 0
        %s169 = scalar_select %p168, %s20, 0
        %s170 = scalar_lea.vmem %s2, %s169
      $region20: #{dcnn_forward.5} parent=11 // pred_fallthru
        _
    $region12: #{dcnn_forward.5} parent=5 // pred_fallthru
      _
    %p171 = scmp.lt.s32.totalorder %s9, 2
    // Predicated region
    $region21: #{dcnn_forward.5} parent=5 // pred_check
      %p172 = pneg %p171
    $region22: #{dcnn_forward.5} parent=5 // pred_check_branch
      %174 = sbr.rel (%p172) target = $region24
    $region23: #{dcnn_forward.5} parent=5 // pred_region
      // Predicated region
      $region25: #{dcnn_forward.5} parent=23 // pred_check
        %p175 = pneg %p50
      $region26: #{dcnn_forward.5} parent=23 // pred_check_branch
        %177 = sbr.rel (%p175) target = $region28
      $region27: #{dcnn_forward.5} parent=23 // pred_region
        %s178 = smul.u32 32, %s16
        %p179 = scmp.lt.s32.totalorder %s178, 63
        %s180 = scalar_select %p179, %s178, 63
        %p181 = scmp.lt.s32.totalorder %s18, 0
        %s182 = scalar_select %p181, %s18, 0
        %s183 = sadd.s32 %s182, %s180
        %s184 = smul.addr %s183, 4
        %s185 = scalar_lea.vmem %s0, %s184
        %s186 = smul.u32 32, %s16
      $region28: #{dcnn_forward.5} parent=23 // pred_fallthru
        _
    $region24: #{dcnn_forward.5} parent=5 // pred_fallthru
      _
    %p187 = scmp.le.s32.totalorder 1, %s9
    %p188 = scmp.lt.s32.totalorder %s9, 3
    %p189 = pnand %p187, %p188
    %p190 = pneg %p189
    // Predicated region
    $region29: #{dcnn_forward.5} parent=5 // pred_check
      _
    $region30: #{dcnn_forward.5} parent=5 // pred_check_branch
      %192 = sbr.rel (%p189) target = $region32
    $region31: #{dcnn_forward.5} parent=5 // pred_region
      %s193 = ssub.s32 %s9, 1
      %s194 = smul.u32 32, %s19
      %p195 = scmp.lt.s32.totalorder %s194, 63
      %s196 = scalar_select %p195, %s194, 63
      %p197 = scmp.lt.s32.totalorder %s21, 0
      %s198 = scalar_select %p197, %s21, 0
      %s199 = sadd.s32 %s198, %s196
      %s200 = smul.addr %s199, 4
      %s201 = scalar_lea.vmem %s0, %s200
      %p202 = pneg %p56
      %p203 = pneg %p53
      %s204 = smul.u32 16, %s21
      %p205 = scmp.lt.s32.totalorder %s204, 15
      %s206 = scalar_select %p205, %s204, 15
      %p207 = scmp.lt.s32.totalorder %s20, 0
      %s208 = scalar_select %p207, %s20, 0
      %s209 = sadd.s32 %s208, %s206
      %s210 = smul.addr %s209, 4
      %s211 = scalar_lea.vmem %s1, %s210
      %p212 = pneg %p84
      %p213 = pneg %p81
      %p214 = scmp.lt.s32.totalorder %s20, 0
      %s215 = scalar_select %p214, %s20, 0
      %s216 = scalar_lea.vmem %s2, %s215
      %p217 = pneg %p110
      %p218 = pneg %p107
      %p219 = pneg %p138
      %p220 = pneg %p135
      %s221 = smul.u32 32, %s19
      %p222 = scmp.lt.s32.totalorder %s221, 63
      %s223 = scalar_select %p222, %s221, 63
      %p224 = scmp.lt.s32.totalorder %s20, 0
      %s225 = scalar_select %p224, %s20, 0
      %s226 = sadd.s32 %s225, %s223
      %s227 = smul.addr %s226, 4
      %s228 = scalar_lea.vmem %s3, %s227
      %s229 = smul.u32 32, %s19
      %p230 = scmp.lt.s32.totalorder %s229, 63
      %s231 = scalar_select %p230, %s229, 63
      %p232 = scmp.lt.s32.totalorder %s21, 0
      %s233 = scalar_select %p232, %s21, 0
      %s234 = sadd.s32 %s233, %s231
      %s235 = smul.addr %s234, 4
      %s236 = scalar_lea.vmem %s0, %s235
      %s237 = smul.u32 32, %s19
      %s238 = smul.u32 16, %s21
      %p239 = scmp.lt.s32.totalorder %s238, 15
      %s240 = scalar_select %p239, %s238, 15
      %p241 = scmp.lt.s32.totalorder %s20, 0
      %s242 = scalar_select %p241, %s20, 0
      %s243 = sadd.s32 %s242, %s240
      %s244 = smul.addr %s243, 4
      %s245 = scalar_lea.vmem %s1, %s244
      %s246 = smul.u32 16, %s21
      %p247 = scmp.lt.s32.totalorder %s20, 0
      %s248 = scalar_select %p247, %s20, 0
      %s249 = scalar_lea.vmem %s2, %s248
      %s250 = smul.u32 32, %s19
      %p251 = scmp.lt.s32.totalorder %s250, 63
      %s252 = scalar_select %p251, %s250, 63
      %p253 = scmp.lt.s32.totalorder %s20, 0
      %s254 = scalar_select %p253, %s20, 0
      %s255 = sadd.s32 %s254, %s252
      %s256 = smul.addr %s255, 4
      %s257 = scalar_lea.vmem %s3, %s256
      %s258 = smul.u32 32, %s19
      %p260 = scmp.eq.s32.totalorder %s21, 0
      // Predicated region
      $region33: #{dcnn_forward.5} parent=31 // pred_check
        %p261 = pneg %p260
      $region34: #{dcnn_forward.5} parent=31 // pred_check_branch
        %263 = sbr.rel (%p261) target = $region36
      $region35: #{dcnn_forward.5} parent=31 // pred_region
        %264 = vst [vmem:[#allocation2] sm:$0xff] 0.0
        %265 = vst [vmem:[#allocation2 + $0x8] sm:$0xff] 0.0
        %266 = vst [vmem:[#allocation2 + $0x10] sm:$0xff] 0.0
        %267 = vst [vmem:[#allocation2 + $0x18] sm:$0xff] 0.0
        %268 = vst [vmem:[#allocation2 + $0x20] sm:$0xff] 0.0
        %269 = vst [vmem:[#allocation2 + $0x28] sm:$0xff] 0.0
        %270 = vst [vmem:[#allocation2 + $0x30] sm:$0xff] 0.0
        %271 = vst [vmem:[#allocation2 + $0x38] sm:$0xff] 0.0
        %272 = vst [vmem:[#allocation2 + $0x40] sm:$0xff] 0.0
        %273 = vst [vmem:[#allocation2 + $0x48] sm:$0xff] 0.0
        %274 = vst [vmem:[#allocation2 + $0x50] sm:$0xff] 0.0
        %275 = vst [vmem:[#allocation2 + $0x58] sm:$0xff] 0.0
        %276 = vst [vmem:[#allocation2 + $0x60] sm:$0xff] 0.0
        %277 = vst [vmem:[#allocation2 + $0x68] sm:$0xff] 0.0
        %278 = vst [vmem:[#allocation2 + $0x70] sm:$0xff] 0.0
        %279 = vst [vmem:[#allocation2 + $0x78] sm:$0xff] 0.0
        %280 = vst [vmem:[#allocation2 + $0x80] sm:$0xff] 0.0
        %281 = vst [vmem:[#allocation2 + $0x88] sm:$0xff] 0.0
        %282 = vst [vmem:[#allocation2 + $0x90] sm:$0xff] 0.0
        %283 = vst [vmem:[#allocation2 + $0x98] sm:$0xff] 0.0
        %284 = vst [vmem:[#allocation2 + $0xa0] sm:$0xff] 0.0
        %285 = vst [vmem:[#allocation2 + $0xa8] sm:$0xff] 0.0
        %286 = vst [vmem:[#allocation2 + $0xb0] sm:$0xff] 0.0
        %287 = vst [vmem:[#allocation2 + $0xb8] sm:$0xff] 0.0
        %288 = vst [vmem:[#allocation2 + $0xc0] sm:$0xff] 0.0
        %289 = vst [vmem:[#allocation2 + $0xc8] sm:$0xff] 0.0
        %290 = vst [vmem:[#allocation2 + $0xd0] sm:$0xff] 0.0
        %291 = vst [vmem:[#allocation2 + $0xd8] sm:$0xff] 0.0
        %292 = vst [vmem:[#allocation2 + $0xe0] sm:$0xff] 0.0
        %293 = vst [vmem:[#allocation2 + $0xe8] sm:$0xff] 0.0
        %294 = vst [vmem:[#allocation2 + $0xf0] sm:$0xff] 0.0
        %295 = vst [vmem:[#allocation2 + $0xf8] sm:$0xff] 0.0
      $region36: #{dcnn_forward.5} parent=31 // pred_fallthru
        _
      %v296 = vld [vmem:[#allocation2] sm:$0xff]
      %v297 = vld [vmem:[#allocation2 + $0x8] sm:$0xff]
      %v298 = vld [vmem:[#allocation2 + $0x10] sm:$0xff]
      %v299 = vld [vmem:[#allocation2 + $0x18] sm:$0xff]
      %v300 = vld [vmem:[#allocation2 + $0x20] sm:$0xff]
      %v301 = vld [vmem:[#allocation2 + $0x28] sm:$0xff]
      %v302 = vld [vmem:[#allocation2 + $0x30] sm:$0xff]
      %v303 = vld [vmem:[#allocation2 + $0x38] sm:$0xff]
      %v304 = vld [vmem:[#allocation2 + $0x40] sm:$0xff]
      %v305 = vld [vmem:[#allocation2 + $0x48] sm:$0xff]
      %v306 = vld [vmem:[#allocation2 + $0x50] sm:$0xff]
      %v307 = vld [vmem:[#allocation2 + $0x58] sm:$0xff]
      %v308 = vld [vmem:[#allocation2 + $0x60] sm:$0xff]
      %v309 = vld [vmem:[#allocation2 + $0x68] sm:$0xff]
      %v310 = vld [vmem:[#allocation2 + $0x70] sm:$0xff]
      %v311 = vld [vmem:[#allocation2 + $0x78] sm:$0xff]
      %v312 = vld [vmem:[#allocation2 + $0x80] sm:$0xff]
      %v313 = vld [vmem:[#allocation2 + $0x88] sm:$0xff]
      %v314 = vld [vmem:[#allocation2 + $0x90] sm:$0xff]
      %v315 = vld [vmem:[#allocation2 + $0x98] sm:$0xff]
      %v316 = vld [vmem:[#allocation2 + $0xa0] sm:$0xff]
      %v317 = vld [vmem:[#allocation2 + $0xa8] sm:$0xff]
      %v318 = vld [vmem:[#allocation2 + $0xb0] sm:$0xff]
      %v319 = vld [vmem:[#allocation2 + $0xb8] sm:$0xff]
      %v320 = vld [vmem:[#allocation2 + $0xc0] sm:$0xff]
      %v321 = vld [vmem:[#allocation2 + $0xc8] sm:$0xff]
      %v322 = vld [vmem:[#allocation2 + $0xd0] sm:$0xff]
      %v323 = vld [vmem:[#allocation2 + $0xd8] sm:$0xff]
      %v324 = vld [vmem:[#allocation2 + $0xe0] sm:$0xff]
      %v325 = vld [vmem:[#allocation2 + $0xe8] sm:$0xff]
      %v326 = vld [vmem:[#allocation2 + $0xf0] sm:$0xff]
      %v327 = vld [vmem:[#allocation2 + $0xf8] sm:$0xff]
      %v328 = vld [vmem:[%s236] sm:$0xf]
      %v329 = vld [vmem:[%s236 + $0x4] sm:$0xf]
      %v330 = vld [vmem:[%s236 + $0x8] sm:$0xf]
      %v331 = vld [vmem:[%s236 + $0xc] sm:$0xf]
      %v332 = vld [vmem:[%s236 + $0x10] sm:$0xf]
      %v333 = vld [vmem:[%s236 + $0x14] sm:$0xf]
      %v334 = vld [vmem:[%s236 + $0x18] sm:$0xf]
      %v335 = vld [vmem:[%s236 + $0x1c] sm:$0xf]
      %v336 = vld [vmem:[%s236 + $0x20] sm:$0xf]
      %v337 = vld [vmem:[%s236 + $0x24] sm:$0xf]
      %v338 = vld [vmem:[%s236 + $0x28] sm:$0xf]
      %v339 = vld [vmem:[%s236 + $0x2c] sm:$0xf]
      %v340 = vld [vmem:[%s236 + $0x30] sm:$0xf]
      %v341 = vld [vmem:[%s236 + $0x34] sm:$0xf]
      %v342 = vld [vmem:[%s236 + $0x38] sm:$0xf]
      %v343 = vld [vmem:[%s236 + $0x3c] sm:$0xf]
      %v344 = vld [vmem:[%s236 + $0x40] sm:$0xf]
      %v345 = vld [vmem:[%s236 + $0x44] sm:$0xf]
      %v346 = vld [vmem:[%s236 + $0x48] sm:$0xf]
      %v347 = vld [vmem:[%s236 + $0x4c] sm:$0xf]
      %v348 = vld [vmem:[%s236 + $0x50] sm:$0xf]
      %v349 = vld [vmem:[%s236 + $0x54] sm:$0xf]
      %v350 = vld [vmem:[%s236 + $0x58] sm:$0xf]
      %v351 = vld [vmem:[%s236 + $0x5c] sm:$0xf]
      %v352 = vld [vmem:[%s236 + $0x60] sm:$0xf]
      %v353 = vld [vmem:[%s236 + $0x64] sm:$0xf]
      %v354 = vld [vmem:[%s236 + $0x68] sm:$0xf]
      %v355 = vld [vmem:[%s236 + $0x6c] sm:$0xf]
      %v356 = vld [vmem:[%s236 + $0x70] sm:$0xf]
      %v357 = vld [vmem:[%s236 + $0x74] sm:$0xf]
      %v358 = vld [vmem:[%s236 + $0x78] sm:$0xf]
      %v359 = vld [vmem:[%s236 + $0x7c] sm:$0xf]
      %v360 = vld [vmem:[%s245] sm:$0xf]
      %v361 = vld [vmem:[%s245 + $0x4] sm:$0xf]
      %v362 = vld [vmem:[%s245 + $0x8] sm:$0xf]
      %v363 = vld [vmem:[%s245 + $0xc] sm:$0xf]
      %v364 = vld [vmem:[%s245 + $0x10] sm:$0xf]
      %v365 = vld [vmem:[%s245 + $0x14] sm:$0xf]
      %v366 = vld [vmem:[%s245 + $0x18] sm:$0xf]
      %v367 = vld [vmem:[%s245 + $0x1c] sm:$0xf]
      %v368 = vld [vmem:[%s245 + $0x20] sm:$0xf]
      %v369 = vld [vmem:[%s245 + $0x24] sm:$0xf]
      %v370 = vld [vmem:[%s245 + $0x28] sm:$0xf]
      %v371 = vld [vmem:[%s245 + $0x2c] sm:$0xf]
      %v372 = vld [vmem:[%s245 + $0x30] sm:$0xf]
      %v373 = vld [vmem:[%s245 + $0x34] sm:$0xf]
      %v374 = vld [vmem:[%s245 + $0x38] sm:$0xf]
      %v375 = vld [vmem:[%s245 + $0x3c] sm:$0xf]
      %v408 = vunpack.c.l.b16 %v328
      %v409 = vunpack.c.l.b16 %v329
      %v410 = vunpack.c.l.b16 %v330
      %v411 = vunpack.c.l.b16 %v331
      %v412 = vunpack.c.l.b16 %v332
      %v413 = vunpack.c.l.b16 %v333
      %v414 = vunpack.c.l.b16 %v334
      %v415 = vunpack.c.l.b16 %v335
      %v416 = vunpack.c.l.b16 %v336
      %v417 = vunpack.c.l.b16 %v337
      %v418 = vunpack.c.l.b16 %v338
      %v419 = vunpack.c.l.b16 %v339
      %v420 = vunpack.c.l.b16 %v340
      %v421 = vunpack.c.l.b16 %v341
      %v422 = vunpack.c.l.b16 %v342
      %v423 = vunpack.c.l.b16 %v343
      %v424 = vunpack.c.l.b16 %v344
      %v425 = vunpack.c.l.b16 %v345
      %v426 = vunpack.c.l.b16 %v346
      %v427 = vunpack.c.l.b16 %v347
      %v428 = vunpack.c.l.b16 %v348
      %v429 = vunpack.c.l.b16 %v349
      %v430 = vunpack.c.l.b16 %v350
      %v431 = vunpack.c.l.b16 %v351
      %v432 = vunpack.c.l.b16 %v352
      %v433 = vunpack.c.l.b16 %v353
      %v434 = vunpack.c.l.b16 %v354
      %v435 = vunpack.c.l.b16 %v355
      %v436 = vunpack.c.l.b16 %v356
      %v437 = vunpack.c.l.b16 %v357
      %v438 = vunpack.c.l.b16 %v358
      %v439 = vunpack.c.l.b16 %v359
      %v440 = vpack.c.b16 %v409, %v408
      %v441 = vpack.c.b16 %v411, %v410
      %v442 = vpack.c.b16 %v413, %v412
      %v443 = vpack.c.b16 %v415, %v414
      %v444 = vpack.c.b16 %v417, %v416
      %v445 = vpack.c.b16 %v419, %v418
      %v446 = vpack.c.b16 %v421, %v420
      %v447 = vpack.c.b16 %v423, %v422
      %v448 = vpack.c.b16 %v425, %v424
      %v449 = vpack.c.b16 %v427, %v426
      %v450 = vpack.c.b16 %v429, %v428
      %v451 = vpack.c.b16 %v431, %v430
      %v452 = vpack.c.b16 %v433, %v432
      %v453 = vpack.c.b16 %v435, %v434
      %v454 = vpack.c.b16 %v437, %v436
      %v455 = vpack.c.b16 %v439, %v438
      %v488 = vunpack.c.l.b16 %v360
      %v489 = vunpack.c.l.b16 %v361
      %v490 = vunpack.c.l.b16 %v362
      %v491 = vunpack.c.l.b16 %v363
      %v492 = vunpack.c.l.b16 %v364
      %v493 = vunpack.c.l.b16 %v365
      %v494 = vunpack.c.l.b16 %v366
      %v495 = vunpack.c.l.b16 %v367
      %v496 = vunpack.c.l.b16 %v368
      %v497 = vunpack.c.l.b16 %v369
      %v498 = vunpack.c.l.b16 %v370
      %v499 = vunpack.c.l.b16 %v371
      %v500 = vunpack.c.l.b16 %v372
      %v501 = vunpack.c.l.b16 %v373
      %v502 = vunpack.c.l.b16 %v374
      %v503 = vunpack.c.l.b16 %v375
      %v504 = vpack.c.b16 %v489, %v488
      %v505 = vpack.c.b16 %v491, %v490
      %v506 = vpack.c.b16 %v493, %v492
      %v507 = vpack.c.b16 %v495, %v494
      %v508 = vpack.c.b16 %v497, %v496
      %v509 = vpack.c.b16 %v499, %v498
      %v510 = vpack.c.b16 %v501, %v500
      %v511 = vpack.c.b16 %v503, %v502
      %520 = vmatprep.subr.bf16.mxu0 0
      %521 = vmatpush1.bf16.msra.mxu0 %v504
      %522 = vmatprep.subr.bf16.mxu0 0
      %523 = vmatpush1.bf16.msra.mxu0 %v505
      %524 = vmatprep.subr.bf16.mxu0 0
      %525 = vmatpush1.bf16.msra.mxu0 %v506
      %526 = vmatprep.subr.bf16.mxu0 0
      %527 = vmatpush1.bf16.msra.mxu0 %v507
      %528 = vmatprep.subr.bf16.mxu0 0
      %529 = vmatpush1.bf16.msra.mxu0 %v508
      %530 = vmatprep.subr.bf16.mxu0 0
      %531 = vmatpush1.bf16.msra.mxu0 %v509
      %532 = vmatprep.subr.bf16.mxu0 0
      %533 = vmatpush1.bf16.msra.mxu0 %v510
      %534 = vmatprep.subr.bf16.mxu0 0
      %535 = vmatpush1.bf16.msra.mxu0 %v511
      %536 = vmatprep.subr.bf16.mxu0 0
      %537 = vmatpush1.bf16.msra.mxu0 0
      %538 = vmatprep.subr.bf16.mxu0 0
      %539 = vmatpush1.bf16.msra.mxu0 0
      %540 = vmatprep.subr.bf16.mxu0 0
      %541 = vmatpush1.bf16.msra.mxu0 0
      %542 = vmatprep.subr.bf16.mxu0 0
      %543 = vmatpush1.bf16.msra.mxu0 0
      %544 = vmatprep.subr.bf16.mxu0 0
      %545 = vmatpush1.bf16.msra.mxu0 0
      %546 = vmatprep.subr.bf16.mxu0 0
      %547 = vmatpush1.bf16.msra.mxu0 0
      %548 = vmatprep.subr.bf16.mxu0 0
      %549 = vmatpush1.bf16.msra.mxu0 0
      %550 = vmatprep.subr.bf16.mxu0 0
      %551 = vmatpush1.bf16.msra.mxu0 0
      %552 = vmatprep.mubr.bf16.mxu0 0
      %553 = vmatmul.mubr.bf16.gmra.mrb[0].mxu0 %v440
      %v554 = vpop.f32.mrb[0].mxu0
      %v555 = vadd.f32 0.0, %v554
      %v556 = vpop.f32.mrb[0].mxu0
      %v557 = vpop.f32.mrb[0].mxu0
      %v558 = vadd.f32 0.0, %v557
      %v559 = vpop.f32.mrb[0].mxu0
      %560 = vmatprep.mubr.bf16.mxu0 0
      %561 = vmatmul.mubr.bf16.gmra.mrb[0].mxu0 %v441
      %v562 = vpop.f32.mrb[0].mxu0
      %v563 = vadd.f32 0.0, %v562
      %v564 = vpop.f32.mrb[0].mxu0
      %v565 = vpop.f32.mrb[0].mxu0
      %v566 = vadd.f32 0.0, %v565
      %v567 = vpop.f32.mrb[0].mxu0
      %568 = vmatprep.mubr.bf16.mxu0 0
      %569 = vmatmul.mubr.bf16.gmra.mrb[0].mxu0 %v442
      %v570 = vpop.f32.mrb[0].mxu0
      %v571 = vadd.f32 0.0, %v570
      %v572 = vpop.f32.mrb[0].mxu0
      %v573 = vpop.f32.mrb[0].mxu0
      %v574 = vadd.f32 0.0, %v573
      %v575 = vpop.f32.mrb[0].mxu0
      %576 = vmatprep.mubr.bf16.mxu0 0
      %577 = vmatmul.mubr.bf16.gmra.mrb[0].mxu0 %v443
      %v578 = vpop.f32.mrb[0].mxu0
      %v579 = vadd.f32 0.0, %v578
      %v580 = vpop.f32.mrb[0].mxu0
      %v581 = vpop.f32.mrb[0].mxu0
      %v582 = vadd.f32 0.0, %v581
      %v583 = vpop.f32.mrb[0].mxu0
      %584 = vmatprep.mubr.bf16.mxu0 0
      %585 = vmatmul.mubr.bf16.gmra.mrb[0].mxu0 %v444
      %v586 = vpop.f32.mrb[0].mxu0
      %v587 = vadd.f32 0.0, %v586
      %v588 = vpop.f32.mrb[0].mxu0
      %v589 = vpop.f32.mrb[0].mxu0
      %v590 = vadd.f32 0.0, %v589
      %v591 = vpop.f32.mrb[0].mxu0
      %592 = vmatprep.mubr.bf16.mxu0 0
      %593 = vmatmul.mubr.bf16.gmra.mrb[0].mxu0 %v445
      %v594 = vpop.f32.mrb[0].mxu0
      %v595 = vadd.f32 0.0, %v594
      %v596 = vpop.f32.mrb[0].mxu0
      %v597 = vpop.f32.mrb[0].mxu0
      %v598 = vadd.f32 0.0, %v597
      %v599 = vpop.f32.mrb[0].mxu0
      %600 = vmatprep.mubr.bf16.mxu0 0
      %601 = vmatmul.mubr.bf16.gmra.mrb[0].mxu0 %v446
      %v602 = vpop.f32.mrb[0].mxu0
      %v603 = vadd.f32 0.0, %v602
      %v604 = vpop.f32.mrb[0].mxu0
      %v605 = vpop.f32.mrb[0].mxu0
      %v606 = vadd.f32 0.0, %v605
      %v607 = vpop.f32.mrb[0].mxu0
      %608 = vmatprep.mubr.bf16.mxu0 0
      %609 = vmatmul.mubr.bf16.gmra.mrb[0].mxu0 %v447
      %v610 = vpop.f32.mrb[0].mxu0
      %v611 = vadd.f32 0.0, %v610
      %v612 = vpop.f32.mrb[0].mxu0
      %v613 = vpop.f32.mrb[0].mxu0
      %v614 = vadd.f32 0.0, %v613
      %v615 = vpop.f32.mrb[0].mxu0
      %616 = vmatprep.mubr.bf16.mxu0 0
      %617 = vmatmul.mubr.bf16.gmra.mrb[0].mxu0 %v448
      %v618 = vpop.f32.mrb[0].mxu0
      %v619 = vadd.f32 0.0, %v618
      %v620 = vpop.f32.mrb[0].mxu0
      %v621 = vpop.f32.mrb[0].mxu0
      %v622 = vadd.f32 0.0, %v621
      %v623 = vpop.f32.mrb[0].mxu0
      %624 = vmatprep.mubr.bf16.mxu0 0
      %625 = vmatmul.mubr.bf16.gmra.mrb[0].mxu0 %v449
      %v626 = vpop.f32.mrb[0].mxu0
      %v627 = vadd.f32 0.0, %v626
      %v628 = vpop.f32.mrb[0].mxu0
      %v629 = vpop.f32.mrb[0].mxu0
      %v630 = vadd.f32 0.0, %v629
      %v631 = vpop.f32.mrb[0].mxu0
      %632 = vmatprep.mubr.bf16.mxu0 0
      %633 = vmatmul.mubr.bf16.gmra.mrb[0].mxu0 %v450
      %v634 = vpop.f32.mrb[0].mxu0
      %v635 = vadd.f32 0.0, %v634
      %v636 = vpop.f32.mrb[0].mxu0
      %v637 = vpop.f32.mrb[0].mxu0
      %v638 = vadd.f32 0.0, %v637
      %v639 = vpop.f32.mrb[0].mxu0
      %640 = vmatprep.mubr.bf16.mxu0 0
      %641 = vmatmul.mubr.bf16.gmra.mrb[0].mxu0 %v451
      %v642 = vpop.f32.mrb[0].mxu0
      %v643 = vadd.f32 0.0, %v642
      %v644 = vpop.f32.mrb[0].mxu0
      %v645 = vpop.f32.mrb[0].mxu0
      %v646 = vadd.f32 0.0, %v645
      %v647 = vpop.f32.mrb[0].mxu0
      %648 = vmatprep.mubr.bf16.mxu0 0
      %649 = vmatmul.mubr.bf16.gmra.mrb[0].mxu0 %v452
      %v650 = vpop.f32.mrb[0].mxu0
      %v651 = vadd.f32 0.0, %v650
      %v652 = vpop.f32.mrb[0].mxu0
      %v653 = vpop.f32.mrb[0].mxu0
      %v654 = vadd.f32 0.0, %v653
      %v655 = vpop.f32.mrb[0].mxu0
      %656 = vmatprep.mubr.bf16.mxu0 0
      %657 = vmatmul.mubr.bf16.gmra.mrb[0].mxu0 %v453
      %v658 = vpop.f32.mrb[0].mxu0
      %v659 = vadd.f32 0.0, %v658
      %v660 = vpop.f32.mrb[0].mxu0
      %v661 = vpop.f32.mrb[0].mxu0
      %v662 = vadd.f32 0.0, %v661
      %v663 = vpop.f32.mrb[0].mxu0
      %664 = vmatprep.mubr.bf16.mxu0 0
      %665 = vmatmul.mubr.bf16.gmra.mrb[0].mxu0 %v454
      %v666 = vpop.f32.mrb[0].mxu0
      %v667 = vadd.f32 0.0, %v666
      %v668 = vpop.f32.mrb[0].mxu0
      %v669 = vpop.f32.mrb[0].mxu0
      %v670 = vadd.f32 0.0, %v669
      %v671 = vpop.f32.mrb[0].mxu0
      %672 = vmatprep.mubr.bf16.mxu0 0
      %673 = vmatmul.mubr.bf16.gmra.mrb[0].mxu0 %v455
      %v674 = vpop.f32.mrb[0].mxu0
      %v675 = vadd.f32 0.0, %v674
      %v676 = vpop.f32.mrb[0].mxu0
      %v677 = vpop.f32.mrb[0].mxu0
      %v678 = vadd.f32 0.0, %v677
      %v679 = vpop.f32.mrb[0].mxu0
      %680 = vdwg.mxu0
      %v681 = vadd.f32 %v296, %v555
      %v682 = vadd.f32 %v297, %v558
      %v683 = vadd.f32 %v298, %v563
      %v684 = vadd.f32 %v299, %v566
      %v685 = vadd.f32 %v300, %v571
      %v686 = vadd.f32 %v301, %v574
      %v687 = vadd.f32 %v302, %v579
      %v688 = vadd.f32 %v303, %v582
      %v689 = vadd.f32 %v304, %v587
      %v690 = vadd.f32 %v305, %v590
      %v691 = vadd.f32 %v306, %v595
      %v692 = vadd.f32 %v307, %v598
      %v693 = vadd.f32 %v308, %v603
      %v694 = vadd.f32 %v309, %v606
      %v695 = vadd.f32 %v310, %v611
      %v696 = vadd.f32 %v311, %v614
      %v697 = vadd.f32 %v312, %v619
      %v698 = vadd.f32 %v313, %v622
      %v699 = vadd.f32 %v314, %v627
      %v700 = vadd.f32 %v315, %v630
      %v701 = vadd.f32 %v316, %v635
      %v702 = vadd.f32 %v317, %v638
      %v703 = vadd.f32 %v318, %v643
      %v704 = vadd.f32 %v319, %v646
      %v705 = vadd.f32 %v320, %v651
      %v706 = vadd.f32 %v321, %v654
      %v707 = vadd.f32 %v322, %v659
      %v708 = vadd.f32 %v323, %v662
      %v709 = vadd.f32 %v324, %v667
      %v710 = vadd.f32 %v325, %v670
      %v711 = vadd.f32 %v326, %v675
      %v712 = vadd.f32 %v327, %v678
      %713 = vst [vmem:[#allocation2] sm:$0xff] %v681
      %714 = vst [vmem:[#allocation2 + $0x8] sm:$0xff] %v682
      %715 = vst [vmem:[#allocation2 + $0x10] sm:$0xff] %v683
      %716 = vst [vmem:[#allocation2 + $0x18] sm:$0xff] %v684
      %717 = vst [vmem:[#allocation2 + $0x20] sm:$0xff] %v685
      %718 = vst [vmem:[#allocation2 + $0x28] sm:$0xff] %v686
      %719 = vst [vmem:[#allocation2 + $0x30] sm:$0xff] %v687
      %720 = vst [vmem:[#allocation2 + $0x38] sm:$0xff] %v688
      %721 = vst [vmem:[#allocation2 + $0x40] sm:$0xff] %v689
      %722 = vst [vmem:[#allocation2 + $0x48] sm:$0xff] %v690
      %723 = vst [vmem:[#allocation2 + $0x50] sm:$0xff] %v691
      %724 = vst [vmem:[#allocation2 + $0x58] sm:$0xff] %v692
      %725 = vst [vmem:[#allocation2 + $0x60] sm:$0xff] %v693
      %726 = vst [vmem:[#allocation2 + $0x68] sm:$0xff] %v694
      %727 = vst [vmem:[#allocation2 + $0x70] sm:$0xff] %v695
      %728 = vst [vmem:[#allocation2 + $0x78] sm:$0xff] %v696
      %729 = vst [vmem:[#allocation2 + $0x80] sm:$0xff] %v697
      %730 = vst [vmem:[#allocation2 + $0x88] sm:$0xff] %v698
      %731 = vst [vmem:[#allocation2 + $0x90] sm:$0xff] %v699
      %732 = vst [vmem:[#allocation2 + $0x98] sm:$0xff] %v700
      %733 = vst [vmem:[#allocation2 + $0xa0] sm:$0xff] %v701
      %734 = vst [vmem:[#allocation2 + $0xa8] sm:$0xff] %v702
      %735 = vst [vmem:[#allocation2 + $0xb0] sm:$0xff] %v703
      %736 = vst [vmem:[#allocation2 + $0xb8] sm:$0xff] %v704
      %737 = vst [vmem:[#allocation2 + $0xc0] sm:$0xff] %v705
      %738 = vst [vmem:[#allocation2 + $0xc8] sm:$0xff] %v706
      %739 = vst [vmem:[#allocation2 + $0xd0] sm:$0xff] %v707
      %740 = vst [vmem:[#allocation2 + $0xd8] sm:$0xff] %v708
      %741 = vst [vmem:[#allocation2 + $0xe0] sm:$0xff] %v709
      %742 = vst [vmem:[#allocation2 + $0xe8] sm:$0xff] %v710
      %743 = vst [vmem:[#allocation2 + $0xf0] sm:$0xff] %v711
      %744 = vst [vmem:[#allocation2 + $0xf8] sm:$0xff] %v712
      // Predicated region
      $region37: #{dcnn_forward.5} parent=31 // pred_check
        %p745 = pneg %p260
      $region38: #{dcnn_forward.5} parent=31 // pred_check_branch
        %747 = sbr.rel (%p745) target = $region40
      $region39: #{dcnn_forward.5} parent=31 // pred_region
        %v748 = vld [vmem:[#allocation2] sm:$0xff]
        %v749 = vld [vmem:[#allocation2 + $0x8] sm:$0xff]
        %v750 = vld [vmem:[#allocation2 + $0x10] sm:$0xff]
        %v751 = vld [vmem:[#allocation2 + $0x18] sm:$0xff]
        %v752 = vld [vmem:[#allocation2 + $0x20] sm:$0xff]
        %v753 = vld [vmem:[#allocation2 + $0x28] sm:$0xff]
        %v754 = vld [vmem:[#allocation2 + $0x30] sm:$0xff]
        %v755 = vld [vmem:[#allocation2 + $0x38] sm:$0xff]
        %v756 = vld [vmem:[#allocation2 + $0x40] sm:$0xff]
        %v757 = vld [vmem:[#allocation2 + $0x48] sm:$0xff]
        %v758 = vld [vmem:[#allocation2 + $0x50] sm:$0xff]
        %v759 = vld [vmem:[#allocation2 + $0x58] sm:$0xff]
        %v760 = vld [vmem:[#allocation2 + $0x60] sm:$0xff]
        %v761 = vld [vmem:[#allocation2 + $0x68] sm:$0xff]
        %v762 = vld [vmem:[#allocation2 + $0x70] sm:$0xff]
        %v763 = vld [vmem:[#allocation2 + $0x78] sm:$0xff]
        %v764 = vld [vmem:[#allocation2 + $0x80] sm:$0xff]
        %v765 = vld [vmem:[#allocation2 + $0x88] sm:$0xff]
        %v766 = vld [vmem:[#allocation2 + $0x90] sm:$0xff]
        %v767 = vld [vmem:[#allocation2 + $0x98] sm:$0xff]
        %v768 = vld [vmem:[#allocation2 + $0xa0] sm:$0xff]
        %v769 = vld [vmem:[#allocation2 + $0xa8] sm:$0xff]
        %v770 = vld [vmem:[#allocation2 + $0xb0] sm:$0xff]
        %v771 = vld [vmem:[#allocation2 + $0xb8] sm:$0xff]
        %v772 = vld [vmem:[#allocation2 + $0xc0] sm:$0xff]
        %v773 = vld [vmem:[#allocation2 + $0xc8] sm:$0xff]
        %v774 = vld [vmem:[#allocation2 + $0xd0] sm:$0xff]
        %v775 = vld [vmem:[#allocation2 + $0xd8] sm:$0xff]
        %v776 = vld [vmem:[#allocation2 + $0xe0] sm:$0xff]
        %v777 = vld [vmem:[#allocation2 + $0xe8] sm:$0xff]
        %v778 = vld [vmem:[#allocation2 + $0xf0] sm:$0xff]
        %v779 = vld [vmem:[#allocation2 + $0xf8] sm:$0xff]
        %v780 = vld [vmem:[%s249] sm:$0x1]
        %v782 = vlaneseq
        %v783 = vshrl.u32 %v782, 7
        %v784 = vsub.s32 0, %v783
        %v785 = vrot.slane %v780, %v784
        %v787 = vadd.f32 %v748, %v785
        %v788 = vadd.f32 %v749, %v785
        %v789 = vadd.f32 %v750, %v785
        %v790 = vadd.f32 %v751, %v785
        %v791 = vadd.f32 %v752, %v785
        %v792 = vadd.f32 %v753, %v785
        %v793 = vadd.f32 %v754, %v785
        %v794 = vadd.f32 %v755, %v785
        %v795 = vadd.f32 %v756, %v785
        %v796 = vadd.f32 %v757, %v785
        %v797 = vadd.f32 %v758, %v785
        %v798 = vadd.f32 %v759, %v785
        %v799 = vadd.f32 %v760, %v785
        %v800 = vadd.f32 %v761, %v785
        %v801 = vadd.f32 %v762, %v785
        %v802 = vadd.f32 %v763, %v785
        %v803 = vadd.f32 %v764, %v785
        %v804 = vadd.f32 %v765, %v785
        %v805 = vadd.f32 %v766, %v785
        %v806 = vadd.f32 %v767, %v785
        %v807 = vadd.f32 %v768, %v785
        %v808 = vadd.f32 %v769, %v785
        %v809 = vadd.f32 %v770, %v785
        %v810 = vadd.f32 %v771, %v785
        %v811 = vadd.f32 %v772, %v785
        %v812 = vadd.f32 %v773, %v785
        %v813 = vadd.f32 %v774, %v785
        %v814 = vadd.f32 %v775, %v785
        %v815 = vadd.f32 %v776, %v785
        %v816 = vadd.f32 %v777, %v785
        %v817 = vadd.f32 %v778, %v785
        %v818 = vadd.f32 %v779, %v785
        %v819 = vsub.f32 0.0, %v787
        %v820 = vsub.f32 0.0, %v788
        %v821 = vsub.f32 0.0, %v789
        %v822 = vsub.f32 0.0, %v790
        %v823 = vsub.f32 0.0, %v791
        %v824 = vsub.f32 0.0, %v792
        %v825 = vsub.f32 0.0, %v793
        %v826 = vsub.f32 0.0, %v794
        %v827 = vsub.f32 0.0, %v795
        %v828 = vsub.f32 0.0, %v796
        %v829 = vsub.f32 0.0, %v797
        %v830 = vsub.f32 0.0, %v798
        %v831 = vsub.f32 0.0, %v799
        %v832 = vsub.f32 0.0, %v800
        %v833 = vsub.f32 0.0, %v801
        %v834 = vsub.f32 0.0, %v802
        %v835 = vsub.f32 0.0, %v803
        %v836 = vsub.f32 0.0, %v804
        %v837 = vsub.f32 0.0, %v805
        %v838 = vsub.f32 0.0, %v806
        %v839 = vsub.f32 0.0, %v807
        %v840 = vsub.f32 0.0, %v808
        %v841 = vsub.f32 0.0, %v809
        %v842 = vsub.f32 0.0, %v810
        %v843 = vsub.f32 0.0, %v811
        %v844 = vsub.f32 0.0, %v812
        %v845 = vsub.f32 0.0, %v813
        %v846 = vsub.f32 0.0, %v814
        %v847 = vsub.f32 0.0, %v815
        %v848 = vsub.f32 0.0, %v816
        %v849 = vsub.f32 0.0, %v817
        %v850 = vsub.f32 0.0, %v818
        %v851 = vmul.f32 %v819, 1.442695
        %v852 = vpow.pop %v851
        %v853 = vmul.f32 %v820, 1.442695
        %v854 = vpow.pop %v853
        %v855 = vmul.f32 %v821, 1.442695
        %v856 = vpow.pop %v855
        %v857 = vmul.f32 %v822, 1.442695
        %v858 = vpow.pop %v857
        %v859 = vmul.f32 %v823, 1.442695
        %v860 = vpow.pop %v859
        %v861 = vmul.f32 %v824, 1.442695
        %v862 = vpow.pop %v861
        %v863 = vmul.f32 %v825, 1.442695
        %v864 = vpow.pop %v863
        %v865 = vmul.f32 %v826, 1.442695
        %v866 = vpow.pop %v865
        %v867 = vmul.f32 %v827, 1.442695
        %v868 = vpow.pop %v867
        %v869 = vmul.f32 %v828, 1.442695
        %v870 = vpow.pop %v869
        %v871 = vmul.f32 %v829, 1.442695
        %v872 = vpow.pop %v871
        %v873 = vmul.f32 %v830, 1.442695
        %v874 = vpow.pop %v873
        %v875 = vmul.f32 %v831, 1.442695
        %v876 = vpow.pop %v875
        %v877 = vmul.f32 %v832, 1.442695
        %v878 = vpow.pop %v877
        %v879 = vmul.f32 %v833, 1.442695
        %v880 = vpow.pop %v879
        %v881 = vmul.f32 %v834, 1.442695
        %v882 = vpow.pop %v881
        %v883 = vmul.f32 %v835, 1.442695
        %v884 = vpow.pop %v883
        %v885 = vmul.f32 %v836, 1.442695
        %v886 = vpow.pop %v885
        %v887 = vmul.f32 %v837, 1.442695
        %v888 = vpow.pop %v887
        %v889 = vmul.f32 %v838, 1.442695
        %v890 = vpow.pop %v889
        %v891 = vmul.f32 %v839, 1.442695
        %v892 = vpow.pop %v891
        %v893 = vmul.f32 %v840, 1.442695
        %v894 = vpow.pop %v893
        %v895 = vmul.f32 %v841, 1.442695
        %v896 = vpow.pop %v895
        %v897 = vmul.f32 %v842, 1.442695
        %v898 = vpow.pop %v897
        %v899 = vmul.f32 %v843, 1.442695
        %v900 = vpow.pop %v899
        %v901 = vmul.f32 %v844, 1.442695
        %v902 = vpow.pop %v901
        %v903 = vmul.f32 %v845, 1.442695
        %v904 = vpow.pop %v903
        %v905 = vmul.f32 %v846, 1.442695
        %v906 = vpow.pop %v905
        %v907 = vmul.f32 %v847, 1.442695
        %v908 = vpow.pop %v907
        %v909 = vmul.f32 %v848, 1.442695
        %v910 = vpow.pop %v909
        %v911 = vmul.f32 %v849, 1.442695
        %v912 = vpow.pop %v911
        %v913 = vmul.f32 %v850, 1.442695
        %v914 = vpow.pop %v913
        %v915 = vadd.f32 %v852, 1.0
        %v916 = vadd.f32 %v854, 1.0
        %v917 = vadd.f32 %v856, 1.0
        %v918 = vadd.f32 %v858, 1.0
        %v919 = vadd.f32 %v860, 1.0
        %v920 = vadd.f32 %v862, 1.0
        %v921 = vadd.f32 %v864, 1.0
        %v922 = vadd.f32 %v866, 1.0
        %v923 = vadd.f32 %v868, 1.0
        %v924 = vadd.f32 %v870, 1.0
        %v925 = vadd.f32 %v872, 1.0
        %v926 = vadd.f32 %v874, 1.0
        %v927 = vadd.f32 %v876, 1.0
        %v928 = vadd.f32 %v878, 1.0
        %v929 = vadd.f32 %v880, 1.0
        %v930 = vadd.f32 %v882, 1.0
        %v931 = vadd.f32 %v884, 1.0
        %v932 = vadd.f32 %v886, 1.0
        %v933 = vadd.f32 %v888, 1.0
        %v934 = vadd.f32 %v890, 1.0
        %v935 = vadd.f32 %v892, 1.0
        %v936 = vadd.f32 %v894, 1.0
        %v937 = vadd.f32 %v896, 1.0
        %v938 = vadd.f32 %v898, 1.0
        %v939 = vadd.f32 %v900, 1.0
        %v940 = vadd.f32 %v902, 1.0
        %v941 = vadd.f32 %v904, 1.0
        %v942 = vadd.f32 %v906, 1.0
        %v943 = vadd.f32 %v908, 1.0
        %v944 = vadd.f32 %v910, 1.0
        %v945 = vadd.f32 %v912, 1.0
        %v946 = vadd.f32 %v914, 1.0
        %v947 = vrcp.pop %v915
        %v948 = vmul.f32 1.0, %v947
        %v949 = vrcp.pop %v916
        %v950 = vmul.f32 1.0, %v949
        %v951 = vrcp.pop %v917
        %v952 = vmul.f32 1.0, %v951
        %v953 = vrcp.pop %v918
        %v954 = vmul.f32 1.0, %v953
        %v955 = vrcp.pop %v919
        %v956 = vmul.f32 1.0, %v955
        %v957 = vrcp.pop %v920
        %v958 = vmul.f32 1.0, %v957
        %v959 = vrcp.pop %v921
        %v960 = vmul.f32 1.0, %v959
        %v961 = vrcp.pop %v922
        %v962 = vmul.f32 1.0, %v961
        %v963 = vrcp.pop %v923
        %v964 = vmul.f32 1.0, %v963
        %v965 = vrcp.pop %v924
        %v966 = vmul.f32 1.0, %v965
        %v967 = vrcp.pop %v925
        %v968 = vmul.f32 1.0, %v967
        %v969 = vrcp.pop %v926
        %v970 = vmul.f32 1.0, %v969
        %v971 = vrcp.pop %v927
        %v972 = vmul.f32 1.0, %v971
        %v973 = vrcp.pop %v928
        %v974 = vmul.f32 1.0, %v973
        %v975 = vrcp.pop %v929
        %v976 = vmul.f32 1.0, %v975
        %v977 = vrcp.pop %v930
        %v978 = vmul.f32 1.0, %v977
        %v979 = vrcp.pop %v931
        %v980 = vmul.f32 1.0, %v979
        %v981 = vrcp.pop %v932
        %v982 = vmul.f32 1.0, %v981
        %v983 = vrcp.pop %v933
        %v984 = vmul.f32 1.0, %v983
        %v985 = vrcp.pop %v934
        %v986 = vmul.f32 1.0, %v985
        %v987 = vrcp.pop %v935
        %v988 = vmul.f32 1.0, %v987
        %v989 = vrcp.pop %v936
        %v990 = vmul.f32 1.0, %v989
        %v991 = vrcp.pop %v937
        %v992 = vmul.f32 1.0, %v991
        %v993 = vrcp.pop %v938
        %v994 = vmul.f32 1.0, %v993
        %v995 = vrcp.pop %v939
        %v996 = vmul.f32 1.0, %v995
        %v997 = vrcp.pop %v940
        %v998 = vmul.f32 1.0, %v997
        %v999 = vrcp.pop %v941
        %v1000 = vmul.f32 1.0, %v999
        %v1001 = vrcp.pop %v942
        %v1002 = vmul.f32 1.0, %v1001
        %v1003 = vrcp.pop %v943
        %v1004 = vmul.f32 1.0, %v1003
        %v1005 = vrcp.pop %v944
        %v1006 = vmul.f32 1.0, %v1005
        %v1007 = vrcp.pop %v945
        %v1008 = vmul.f32 1.0, %v1007
        %v1009 = vrcp.pop %v946
        %v1010 = vmul.f32 1.0, %v1009
        %v1011 = vmul.f32 %v787, %v948
        %v1012 = vmul.f32 %v788, %v950
        %v1013 = vmul.f32 %v789, %v952
        %v1014 = vmul.f32 %v790, %v954
        %v1015 = vmul.f32 %v791, %v956
        %v1016 = vmul.f32 %v792, %v958
        %v1017 = vmul.f32 %v793, %v960
        %v1018 = vmul.f32 %v794, %v962
        %v1019 = vmul.f32 %v795, %v964
        %v1020 = vmul.f32 %v796, %v966
        %v1021 = vmul.f32 %v797, %v968
        %v1022 = vmul.f32 %v798, %v970
        %v1023 = vmul.f32 %v799, %v972
        %v1024 = vmul.f32 %v800, %v974
        %v1025 = vmul.f32 %v801, %v976
        %v1026 = vmul.f32 %v802, %v978
        %v1027 = vmul.f32 %v803, %v980
        %v1028 = vmul.f32 %v804, %v982
        %v1029 = vmul.f32 %v805, %v984
        %v1030 = vmul.f32 %v806, %v986
        %v1031 = vmul.f32 %v807, %v988
        %v1032 = vmul.f32 %v808, %v990
        %v1033 = vmul.f32 %v809, %v992
        %v1034 = vmul.f32 %v810, %v994
        %v1035 = vmul.f32 %v811, %v996
        %v1036 = vmul.f32 %v812, %v998
        %v1037 = vmul.f32 %v813, %v1000
        %v1038 = vmul.f32 %v814, %v1002
        %v1039 = vmul.f32 %v815, %v1004
        %v1040 = vmul.f32 %v816, %v1006
        %v1041 = vmul.f32 %v817, %v1008
        %v1042 = vmul.f32 %v818, %v1010
        %v1043 = vpack.c.bf16 %v1012, %v1011
        %v1044 = vpack.c.bf16 %v1014, %v1013
        %v1045 = vpack.c.bf16 %v1016, %v1015
        %v1046 = vpack.c.bf16 %v1018, %v1017
        %v1047 = vpack.c.bf16 %v1020, %v1019
        %v1048 = vpack.c.bf16 %v1022, %v1021
        %v1049 = vpack.c.bf16 %v1024, %v1023
        %v1050 = vpack.c.bf16 %v1026, %v1025
        %v1051 = vpack.c.bf16 %v1028, %v1027
        %v1052 = vpack.c.bf16 %v1030, %v1029
        %v1053 = vpack.c.bf16 %v1032, %v1031
        %v1054 = vpack.c.bf16 %v1034, %v1033
        %v1055 = vpack.c.bf16 %v1036, %v1035
        %v1056 = vpack.c.bf16 %v1038, %v1037
        %v1057 = vpack.c.bf16 %v1040, %v1039
        %v1058 = vpack.c.bf16 %v1042, %v1041
        %v1075 = vunpack.c.l.b16 %v1043
        %v1076 = vunpack.c.h.b16 %v1043
        %v1077 = vunpack.c.l.b16 %v1044
        %v1078 = vunpack.c.h.b16 %v1044
        %v1079 = vunpack.c.l.b16 %v1045
        %v1080 = vunpack.c.h.b16 %v1045
        %v1081 = vunpack.c.l.b16 %v1046
        %v1082 = vunpack.c.h.b16 %v1046
        %v1083 = vunpack.c.l.b16 %v1047
        %v1084 = vunpack.c.h.b16 %v1047
        %v1085 = vunpack.c.l.b16 %v1048
        %v1086 = vunpack.c.h.b16 %v1048
        %v1087 = vunpack.c.l.b16 %v1049
        %v1088 = vunpack.c.h.b16 %v1049
        %v1089 = vunpack.c.l.b16 %v1050
        %v1090 = vunpack.c.h.b16 %v1050
        %v1091 = vunpack.c.l.b16 %v1051
        %v1092 = vunpack.c.h.b16 %v1051
        %v1093 = vunpack.c.l.b16 %v1052
        %v1094 = vunpack.c.h.b16 %v1052
        %v1095 = vunpack.c.l.b16 %v1053
        %v1096 = vunpack.c.h.b16 %v1053
        %v1097 = vunpack.c.l.b16 %v1054
        %v1098 = vunpack.c.h.b16 %v1054
        %v1099 = vunpack.c.l.b16 %v1055
        %v1100 = vunpack.c.h.b16 %v1055
        %v1101 = vunpack.c.l.b16 %v1056
        %v1102 = vunpack.c.h.b16 %v1056
        %v1103 = vunpack.c.l.b16 %v1057
        %v1104 = vunpack.c.h.b16 %v1057
        %v1105 = vunpack.c.l.b16 %v1058
        %v1106 = vunpack.c.h.b16 %v1058
        %v1107 = vpack.c.b16 %v1075, %v1075
        %v1108 = vpack.c.b16 %v1076, %v1076
        %v1109 = vpack.c.b16 %v1077, %v1077
        %v1110 = vpack.c.b16 %v1078, %v1078
        %v1111 = vpack.c.b16 %v1079, %v1079
        %v1112 = vpack.c.b16 %v1080, %v1080
        %v1113 = vpack.c.b16 %v1081, %v1081
        %v1114 = vpack.c.b16 %v1082, %v1082
        %v1115 = vpack.c.b16 %v1083, %v1083
        %v1116 = vpack.c.b16 %v1084, %v1084
        %v1117 = vpack.c.b16 %v1085, %v1085
        %v1118 = vpack.c.b16 %v1086, %v1086
        %v1119 = vpack.c.b16 %v1087, %v1087
        %v1120 = vpack.c.b16 %v1088, %v1088
        %v1121 = vpack.c.b16 %v1089, %v1089
        %v1122 = vpack.c.b16 %v1090, %v1090
        %v1123 = vpack.c.b16 %v1091, %v1091
        %v1124 = vpack.c.b16 %v1092, %v1092
        %v1125 = vpack.c.b16 %v1093, %v1093
        %v1126 = vpack.c.b16 %v1094, %v1094
        %v1127 = vpack.c.b16 %v1095, %v1095
        %v1128 = vpack.c.b16 %v1096, %v1096
        %v1129 = vpack.c.b16 %v1097, %v1097
        %v1130 = vpack.c.b16 %v1098, %v1098
        %v1131 = vpack.c.b16 %v1099, %v1099
        %v1132 = vpack.c.b16 %v1100, %v1100
        %v1133 = vpack.c.b16 %v1101, %v1101
        %v1134 = vpack.c.b16 %v1102, %v1102
        %v1135 = vpack.c.b16 %v1103, %v1103
        %v1136 = vpack.c.b16 %v1104, %v1104
        %v1137 = vpack.c.b16 %v1105, %v1105
        %v1138 = vpack.c.b16 %v1106, %v1106
        %1171 = vst [vmem:[%s257] sm:$0xf] %v1107
        %1172 = vst [vmem:[%s257 + $0x4] sm:$0xf] %v1108
        %1173 = vst [vmem:[%s257 + $0x8] sm:$0xf] %v1109
        %1174 = vst [vmem:[%s257 + $0xc] sm:$0xf] %v1110
        %1175 = vst [vmem:[%s257 + $0x10] sm:$0xf] %v1111
        %1176 = vst [vmem:[%s257 + $0x14] sm:$0xf] %v1112
        %1177 = vst [vmem:[%s257 + $0x18] sm:$0xf] %v1113
        %1178 = vst [vmem:[%s257 + $0x1c] sm:$0xf] %v1114
        %1179 = vst [vmem:[%s257 + $0x20] sm:$0xf] %v1115
        %1180 = vst [vmem:[%s257 + $0x24] sm:$0xf] %v1116
        %1181 = vst [vmem:[%s257 + $0x28] sm:$0xf] %v1117
        %1182 = vst [vmem:[%s257 + $0x2c] sm:$0xf] %v1118
        %1183 = vst [vmem:[%s257 + $0x30] sm:$0xf] %v1119
        %1184 = vst [vmem:[%s257 + $0x34] sm:$0xf] %v1120
        %1185 = vst [vmem:[%s257 + $0x38] sm:$0xf] %v1121
        %1186 = vst [vmem:[%s257 + $0x3c] sm:$0xf] %v1122
        %1187 = vst [vmem:[%s257 + $0x40] sm:$0xf] %v1123
        %1188 = vst [vmem:[%s257 + $0x44] sm:$0xf] %v1124
        %1189 = vst [vmem:[%s257 + $0x48] sm:$0xf] %v1125
        %1190 = vst [vmem:[%s257 + $0x4c] sm:$0xf] %v1126
        %1191 = vst [vmem:[%s257 + $0x50] sm:$0xf] %v1127
        %1192 = vst [vmem:[%s257 + $0x54] sm:$0xf] %v1128
        %1193 = vst [vmem:[%s257 + $0x58] sm:$0xf] %v1129
        %1194 = vst [vmem:[%s257 + $0x5c] sm:$0xf] %v1130
        %1195 = vst [vmem:[%s257 + $0x60] sm:$0xf] %v1131
        %1196 = vst [vmem:[%s257 + $0x64] sm:$0xf] %v1132
        %1197 = vst [vmem:[%s257 + $0x68] sm:$0xf] %v1133
        %1198 = vst [vmem:[%s257 + $0x6c] sm:$0xf] %v1134
        %1199 = vst [vmem:[%s257 + $0x70] sm:$0xf] %v1135
        %1200 = vst [vmem:[%s257 + $0x74] sm:$0xf] %v1136
        %1201 = vst [vmem:[%s257 + $0x78] sm:$0xf] %v1137
        %1202 = vst [vmem:[%s257 + $0x7c] sm:$0xf] %v1138
      $region40: #{dcnn_forward.5} parent=31 // pred_fallthru
        _
      %s1203 = smul.u32 32, %s19
      %p1204 = scmp.lt.s32.totalorder %s1203, 63
      %s1205 = scalar_select %p1204, %s1203, 63
      %p1206 = scmp.lt.s32.totalorder %s20, 0
      %s1207 = scalar_select %p1206, %s20, 0
      %s1208 = sadd.s32 %s1207, %s1205
      %s1209 = smul.addr %s1208, 4
      %s1210 = scalar_lea.vmem %s3, %s1209
      // Predicated region
      $region41: #{dcnn_forward.5} parent=31 // pred_check
        %p1211 = pneg %p135
      $region42: #{dcnn_forward.5} parent=31 // pred_check_branch
        %1213 = sbr.rel (%p1211) target = $region44
      $region43: #{dcnn_forward.5} parent=31 // pred_region
        %s1214 = smul.u32 32, %s19
      $region44: #{dcnn_forward.5} parent=31 // pred_fallthru
        _
    $region32: #{dcnn_forward.5} parent=5 // pred_fallthru
      _
    %p1215 = scmp.le.s32.totalorder 2, %s9
    // Predicated region
    $region45: #{dcnn_forward.5} parent=5 // pred_check
      %p1216 = pneg %p1215
    $region46: #{dcnn_forward.5} parent=5 // pred_check_branch
      %1218 = sbr.rel (%p1216) target = $region48
    $region47: #{dcnn_forward.5} parent=5 // pred_region
      %s1219 = ssub.s32 %s9, 2
      // Predicated region
      $region49: #{dcnn_forward.5} parent=47 // pred_check
        %p1220 = pneg %p141
      $region50: #{dcnn_forward.5} parent=47 // pred_check_branch
        %1222 = sbr.rel (%p1220) target = $region52
      $region51: #{dcnn_forward.5} parent=47 // pred_region
        %s1223 = smul.u32 32, %s22
        %p1224 = scmp.lt.s32.totalorder %s1223, 63
        %s1225 = scalar_select %p1224, %s1223, 63
        %p1226 = scmp.lt.s32.totalorder %s23, 0
        %s1227 = scalar_select %p1226, %s23, 0
        %s1228 = sadd.s32 %s1227, %s1225
        %s1229 = smul.addr %s1228, 4
        %s1230 = scalar_lea.vmem %s3, %s1229
      $region52: #{dcnn_forward.5} parent=47 // pred_fallthru
        _
    $region48: #{dcnn_forward.5} parent=5 // pred_fallthru
      _
  $region6: #{dcnn_forward.5} parent=0 // loop_footer
    %s13 = sadd.s32 1, %s9
  $region7: #{dcnn_forward.5} parent=0 // loop_footer_branch
    %8 = sbr.rel target = $region3
  $region8: #{dcnn_forward.5} parent=0 // loop_exit
    _

// kernel: dcnn_forward.6
$region0: #{dcnn_forward.6}
  #allocation0 [shape = 'u32[]', space=smem, size = 0x4, offset = 0x4, fixed_abs, tag = 'smem constant byte address 0x4 - core index']
  #allocation1 [shape = 'u32[144,128]{1,0:T(1,128)}', space=vmem, size = 0x12000, scoped, tag = 'internal scratch']
  #allocation2 [shape = 'f32[128,128]{1,0:T(8,128)}', space=vmem, size = 0x10000, scoped, tag = 'scratch operand']
  %s0 = inlined_call_operand.vmem [shape: bf16[128,256], index: 0, kind: input, shape index: {}]
  %s1 = inlined_call_operand.vmem [shape: bf16[256,128], index: 1, kind: input, shape index: {}]
  %s2 = inlined_call_operand.vmem [shape: f32[1,128], index: 2, kind: input, shape index: {}]
  %s3 = inlined_call_operand.vmem [shape: bf16[128,128], index: 3, kind: output, shape index: {}]
  %s4 = sld [smem:[#allocation0]]
  $region30: #{dcnn_forward.6} parent=0
    _
  %s6 = ssub.s32 1, %s4
  %s7 = scalar_select 0, %s6, %s4
  // Predicated region
  $region2: #{dcnn_forward.6} parent=0 // pred_check
    _
  $region3: #{dcnn_forward.6} parent=0 // pred_check_branch
    %9 = sbr.rel (0) target = $region5
  $region4: #{dcnn_forward.6} parent=0 // pred_region
    _
  $region5: #{dcnn_forward.6} parent=0 // pred_fallthru
    _
  // Predicated region
  $region6: #{dcnn_forward.6} parent=0 // pred_check
    _
  $region7: #{dcnn_forward.6} parent=0 // pred_check_branch
    %11 = sbr.rel (0) target = $region9
  $region8: #{dcnn_forward.6} parent=0 // pred_region
    _
  $region9: #{dcnn_forward.6} parent=0 // pred_fallthru
    _
  // Predicated region
  $region10: #{dcnn_forward.6} parent=0 // pred_check
    _
  $region11: #{dcnn_forward.6} parent=0 // pred_check_branch
    %13 = sbr.rel (0) target = $region13
  $region12: #{dcnn_forward.6} parent=0 // pred_region
    _
  $region13: #{dcnn_forward.6} parent=0 // pred_fallthru
    _
  %p15 = scmp.eq.s32.totalorder 0, 0
  // Predicated region
  $region14: #{dcnn_forward.6} parent=0 // pred_check
    %p16 = pneg %p15
  $region15: #{dcnn_forward.6} parent=0 // pred_check_branch
    %18 = sbr.rel (%p16) target = $region17
  $region16: #{dcnn_forward.6} parent=0 // pred_region
    %19 = vst [vmem:[#allocation2] sm:$0xff] 0.0
    %20 = vst [vmem:[#allocation2 + $0x8] sm:$0xff] 0.0
    %21 = vst [vmem:[#allocation2 + $0x10] sm:$0xff] 0.0
    %22 = vst [vmem:[#allocation2 + $0x18] sm:$0xff] 0.0
    %23 = vst [vmem:[#allocation2 + $0x20] sm:$0xff] 0.0
    %24 = vst [vmem:[#allocation2 + $0x28] sm:$0xff] 0.0
    %25 = vst [vmem:[#allocation2 + $0x30] sm:$0xff] 0.0
    %26 = vst [vmem:[#allocation2 + $0x38] sm:$0xff] 0.0
    %27 = vst [vmem:[#allocation2 + $0x40] sm:$0xff] 0.0
    %28 = vst [vmem:[#allocation2 + $0x48] sm:$0xff] 0.0
    %29 = vst [vmem:[#allocation2 + $0x50] sm:$0xff] 0.0
    %30 = vst [vmem:[#allocation2 + $0x58] sm:$0xff] 0.0
    %31 = vst [vmem:[#allocation2 + $0x60] sm:$0xff] 0.0
    %32 = vst [vmem:[#allocation2 + $0x68] sm:$0xff] 0.0
    %33 = vst [vmem:[#allocation2 + $0x70] sm:$0xff] 0.0
    %34 = vst [vmem:[#allocation2 + $0x78] sm:$0xff] 0.0
  $region17: #{dcnn_forward.6} parent=0 // pred_fallthru
    _
  %v35 = vld [vmem:[#allocation2] sm:$0xff]
  %v36 = vld [vmem:[#allocation2 + $0x8] sm:$0xff]
  %v37 = vld [vmem:[#allocation2 + $0x10] sm:$0xff]
  %v38 = vld [vmem:[#allocation2 + $0x18] sm:$0xff]
  %v39 = vld [vmem:[#allocation2 + $0x20] sm:$0xff]
  %v40 = vld [vmem:[#allocation2 + $0x28] sm:$0xff]
  %v41 = vld [vmem:[#allocation2 + $0x30] sm:$0xff]
  %v42 = vld [vmem:[#allocation2 + $0x38] sm:$0xff]
  %v43 = vld [vmem:[#allocation2 + $0x40] sm:$0xff]
  %v44 = vld [vmem:[#allocation2 + $0x48] sm:$0xff]
  %v45 = vld [vmem:[#allocation2 + $0x50] sm:$0xff]
  %v46 = vld [vmem:[#allocation2 + $0x58] sm:$0xff]
  %v47 = vld [vmem:[#allocation2 + $0x60] sm:$0xff]
  %v48 = vld [vmem:[#allocation2 + $0x68] sm:$0xff]
  %v49 = vld [vmem:[#allocation2 + $0x70] sm:$0xff]
  %v50 = vld [vmem:[#allocation2 + $0x78] sm:$0xff]
  %v51 = vld [vmem:[%s0] sm:$0xff]
  %v52 = vld [vmem:[%s0 + $0x8] sm:$0xff]
  %v53 = vld [vmem:[%s0 + $0x10] sm:$0xff]
  %v54 = vld [vmem:[%s0 + $0x18] sm:$0xff]
  %v55 = vld [vmem:[%s0 + $0x20] sm:$0xff]
  %v56 = vld [vmem:[%s0 + $0x28] sm:$0xff]
  %v57 = vld [vmem:[%s0 + $0x30] sm:$0xff]
  %v58 = vld [vmem:[%s0 + $0x38] sm:$0xff]
  %v59 = vld [vmem:[%s0 + $0x40] sm:$0xff]
  %v60 = vld [vmem:[%s0 + $0x48] sm:$0xff]
  %v61 = vld [vmem:[%s0 + $0x50] sm:$0xff]
  %v62 = vld [vmem:[%s0 + $0x58] sm:$0xff]
  %v63 = vld [vmem:[%s0 + $0x60] sm:$0xff]
  %v64 = vld [vmem:[%s0 + $0x68] sm:$0xff]
  %v65 = vld [vmem:[%s0 + $0x70] sm:$0xff]
  %v66 = vld [vmem:[%s0 + $0x78] sm:$0xff]
  %v67 = vld [vmem:[%s1] sm:$0xf]
  %v68 = vld [vmem:[%s1 + $0x4] sm:$0xf]
  %v69 = vld [vmem:[%s1 + $0x8] sm:$0xf]
  %v70 = vld [vmem:[%s1 + $0xc] sm:$0xf]
  %v71 = vld [vmem:[%s1 + $0x10] sm:$0xf]
  %v72 = vld [vmem:[%s1 + $0x14] sm:$0xf]
  %v73 = vld [vmem:[%s1 + $0x18] sm:$0xf]
  %v74 = vld [vmem:[%s1 + $0x1c] sm:$0xf]
  %v75 = vld [vmem:[%s1 + $0x20] sm:$0xf]
  %v76 = vld [vmem:[%s1 + $0x24] sm:$0xf]
  %v77 = vld [vmem:[%s1 + $0x28] sm:$0xf]
  %v78 = vld [vmem:[%s1 + $0x2c] sm:$0xf]
  %v79 = vld [vmem:[%s1 + $0x30] sm:$0xf]
  %v80 = vld [vmem:[%s1 + $0x34] sm:$0xf]
  %v81 = vld [vmem:[%s1 + $0x38] sm:$0xf]
  %v82 = vld [vmem:[%s1 + $0x3c] sm:$0xf]
  %v83 = vld [vmem:[%s1 + $0x40] sm:$0xf]
  %v84 = vld [vmem:[%s1 + $0x44] sm:$0xf]
  %v85 = vld [vmem:[%s1 + $0x48] sm:$0xf]
  %v86 = vld [vmem:[%s1 + $0x4c] sm:$0xf]
  %v87 = vld [vmem:[%s1 + $0x50] sm:$0xf]
  %v88 = vld [vmem:[%s1 + $0x54] sm:$0xf]
  %v89 = vld [vmem:[%s1 + $0x58] sm:$0xf]
  %v90 = vld [vmem:[%s1 + $0x5c] sm:$0xf]
  %v91 = vld [vmem:[%s1 + $0x60] sm:$0xf]
  %v92 = vld [vmem:[%s1 + $0x64] sm:$0xf]
  %v93 = vld [vmem:[%s1 + $0x68] sm:$0xf]
  %v94 = vld [vmem:[%s1 + $0x6c] sm:$0xf]
  %v95 = vld [vmem:[%s1 + $0x70] sm:$0xf]
  %v96 = vld [vmem:[%s1 + $0x74] sm:$0xf]
  %v97 = vld [vmem:[%s1 + $0x78] sm:$0xf]
  %v98 = vld [vmem:[%s1 + $0x7c] sm:$0xf]
  %v115 = vunpack.c.l.b16 %v51
  %v116 = vunpack.c.h.b16 %v51
  %v117 = vunpack.c.l.b16 %v52
  %v118 = vunpack.c.h.b16 %v52
  %v119 = vunpack.c.l.b16 %v53
  %v120 = vunpack.c.h.b16 %v53
  %v121 = vunpack.c.l.b16 %v54
  %v122 = vunpack.c.h.b16 %v54
  %v123 = vunpack.c.l.b16 %v55
  %v124 = vunpack.c.h.b16 %v55
  %v125 = vunpack.c.l.b16 %v56
  %v126 = vunpack.c.h.b16 %v56
  %v127 = vunpack.c.l.b16 %v57
  %v128 = vunpack.c.h.b16 %v57
  %v129 = vunpack.c.l.b16 %v58
  %v130 = vunpack.c.h.b16 %v58
  %v131 = vunpack.c.l.b16 %v59
  %v132 = vunpack.c.h.b16 %v59
  %v133 = vunpack.c.l.b16 %v60
  %v134 = vunpack.c.h.b16 %v60
  %v135 = vunpack.c.l.b16 %v61
  %v136 = vunpack.c.h.b16 %v61
  %v137 = vunpack.c.l.b16 %v62
  %v138 = vunpack.c.h.b16 %v62
  %v139 = vunpack.c.l.b16 %v63
  %v140 = vunpack.c.h.b16 %v63
  %v141 = vunpack.c.l.b16 %v64
  %v142 = vunpack.c.h.b16 %v64
  %v143 = vunpack.c.l.b16 %v65
  %v144 = vunpack.c.h.b16 %v65
  %v145 = vunpack.c.l.b16 %v66
  %v146 = vunpack.c.h.b16 %v66
  %v147 = vpack.c.b16 %v117, %v115
  %v148 = vpack.c.b16 %v118, %v116
  %v149 = vpack.c.b16 %v121, %v119
  %v150 = vpack.c.b16 %v122, %v120
  %v151 = vpack.c.b16 %v125, %v123
  %v152 = vpack.c.b16 %v126, %v124
  %v153 = vpack.c.b16 %v129, %v127
  %v154 = vpack.c.b16 %v130, %v128
  %v155 = vpack.c.b16 %v133, %v131
  %v156 = vpack.c.b16 %v134, %v132
  %v157 = vpack.c.b16 %v137, %v135
  %v158 = vpack.c.b16 %v138, %v136
  %v159 = vpack.c.b16 %v141, %v139
  %v160 = vpack.c.b16 %v142, %v140
  %v161 = vpack.c.b16 %v145, %v143
  %v162 = vpack.c.b16 %v146, %v144
  %v211 = vunpack.c.l.b16 %v67
  %v212 = vunpack.c.l.b16 %v68
  %v213 = vunpack.c.l.b16 %v69
  %v214 = vunpack.c.l.b16 %v70
  %v215 = vunpack.c.l.b16 %v71
  %v216 = vunpack.c.l.b16 %v72
  %v217 = vunpack.c.l.b16 %v73
  %v218 = vunpack.c.l.b16 %v74
  %v219 = vunpack.c.l.b16 %v75
  %v220 = vunpack.c.l.b16 %v76
  %v221 = vunpack.c.l.b16 %v77
  %v222 = vunpack.c.l.b16 %v78
  %v223 = vunpack.c.l.b16 %v79
  %v224 = vunpack.c.l.b16 %v80
  %v225 = vunpack.c.l.b16 %v81
  %v226 = vunpack.c.l.b16 %v82
  %v227 = vunpack.c.l.b16 %v83
  %v228 = vunpack.c.l.b16 %v84
  %v229 = vunpack.c.l.b16 %v85
  %v230 = vunpack.c.l.b16 %v86
  %v231 = vunpack.c.l.b16 %v87
  %v232 = vunpack.c.l.b16 %v88
  %v233 = vunpack.c.l.b16 %v89
  %v234 = vunpack.c.l.b16 %v90
  %v235 = vunpack.c.l.b16 %v91
  %v236 = vunpack.c.l.b16 %v92
  %v237 = vunpack.c.l.b16 %v93
  %v238 = vunpack.c.l.b16 %v94
  %v239 = vunpack.c.l.b16 %v95
  %v240 = vunpack.c.l.b16 %v96
  %v241 = vunpack.c.l.b16 %v97
  %v242 = vunpack.c.l.b16 %v98
  %v243 = vpack.c.b16 %v212, %v211
  %v244 = vpack.c.b16 %v214, %v213
  %v245 = vpack.c.b16 %v216, %v215
  %v246 = vpack.c.b16 %v218, %v217
  %v247 = vpack.c.b16 %v220, %v219
  %v248 = vpack.c.b16 %v222, %v221
  %v249 = vpack.c.b16 %v224, %v223
  %v250 = vpack.c.b16 %v226, %v225
  %v251 = vpack.c.b16 %v228, %v227
  %v252 = vpack.c.b16 %v230, %v229
  %v253 = vpack.c.b16 %v232, %v231
  %v254 = vpack.c.b16 %v234, %v233
  %v255 = vpack.c.b16 %v236, %v235
  %v256 = vpack.c.b16 %v238, %v237
  %v257 = vpack.c.b16 %v240, %v239
  %v258 = vpack.c.b16 %v242, %v241
  %275 = vmatprep.subr.bf16.mxu0 0
  %276 = vmatpush1.bf16.msra.mxu0 %v243
  %277 = vmatprep.subr.bf16.mxu0 0
  %278 = vmatpush1.bf16.msra.mxu0 %v244
  %279 = vmatprep.subr.bf16.mxu0 0
  %280 = vmatpush1.bf16.msra.mxu0 %v245
  %281 = vmatprep.subr.bf16.mxu0 0
  %282 = vmatpush1.bf16.msra.mxu0 %v246
  %283 = vmatprep.subr.bf16.mxu0 0
  %284 = vmatpush1.bf16.msra.mxu0 %v247
  %285 = vmatprep.subr.bf16.mxu0 0
  %286 = vmatpush1.bf16.msra.mxu0 %v248
  %287 = vmatprep.subr.bf16.mxu0 0
  %288 = vmatpush1.bf16.msra.mxu0 %v249
  %289 = vmatprep.subr.bf16.mxu0 0
  %290 = vmatpush1.bf16.msra.mxu0 %v250
  %291 = vmatprep.subr.bf16.mxu0 0
  %292 = vmatpush1.bf16.msra.mxu0 %v251
  %293 = vmatprep.subr.bf16.mxu0 0
  %294 = vmatpush1.bf16.msra.mxu0 %v252
  %295 = vmatprep.subr.bf16.mxu0 0
  %296 = vmatpush1.bf16.msra.mxu0 %v253
  %297 = vmatprep.subr.bf16.mxu0 0
  %298 = vmatpush1.bf16.msra.mxu0 %v254
  %299 = vmatprep.subr.bf16.mxu0 0
  %300 = vmatpush1.bf16.msra.mxu0 %v255
  %301 = vmatprep.subr.bf16.mxu0 0
  %302 = vmatpush1.bf16.msra.mxu0 %v256
  %303 = vmatprep.subr.bf16.mxu0 0
  %304 = vmatpush1.bf16.msra.mxu0 %v257
  %305 = vmatprep.subr.bf16.mxu0 0
  %306 = vmatpush1.bf16.msra.mxu0 %v258
  %307 = vmatprep.mubr.bf16.mxu0 %v148
  %308 = vmatmul.mubr.bf16.gmra.mrb[0].mxu0 %v147
  %v309 = vpop.f32.mrb[0].mxu0
  %v310 = vadd.f32 0.0, %v309
  %v311 = vpop.f32.mrb[0].mxu0
  %v312 = vpop.f32.mrb[0].mxu0
  %v313 = vadd.f32 0.0, %v312
  %v314 = vpop.f32.mrb[0].mxu0
  %315 = vmatprep.mubr.bf16.mxu0 %v150
  %316 = vmatmul.mubr.bf16.gmra.mrb[0].mxu0 %v149
  %v317 = vpop.f32.mrb[0].mxu0
  %v318 = vadd.f32 0.0, %v317
  %v319 = vpop.f32.mrb[0].mxu0
  %v320 = vpop.f32.mrb[0].mxu0
  %v321 = vadd.f32 0.0, %v320
  %v322 = vpop.f32.mrb[0].mxu0
  %323 = vmatprep.mubr.bf16.mxu0 %v152
  %324 = vmatmul.mubr.bf16.gmra.mrb[0].mxu0 %v151
  %v325 = vpop.f32.mrb[0].mxu0
  %v326 = vadd.f32 0.0, %v325
  %v327 = vpop.f32.mrb[0].mxu0
  %v328 = vpop.f32.mrb[0].mxu0
  %v329 = vadd.f32 0.0, %v328
  %v330 = vpop.f32.mrb[0].mxu0
  %331 = vmatprep.mubr.bf16.mxu0 %v154
  %332 = vmatmul.mubr.bf16.gmra.mrb[0].mxu0 %v153
  %v333 = vpop.f32.mrb[0].mxu0
  %v334 = vadd.f32 0.0, %v333
  %v335 = vpop.f32.mrb[0].mxu0
  %v336 = vpop.f32.mrb[0].mxu0
  %v337 = vadd.f32 0.0, %v336
  %v338 = vpop.f32.mrb[0].mxu0
  %339 = vmatprep.mubr.bf16.mxu0 %v156
  %340 = vmatmul.mubr.bf16.gmra.mrb[0].mxu0 %v155
  %v341 = vpop.f32.mrb[0].mxu0
  %v342 = vadd.f32 0.0, %v341
  %v343 = vpop.f32.mrb[0].mxu0
  %v344 = vpop.f32.mrb[0].mxu0
  %v345 = vadd.f32 0.0, %v344
  %v346 = vpop.f32.mrb[0].mxu0
  %347 = vmatprep.mubr.bf16.mxu0 %v158
  %348 = vmatmul.mubr.bf16.gmra.mrb[0].mxu0 %v157
  %v349 = vpop.f32.mrb[0].mxu0
  %v350 = vadd.f32 0.0, %v349
  %v351 = vpop.f32.mrb[0].mxu0
  %v352 = vpop.f32.mrb[0].mxu0
  %v353 = vadd.f32 0.0, %v352
  %v354 = vpop.f32.mrb[0].mxu0
  %355 = vmatprep.mubr.bf16.mxu0 %v160
  %356 = vmatmul.mubr.bf16.gmra.mrb[0].mxu0 %v159
  %v357 = vpop.f32.mrb[0].mxu0
  %v358 = vadd.f32 0.0, %v357
  %v359 = vpop.f32.mrb[0].mxu0
  %v360 = vpop.f32.mrb[0].mxu0
  %v361 = vadd.f32 0.0, %v360
  %v362 = vpop.f32.mrb[0].mxu0
  %363 = vmatprep.mubr.bf16.mxu0 %v162
  %364 = vmatmul.mubr.bf16.gmra.mrb[0].mxu0 %v161
  %v365 = vpop.f32.mrb[0].mxu0
  %v366 = vadd.f32 0.0, %v365
  %v367 = vpop.f32.mrb[0].mxu0
  %v368 = vpop.f32.mrb[0].mxu0
  %v369 = vadd.f32 0.0, %v368
  %v370 = vpop.f32.mrb[0].mxu0
  %371 = vdwg.mxu0
  %v372 = vadd.f32 %v35, %v310
  %v373 = vadd.f32 %v36, %v313
  %v374 = vadd.f32 %v37, %v318
  %v375 = vadd.f32 %v38, %v321
  %v376 = vadd.f32 %v39, %v326
  %v377 = vadd.f32 %v40, %v329
  %v378 = vadd.f32 %v41, %v334
  %v379 = vadd.f32 %v42, %v337
  %v380 = vadd.f32 %v43, %v342
  %v381 = vadd.f32 %v44, %v345
  %v382 = vadd.f32 %v45, %v350
  %v383 = vadd.f32 %v46, %v353
  %v384 = vadd.f32 %v47, %v358
  %v385 = vadd.f32 %v48, %v361
  %v386 = vadd.f32 %v49, %v366
  %v387 = vadd.f32 %v50, %v369
  %388 = vst [vmem:[#allocation2] sm:$0xff] %v372
  %389 = vst [vmem:[#allocation2 + $0x8] sm:$0xff] %v373
  %390 = vst [vmem:[#allocation2 + $0x10] sm:$0xff] %v374
  %391 = vst [vmem:[#allocation2 + $0x18] sm:$0xff] %v375
  %392 = vst [vmem:[#allocation2 + $0x20] sm:$0xff] %v376
  %393 = vst [vmem:[#allocation2 + $0x28] sm:$0xff] %v377
  %394 = vst [vmem:[#allocation2 + $0x30] sm:$0xff] %v378
  %395 = vst [vmem:[#allocation2 + $0x38] sm:$0xff] %v379
  %396 = vst [vmem:[#allocation2 + $0x40] sm:$0xff] %v380
  %397 = vst [vmem:[#allocation2 + $0x48] sm:$0xff] %v381
  %398 = vst [vmem:[#allocation2 + $0x50] sm:$0xff] %v382
  %399 = vst [vmem:[#allocation2 + $0x58] sm:$0xff] %v383
  %400 = vst [vmem:[#allocation2 + $0x60] sm:$0xff] %v384
  %401 = vst [vmem:[#allocation2 + $0x68] sm:$0xff] %v385
  %402 = vst [vmem:[#allocation2 + $0x70] sm:$0xff] %v386
  %403 = vst [vmem:[#allocation2 + $0x78] sm:$0xff] %v387
  // Predicated region
  $region18: #{dcnn_forward.6} parent=0 // pred_check
    %p404 = pneg %p15
  $region19: #{dcnn_forward.6} parent=0 // pred_check_branch
    %406 = sbr.rel (%p404) target = $region21
  $region20: #{dcnn_forward.6} parent=0 // pred_region
    %v407 = vld [vmem:[#allocation2] sm:$0xff]
    %v408 = vld [vmem:[#allocation2 + $0x8] sm:$0xff]
    %v409 = vld [vmem:[#allocation2 + $0x10] sm:$0xff]
    %v410 = vld [vmem:[#allocation2 + $0x18] sm:$0xff]
    %v411 = vld [vmem:[#allocation2 + $0x20] sm:$0xff]
    %v412 = vld [vmem:[#allocation2 + $0x28] sm:$0xff]
    %v413 = vld [vmem:[#allocation2 + $0x30] sm:$0xff]
    %v414 = vld [vmem:[#allocation2 + $0x38] sm:$0xff]
    %v415 = vld [vmem:[#allocation2 + $0x40] sm:$0xff]
    %v416 = vld [vmem:[#allocation2 + $0x48] sm:$0xff]
    %v417 = vld [vmem:[#allocation2 + $0x50] sm:$0xff]
    %v418 = vld [vmem:[#allocation2 + $0x58] sm:$0xff]
    %v419 = vld [vmem:[#allocation2 + $0x60] sm:$0xff]
    %v420 = vld [vmem:[#allocation2 + $0x68] sm:$0xff]
    %v421 = vld [vmem:[#allocation2 + $0x70] sm:$0xff]
    %v422 = vld [vmem:[#allocation2 + $0x78] sm:$0xff]
    %v423 = vld [vmem:[%s2] sm:$0x1]
    %v425 = vlaneseq
    %v426 = vshrl.u32 %v425, 7
    %v427 = vsub.s32 0, %v426
    %v428 = vrot.slane %v423, %v427
    %v430 = vadd.f32 %v407, %v428
    %v431 = vadd.f32 %v408, %v428
    %v432 = vadd.f32 %v409, %v428
    %v433 = vadd.f32 %v410, %v428
    %v434 = vadd.f32 %v411, %v428
    %v435 = vadd.f32 %v412, %v428
    %v436 = vadd.f32 %v413, %v428
    %v437 = vadd.f32 %v414, %v428
    %v438 = vadd.f32 %v415, %v428
    %v439 = vadd.f32 %v416, %v428
    %v440 = vadd.f32 %v417, %v428
    %v441 = vadd.f32 %v418, %v428
    %v442 = vadd.f32 %v419, %v428
    %v443 = vadd.f32 %v420, %v428
    %v444 = vadd.f32 %v421, %v428
    %v445 = vadd.f32 %v422, %v428
    %v446 = vsub.f32 0.0, %v430
    %v447 = vsub.f32 0.0, %v431
    %v448 = vsub.f32 0.0, %v432
    %v449 = vsub.f32 0.0, %v433
    %v450 = vsub.f32 0.0, %v434
    %v451 = vsub.f32 0.0, %v435
    %v452 = vsub.f32 0.0, %v436
    %v453 = vsub.f32 0.0, %v437
    %v454 = vsub.f32 0.0, %v438
    %v455 = vsub.f32 0.0, %v439
    %v456 = vsub.f32 0.0, %v440
    %v457 = vsub.f32 0.0, %v441
    %v458 = vsub.f32 0.0, %v442
    %v459 = vsub.f32 0.0, %v443
    %v460 = vsub.f32 0.0, %v444
    %v461 = vsub.f32 0.0, %v445
    %v462 = vmul.f32 %v446, 1.442695
    %v463 = vpow.pop %v462
    %v464 = vmul.f32 %v447, 1.442695
    %v465 = vpow.pop %v464
    %v466 = vmul.f32 %v448, 1.442695
    %v467 = vpow.pop %v466
    %v468 = vmul.f32 %v449, 1.442695
    %v469 = vpow.pop %v468
    %v470 = vmul.f32 %v450, 1.442695
    %v471 = vpow.pop %v470
    %v472 = vmul.f32 %v451, 1.442695
    %v473 = vpow.pop %v472
    %v474 = vmul.f32 %v452, 1.442695
    %v475 = vpow.pop %v474
    %v476 = vmul.f32 %v453, 1.442695
    %v477 = vpow.pop %v476
    %v478 = vmul.f32 %v454, 1.442695
    %v479 = vpow.pop %v478
    %v480 = vmul.f32 %v455, 1.442695
    %v481 = vpow.pop %v480
    %v482 = vmul.f32 %v456, 1.442695
    %v483 = vpow.pop %v482
    %v484 = vmul.f32 %v457, 1.442695
    %v485 = vpow.pop %v484
    %v486 = vmul.f32 %v458, 1.442695
    %v487 = vpow.pop %v486
    %v488 = vmul.f32 %v459, 1.442695
    %v489 = vpow.pop %v488
    %v490 = vmul.f32 %v460, 1.442695
    %v491 = vpow.pop %v490
    %v492 = vmul.f32 %v461, 1.442695
    %v493 = vpow.pop %v492
    %v494 = vadd.f32 %v463, 1.0
    %v495 = vadd.f32 %v465, 1.0
    %v496 = vadd.f32 %v467, 1.0
    %v497 = vadd.f32 %v469, 1.0
    %v498 = vadd.f32 %v471, 1.0
    %v499 = vadd.f32 %v473, 1.0
    %v500 = vadd.f32 %v475, 1.0
    %v501 = vadd.f32 %v477, 1.0
    %v502 = vadd.f32 %v479, 1.0
    %v503 = vadd.f32 %v481, 1.0
    %v504 = vadd.f32 %v483, 1.0
    %v505 = vadd.f32 %v485, 1.0
    %v506 = vadd.f32 %v487, 1.0
    %v507 = vadd.f32 %v489, 1.0
    %v508 = vadd.f32 %v491, 1.0
    %v509 = vadd.f32 %v493, 1.0
    %v510 = vrcp.pop %v494
    %v511 = vmul.f32 1.0, %v510
    %v512 = vrcp.pop %v495
    %v513 = vmul.f32 1.0, %v512
    %v514 = vrcp.pop %v496
    %v515 = vmul.f32 1.0, %v514
    %v516 = vrcp.pop %v497
    %v517 = vmul.f32 1.0, %v516
    %v518 = vrcp.pop %v498
    %v519 = vmul.f32 1.0, %v518
    %v520 = vrcp.pop %v499
    %v521 = vmul.f32 1.0, %v520
    %v522 = vrcp.pop %v500
    %v523 = vmul.f32 1.0, %v522
    %v524 = vrcp.pop %v501
    %v525 = vmul.f32 1.0, %v524
    %v526 = vrcp.pop %v502
    %v527 = vmul.f32 1.0, %v526
    %v528 = vrcp.pop %v503
    %v529 = vmul.f32 1.0, %v528
    %v530 = vrcp.pop %v504
    %v531 = vmul.f32 1.0, %v530
    %v532 = vrcp.pop %v505
    %v533 = vmul.f32 1.0, %v532
    %v534 = vrcp.pop %v506
    %v535 = vmul.f32 1.0, %v534
    %v536 = vrcp.pop %v507
    %v537 = vmul.f32 1.0, %v536
    %v538 = vrcp.pop %v508
    %v539 = vmul.f32 1.0, %v538
    %v540 = vrcp.pop %v509
    %v541 = vmul.f32 1.0, %v540
    %v542 = vmul.f32 %v430, %v511
    %v543 = vmul.f32 %v431, %v513
    %v544 = vmul.f32 %v432, %v515
    %v545 = vmul.f32 %v433, %v517
    %v546 = vmul.f32 %v434, %v519
    %v547 = vmul.f32 %v435, %v521
    %v548 = vmul.f32 %v436, %v523
    %v549 = vmul.f32 %v437, %v525
    %v550 = vmul.f32 %v438, %v527
    %v551 = vmul.f32 %v439, %v529
    %v552 = vmul.f32 %v440, %v531
    %v553 = vmul.f32 %v441, %v533
    %v554 = vmul.f32 %v442, %v535
    %v555 = vmul.f32 %v443, %v537
    %v556 = vmul.f32 %v444, %v539
    %v557 = vmul.f32 %v445, %v541
    %v558 = vpack.c.bf16 %v543, %v542
    %v559 = vpack.c.bf16 %v545, %v544
    %v560 = vpack.c.bf16 %v547, %v546
    %v561 = vpack.c.bf16 %v549, %v548
    %v562 = vpack.c.bf16 %v551, %v550
    %v563 = vpack.c.bf16 %v553, %v552
    %v564 = vpack.c.bf16 %v555, %v554
    %v565 = vpack.c.bf16 %v557, %v556
    %v574 = vunpack.c.l.b16 %v558
    %v575 = vunpack.c.h.b16 %v558
    %v576 = vunpack.c.l.b16 %v559
    %v577 = vunpack.c.h.b16 %v559
    %v578 = vunpack.c.l.b16 %v560
    %v579 = vunpack.c.h.b16 %v560
    %v580 = vunpack.c.l.b16 %v561
    %v581 = vunpack.c.h.b16 %v561
    %v582 = vunpack.c.l.b16 %v562
    %v583 = vunpack.c.h.b16 %v562
    %v584 = vunpack.c.l.b16 %v563
    %v585 = vunpack.c.h.b16 %v563
    %v586 = vunpack.c.l.b16 %v564
    %v587 = vunpack.c.h.b16 %v564
    %v588 = vunpack.c.l.b16 %v565
    %v589 = vunpack.c.h.b16 %v565
    %v590 = vpack.c.b16 %v574, %v574
    %v591 = vpack.c.b16 %v575, %v575
    %v592 = vpack.c.b16 %v576, %v576
    %v593 = vpack.c.b16 %v577, %v577
    %v594 = vpack.c.b16 %v578, %v578
    %v595 = vpack.c.b16 %v579, %v579
    %v596 = vpack.c.b16 %v580, %v580
    %v597 = vpack.c.b16 %v581, %v581
    %v598 = vpack.c.b16 %v582, %v582
    %v599 = vpack.c.b16 %v583, %v583
    %v600 = vpack.c.b16 %v584, %v584
    %v601 = vpack.c.b16 %v585, %v585
    %v602 = vpack.c.b16 %v586, %v586
    %v603 = vpack.c.b16 %v587, %v587
    %v604 = vpack.c.b16 %v588, %v588
    %v605 = vpack.c.b16 %v589, %v589
    %622 = vst [vmem:[%s3] sm:$0xf] %v590
    %623 = vst [vmem:[%s3 + $0x4] sm:$0xf] %v591
    %624 = vst [vmem:[%s3 + $0x8] sm:$0xf] %v592
    %625 = vst [vmem:[%s3 + $0xc] sm:$0xf] %v593
    %626 = vst [vmem:[%s3 + $0x10] sm:$0xf] %v594
    %627 = vst [vmem:[%s3 + $0x14] sm:$0xf] %v595
    %628 = vst [vmem:[%s3 + $0x18] sm:$0xf] %v596
    %629 = vst [vmem:[%s3 + $0x1c] sm:$0xf] %v597
    %630 = vst [vmem:[%s3 + $0x20] sm:$0xf] %v598
    %631 = vst [vmem:[%s3 + $0x24] sm:$0xf] %v599
    %632 = vst [vmem:[%s3 + $0x28] sm:$0xf] %v600
    %633 = vst [vmem:[%s3 + $0x2c] sm:$0xf] %v601
    %634 = vst [vmem:[%s3 + $0x30] sm:$0xf] %v602
    %635 = vst [vmem:[%s3 + $0x34] sm:$0xf] %v603
    %636 = vst [vmem:[%s3 + $0x38] sm:$0xf] %v604
    %637 = vst [vmem:[%s3 + $0x3c] sm:$0xf] %v605
  $region21: #{dcnn_forward.6} parent=0 // pred_fallthru
    _
  // Predicated region
  $region22: #{dcnn_forward.6} parent=0 // pred_check
    _
  $region23: #{dcnn_forward.6} parent=0 // pred_check_branch
    %639 = sbr.rel (0) target = $region25
  $region24: #{dcnn_forward.6} parent=0 // pred_region
    _
  $region25: #{dcnn_forward.6} parent=0 // pred_fallthru
    _
  // Predicated region
  $region26: #{dcnn_forward.6} parent=0 // pred_check
    _
  $region27: #{dcnn_forward.6} parent=0 // pred_check_branch
    %641 = sbr.rel (0) target = $region29
  $region28: #{dcnn_forward.6} parent=0 // pred_region
    _
  $region29: #{dcnn_forward.6} parent=0 // pred_fallthru
    _

// kernel: dcnn_forward.8
$region0: #{dcnn_forward.8}
  #allocation0 [shape = 'u32[]', space=smem, size = 0x4, offset = 0x4, fixed_abs, tag = 'smem constant byte address 0x4 - core index']
  #allocation1 [shape = 'u32[144,128]{1,0:T(1,128)}', space=vmem, size = 0x12000, scoped, tag = 'internal scratch']
  #allocation2 [shape = 'f32[8,128]{1,0:T(8,128)}', space=vmem, size = 0x1000, scoped, tag = 'scratch operand']
  %s0 = inlined_call_operand.vmem [shape: bf16[8,1280], index: 0, kind: input, shape index: {}]
  %s1 = inlined_call_operand.vmem [shape: bf16[1280,128], index: 1, kind: input, shape index: {}]
  %s2 = inlined_call_operand.vmem [shape: f32[1,128], index: 2, kind: input, shape index: {}]
  %s3 = inlined_call_operand.vmem [shape: f32[8,128], index: 3, kind: output, shape index: {}]
  %s4 = sld [smem:[#allocation0]]
  $region53: #{dcnn_forward.8} parent=0
    _
  %s6 = ssub.s32 1, %s4
  %s7 = scalar_select 0, %s6, %s4
  loop: start=0, step=1, limit=7
  $region2: #{dcnn_forward.8} parent=0 // loop_pre_header
    _
  $region3: #{dcnn_forward.8} parent=0 // loop_header
    %s9 = sphi 0, %s13
    %p10 = scmp.ge.s32.totalorder %s9, 7
    %s16 = sphi 0, %s35
    %s17 = sphi 0, %s31
    %s18 = sphi 0, %s27
    %s19 = sphi 0, %s16
    %s20 = sphi 0, %s17
    %s21 = sphi 0, %s18
    %s22 = sphi 0, %s19
    %s23 = sphi 0, %s20
    %s24 = sphi 0, %s21
    %s40 = sphi 0, %s42
    %s43 = sphi 0, %s40
    %s44 = sphi 0, %s43
    %s60 = sphi 0, %s44
    %s68 = sphi 0, %s70
    %s71 = sphi 0, %s68
    %s72 = sphi 0, %s71
    %s88 = sphi 0, %s72
    %s94 = sphi 0, %s96
    %s97 = sphi 0, %s94
    %s98 = sphi 0, %s97
    %s114 = sphi 0, %s98
    %s122 = sphi 0, %s124
    %s125 = sphi 0, %s122
    %s126 = sphi 0, %s125
    %s142 = sphi 0, %s126
  $region4: #{dcnn_forward.8} parent=0 // loop_header_branch
    %12 = sbr.rel (%p10) target = $region8
  $region5: #{dcnn_forward.8} parent=0 // loop_body
    %s14 = ssub.s32 %s9, 1
    %s15 = ssub.s32 %s9, 2
    %s25 = sadd.s32 1, %s18
    %p26 = scmp.ge.s32.totalorder %s25, 5
    %s27 = scalar_select %p26, 0, %s25
    %s28 = sadd.s32 1, %s17
    %s29 = scalar_select %p26, %s28, %s17
    %p30 = scmp.ge.s32.totalorder %s29, 1
    %s31 = scalar_select %p30, 0, %s29
    %s32 = sadd.s32 1, %s16
    %s33 = scalar_select %p30, %s32, %s16
    %p34 = scmp.ge.s32.totalorder %s33, 1
    %s35 = scalar_select %p34, 0, %s33
    %s36 = ssub.s32 %s16, %s35
    %s37 = ssub.s32 %s18, %s27
    %s38 = sor.u32 %s36, %s37
    %p39 = scmp.eq.s32.totalorder %s38, 0
    %s41 = sadd.s32 %s40, 1
    %s42 = scalar_select %p39, %s40, %s41
    %p45 = pneg %p39
    %p46 = scmp.eq.s32.totalorder %s9, 4
    %p47 = por %p45, %p46
    %p48 = scmp.ne.s32.totalorder %s40, %s43
    %p49 = scmp.eq.s32.totalorder %s9, 0
    %p50 = por %p48, %p49
    %p51 = scmp.ne.s32.totalorder %s40, %s43
    %p52 = scmp.eq.s32.totalorder %s14, 4
    %p53 = por %p51, %p52
    %p54 = scmp.ne.s32.totalorder %s43, %s44
    %p55 = scmp.eq.s32.totalorder %s14, 0
    %p56 = por %p54, %p55
    %p57 = scmp.ne.s32.totalorder %s43, %s44
    %p58 = scmp.eq.s32.totalorder %s15, 4
    %p59 = por %p57, %p58
    %p61 = scmp.ne.s32.totalorder %s44, %s60
    %p62 = scmp.eq.s32.totalorder %s15, 0
    %p63 = por %p61, %p62
    %s64 = ssub.s32 %s18, %s27
    %s65 = ssub.s32 %s17, %s31
    %s66 = sor.u32 %s64, %s65
    %p67 = scmp.eq.s32.totalorder %s66, 0
    %s69 = sadd.s32 %s68, 1
    %s70 = scalar_select %p67, %s68, %s69
    %p73 = pneg %p67
    %p74 = scmp.eq.s32.totalorder %s9, 4
    %p75 = por %p73, %p74
    %p76 = scmp.ne.s32.totalorder %s68, %s71
    %p77 = scmp.eq.s32.totalorder %s9, 0
    %p78 = por %p76, %p77
    %p79 = scmp.ne.s32.totalorder %s68, %s71
    %p80 = scmp.eq.s32.totalorder %s14, 4
    %p81 = por %p79, %p80
    %p82 = scmp.ne.s32.totalorder %s71, %s72
    %p83 = scmp.eq.s32.totalorder %s14, 0
    %p84 = por %p82, %p83
    %p85 = scmp.ne.s32.totalorder %s71, %s72
    %p86 = scmp.eq.s32.totalorder %s15, 4
    %p87 = por %p85, %p86
    %p89 = scmp.ne.s32.totalorder %s72, %s88
    %p90 = scmp.eq.s32.totalorder %s15, 0
    %p91 = por %p89, %p90
    %s92 = ssub.s32 %s17, %s31
    %p93 = scmp.eq.s32.totalorder %s92, 0
    %s95 = sadd.s32 %s94, 1
    %s96 = scalar_select %p93, %s94, %s95
    %p99 = pneg %p93
    %p100 = scmp.eq.s32.totalorder %s9, 4
    %p101 = por %p99, %p100
    %p102 = scmp.ne.s32.totalorder %s94, %s97
    %p103 = scmp.eq.s32.totalorder %s9, 0
    %p104 = por %p102, %p103
    %p105 = scmp.ne.s32.totalorder %s94, %s97
    %p106 = scmp.eq.s32.totalorder %s14, 4
    %p107 = por %p105, %p106
    %p108 = scmp.ne.s32.totalorder %s97, %s98
    %p109 = scmp.eq.s32.totalorder %s14, 0
    %p110 = por %p108, %p109
    %p111 = scmp.ne.s32.totalorder %s97, %s98
    %p112 = scmp.eq.s32.totalorder %s15, 4
    %p113 = por %p111, %p112
    %p115 = scmp.ne.s32.totalorder %s98, %s114
    %p116 = scmp.eq.s32.totalorder %s15, 0
    %p117 = por %p115, %p116
    %s118 = ssub.s32 %s16, %s35
    %s119 = ssub.s32 %s17, %s31
    %s120 = sor.u32 %s118, %s119
    %p121 = scmp.eq.s32.totalorder %s120, 0
    %s123 = sadd.s32 %s122, 1
    %s124 = scalar_select %p121, %s122, %s123
    %p127 = pneg %p121
    %p128 = scmp.eq.s32.totalorder %s9, 4
    %p129 = por %p127, %p128
    %p130 = scmp.ne.s32.totalorder %s122, %s125
    %p131 = scmp.eq.s32.totalorder %s9, 0
    %p132 = por %p130, %p131
    %p133 = scmp.ne.s32.totalorder %s122, %s125
    %p134 = scmp.eq.s32.totalorder %s14, 4
    %p135 = por %p133, %p134
    %p136 = scmp.ne.s32.totalorder %s125, %s126
    %p137 = scmp.eq.s32.totalorder %s14, 0
    %p138 = por %p136, %p137
    %p139 = scmp.ne.s32.totalorder %s125, %s126
    %p140 = scmp.eq.s32.totalorder %s15, 4
    %p141 = por %p139, %p140
    %p143 = scmp.ne.s32.totalorder %s126, %s142
    %p144 = scmp.eq.s32.totalorder %s15, 0
    %p145 = por %p143, %p144
    %p146 = scmp.le.s32.totalorder 1, %s9
    %p147 = scmp.lt.s32.totalorder %s9, 6
    %p148 = pnand %p146, %p147
    %p149 = pneg %p148
    // Predicated region
    $region9: #{dcnn_forward.8} parent=5 // pred_check
      _
    $region10: #{dcnn_forward.8} parent=5 // pred_check_branch
      %151 = sbr.rel (%p148) target = $region12
    $region11: #{dcnn_forward.8} parent=5 // pred_region
      %s152 = ssub.s32 %s9, 1
      // Predicated region
      $region13: #{dcnn_forward.8} parent=11 // pred_check
        %p153 = pneg %p110
      $region14: #{dcnn_forward.8} parent=11 // pred_check_branch
        %155 = sbr.rel (%p153) target = $region16
      $region15: #{dcnn_forward.8} parent=11 // pred_region
        %p156 = scmp.lt.s32.totalorder %s20, 0
        %s157 = scalar_select %p156, %s20, 0
        %s158 = scalar_lea.vmem %s2, %s157
      $region16: #{dcnn_forward.8} parent=11 // pred_fallthru
        _
    $region12: #{dcnn_forward.8} parent=5 // pred_fallthru
      _
    %p159 = scmp.lt.s32.totalorder %s9, 5
    // Predicated region
    $region17: #{dcnn_forward.8} parent=5 // pred_check
      %p160 = pneg %p159
    $region18: #{dcnn_forward.8} parent=5 // pred_check_branch
      %162 = sbr.rel (%p160) target = $region20
    $region19: #{dcnn_forward.8} parent=5 // pred_region
      // Predicated region
      $region21: #{dcnn_forward.8} parent=19 // pred_check
        %p163 = pneg %p50
      $region22: #{dcnn_forward.8} parent=19 // pred_check_branch
        %165 = sbr.rel (%p163) target = $region24
      $region23: #{dcnn_forward.8} parent=19 // pred_region
        %s166 = smul.u32 2, %s18
        %p167 = scmp.lt.s32.totalorder %s16, 0
        %s168 = scalar_select %p167, %s16, 0
        %p169 = scmp.lt.s32.totalorder %s166, 9
        %s170 = scalar_select %p169, %s166, 9
        %s171 = smul.addr %s168, 10
        %s172 = sadd.s32 %s170, %s171
        %s173 = smul.addr %s172, 4
        %s174 = scalar_lea.vmem %s0, %s173
        %s175 = smul.u32 2, %s18
      $region24: #{dcnn_forward.8} parent=19 // pred_fallthru
        _
      // Predicated region
      $region25: #{dcnn_forward.8} parent=19 // pred_check
        %p176 = pneg %p78
      $region26: #{dcnn_forward.8} parent=19 // pred_check_branch
        %178 = sbr.rel (%p176) target = $region28
      $region27: #{dcnn_forward.8} parent=19 // pred_region
        %s179 = smul.u32 32, %s18
        %p180 = scmp.lt.s32.totalorder %s179, 159
        %s181 = scalar_select %p180, %s179, 159
        %p182 = scmp.lt.s32.totalorder %s17, 0
        %s183 = scalar_select %p182, %s17, 0
        %s184 = sadd.s32 %s183, %s181
        %s185 = smul.addr %s184, 4
        %s186 = scalar_lea.vmem %s1, %s185
        %s187 = smul.u32 32, %s18
      $region28: #{dcnn_forward.8} parent=19 // pred_fallthru
        _
    $region20: #{dcnn_forward.8} parent=5 // pred_fallthru
      _
    %p188 = scmp.le.s32.totalorder 1, %s9
    %p189 = scmp.lt.s32.totalorder %s9, 6
    %p190 = pnand %p188, %p189
    %p191 = pneg %p190
    // Predicated region
    $region29: #{dcnn_forward.8} parent=5 // pred_check
      _
    $region30: #{dcnn_forward.8} parent=5 // pred_check_branch
      %193 = sbr.rel (%p190) target = $region32
    $region31: #{dcnn_forward.8} parent=5 // pred_region
      %s194 = ssub.s32 %s9, 1
      %s195 = smul.u32 2, %s21
      %p196 = scmp.lt.s32.totalorder %s19, 0
      %s197 = scalar_select %p196, %s19, 0
      %p198 = scmp.lt.s32.totalorder %s195, 9
      %s199 = scalar_select %p198, %s195, 9
      %s200 = smul.addr %s197, 10
      %s201 = sadd.s32 %s199, %s200
      %s202 = smul.addr %s201, 4
      %s203 = scalar_lea.vmem %s0, %s202
      %p204 = pneg %p56
      %p205 = pneg %p53
      %s206 = smul.u32 32, %s21
      %p207 = scmp.lt.s32.totalorder %s206, 159
      %s208 = scalar_select %p207, %s206, 159
      %p209 = scmp.lt.s32.totalorder %s20, 0
      %s210 = scalar_select %p209, %s20, 0
      %s211 = sadd.s32 %s210, %s208
      %s212 = smul.addr %s211, 4
      %s213 = scalar_lea.vmem %s1, %s212
      %p214 = pneg %p84
      %p215 = pneg %p81
      %p216 = scmp.lt.s32.totalorder %s20, 0
      %s217 = scalar_select %p216, %s20, 0
      %s218 = scalar_lea.vmem %s2, %s217
      %p219 = pneg %p110
      %p220 = pneg %p107
      %p221 = pneg %p138
      %p222 = pneg %p135
      %p223 = scmp.lt.s32.totalorder %s19, 0
      %s224 = scalar_select %p223, %s19, 0
      %p225 = scmp.lt.s32.totalorder %s20, 0
      %s226 = scalar_select %p225, %s20, 0
      %s227 = sadd.s32 %s226, %s224
      %s228 = smul.addr %s227, 8
      %s229 = scalar_lea.vmem %s3, %s228
      %s230 = smul.u32 2, %s21
      %p231 = scmp.lt.s32.totalorder %s19, 0
      %s232 = scalar_select %p231, %s19, 0
      %p233 = scmp.lt.s32.totalorder %s230, 9
      %s234 = scalar_select %p233, %s230, 9
      %s235 = smul.addr %s232, 10
      %s236 = sadd.s32 %s234, %s235
      %s237 = smul.addr %s236, 4
      %s238 = scalar_lea.vmem %s0, %s237
      %s239 = smul.u32 2, %s21
      %s240 = smul.u32 32, %s21
      %p241 = scmp.lt.s32.totalorder %s240, 159
      %s242 = scalar_select %p241, %s240, 159
      %p243 = scmp.lt.s32.totalorder %s20, 0
      %s244 = scalar_select %p243, %s20, 0
      %s245 = sadd.s32 %s244, %s242
      %s246 = smul.addr %s245, 4
      %s247 = scalar_lea.vmem %s1, %s246
      %s248 = smul.u32 32, %s21
      %p249 = scmp.lt.s32.totalorder %s20, 0
      %s250 = scalar_select %p249, %s20, 0
      %s251 = scalar_lea.vmem %s2, %s250
      %p252 = scmp.lt.s32.totalorder %s19, 0
      %s253 = scalar_select %p252, %s19, 0
      %p254 = scmp.lt.s32.totalorder %s20, 0
      %s255 = scalar_select %p254, %s20, 0
      %s256 = sadd.s32 %s255, %s253
      %s257 = smul.addr %s256, 8
      %s258 = scalar_lea.vmem %s3, %s257
      %p260 = scmp.eq.s32.totalorder %s21, 0
      // Predicated region
      $region33: #{dcnn_forward.8} parent=31 // pred_check
        %p261 = pneg %p260
      $region34: #{dcnn_forward.8} parent=31 // pred_check_branch
        %263 = sbr.rel (%p261) target = $region36
      $region35: #{dcnn_forward.8} parent=31 // pred_region
        %264 = vst [vmem:[#allocation2] sm:$0xff] 0.0
      $region36: #{dcnn_forward.8} parent=31 // pred_fallthru
        _
      %v265 = vld [vmem:[#allocation2] sm:$0xff]
      %v266 = vld [vmem:[%s238] sm:$0xff]
      %v267 = vld [vmem:[%s247] sm:$0xf]
      %v268 = vld [vmem:[%s247 + $0x4] sm:$0xf]
      %v269 = vld [vmem:[%s247 + $0x8] sm:$0xf]
      %v270 = vld [vmem:[%s247 + $0xc] sm:$0xf]
      %v271 = vld [vmem:[%s247 + $0x10] sm:$0xf]
      %v272 = vld [vmem:[%s247 + $0x14] sm:$0xf]
      %v273 = vld [vmem:[%s247 + $0x18] sm:$0xf]
      %v274 = vld [vmem:[%s247 + $0x1c] sm:$0xf]
      %v275 = vld [vmem:[%s247 + $0x20] sm:$0xf]
      %v276 = vld [vmem:[%s247 + $0x24] sm:$0xf]
      %v277 = vld [vmem:[%s247 + $0x28] sm:$0xf]
      %v278 = vld [vmem:[%s247 + $0x2c] sm:$0xf]
      %v279 = vld [vmem:[%s247 + $0x30] sm:$0xf]
      %v280 = vld [vmem:[%s247 + $0x34] sm:$0xf]
      %v281 = vld [vmem:[%s247 + $0x38] sm:$0xf]
      %v282 = vld [vmem:[%s247 + $0x3c] sm:$0xf]
      %v283 = vld [vmem:[%s247 + $0x40] sm:$0xf]
      %v284 = vld [vmem:[%s247 + $0x44] sm:$0xf]
      %v285 = vld [vmem:[%s247 + $0x48] sm:$0xf]
      %v286 = vld [vmem:[%s247 + $0x4c] sm:$0xf]
      %v287 = vld [vmem:[%s247 + $0x50] sm:$0xf]
      %v288 = vld [vmem:[%s247 + $0x54] sm:$0xf]
      %v289 = vld [vmem:[%s247 + $0x58] sm:$0xf]
      %v290 = vld [vmem:[%s247 + $0x5c] sm:$0xf]
      %v291 = vld [vmem:[%s247 + $0x60] sm:$0xf]
      %v292 = vld [vmem:[%s247 + $0x64] sm:$0xf]
      %v293 = vld [vmem:[%s247 + $0x68] sm:$0xf]
      %v294 = vld [vmem:[%s247 + $0x6c] sm:$0xf]
      %v295 = vld [vmem:[%s247 + $0x70] sm:$0xf]
      %v296 = vld [vmem:[%s247 + $0x74] sm:$0xf]
      %v297 = vld [vmem:[%s247 + $0x78] sm:$0xf]
      %v298 = vld [vmem:[%s247 + $0x7c] sm:$0xf]
      %v300 = vunpack.c.l.b16 %v266
      %v301 = vunpack.c.h.b16 %v266
      %v302 = vpack.c.b16 %v300, %v300
      %v303 = vpack.c.b16 %v301, %v301
      %v338 = vunpack.c.l.b16 %v267
      %v339 = vunpack.c.l.b16 %v268
      %v340 = vunpack.c.l.b16 %v269
      %v341 = vunpack.c.l.b16 %v270
      %v342 = vunpack.c.l.b16 %v271
      %v343 = vunpack.c.l.b16 %v272
      %v344 = vunpack.c.l.b16 %v273
      %v345 = vunpack.c.l.b16 %v274
      %v346 = vunpack.c.l.b16 %v275
      %v347 = vunpack.c.l.b16 %v276
      %v348 = vunpack.c.l.b16 %v277
      %v349 = vunpack.c.l.b16 %v278
      %v350 = vunpack.c.l.b16 %v279
      %v351 = vunpack.c.l.b16 %v280
      %v352 = vunpack.c.l.b16 %v281
      %v353 = vunpack.c.l.b16 %v282
      %v354 = vunpack.c.l.b16 %v283
      %v355 = vunpack.c.l.b16 %v284
      %v356 = vunpack.c.l.b16 %v285
      %v357 = vunpack.c.l.b16 %v286
      %v358 = vunpack.c.l.b16 %v287
      %v359 = vunpack.c.l.b16 %v288
      %v360 = vunpack.c.l.b16 %v289
      %v361 = vunpack.c.l.b16 %v290
      %v362 = vunpack.c.l.b16 %v291
      %v363 = vunpack.c.l.b16 %v292
      %v364 = vunpack.c.l.b16 %v293
      %v365 = vunpack.c.l.b16 %v294
      %v366 = vunpack.c.l.b16 %v295
      %v367 = vunpack.c.l.b16 %v296
      %v368 = vunpack.c.l.b16 %v297
      %v369 = vunpack.c.l.b16 %v298
      %v370 = vpack.c.b16 %v339, %v338
      %v371 = vpack.c.b16 %v341, %v340
      %v372 = vpack.c.b16 %v343, %v342
      %v373 = vpack.c.b16 %v345, %v344
      %v374 = vpack.c.b16 %v347, %v346
      %v375 = vpack.c.b16 %v349, %v348
      %v376 = vpack.c.b16 %v351, %v350
      %v377 = vpack.c.b16 %v353, %v352
      %v378 = vpack.c.b16 %v355, %v354
      %v379 = vpack.c.b16 %v357, %v356
      %v380 = vpack.c.b16 %v359, %v358
      %v381 = vpack.c.b16 %v361, %v360
      %v382 = vpack.c.b16 %v363, %v362
      %v383 = vpack.c.b16 %v365, %v364
      %v384 = vpack.c.b16 %v367, %v366
      %v385 = vpack.c.b16 %v369, %v368
      %402 = vmatprep.subr.bf16.mxu0 0
      %403 = vmatpush1.bf16.msra.mxu0 %v370
      %404 = vmatprep.subr.bf16.mxu0 0
      %405 = vmatpush1.bf16.msra.mxu0 %v371
      %406 = vmatprep.subr.bf16.mxu0 0
      %407 = vmatpush1.bf16.msra.mxu0 %v372
      %408 = vmatprep.subr.bf16.mxu0 0
      %409 = vmatpush1.bf16.msra.mxu0 %v373
      %410 = vmatprep.subr.bf16.mxu0 0
      %411 = vmatpush1.bf16.msra.mxu0 %v374
      %412 = vmatprep.subr.bf16.mxu0 0
      %413 = vmatpush1.bf16.msra.mxu0 %v375
      %414 = vmatprep.subr.bf16.mxu0 0
      %415 = vmatpush1.bf16.msra.mxu0 %v376
      %416 = vmatprep.subr.bf16.mxu0 0
      %417 = vmatpush1.bf16.msra.mxu0 %v377
      %418 = vmatprep.subr.bf16.mxu0 0
      %419 = vmatpush1.bf16.msra.mxu0 %v378
      %420 = vmatprep.subr.bf16.mxu0 0
      %421 = vmatpush1.bf16.msra.mxu0 %v379
      %422 = vmatprep.subr.bf16.mxu0 0
      %423 = vmatpush1.bf16.msra.mxu0 %v380
      %424 = vmatprep.subr.bf16.mxu0 0
      %425 = vmatpush1.bf16.msra.mxu0 %v381
      %426 = vmatprep.subr.bf16.mxu0 0
      %427 = vmatpush1.bf16.msra.mxu0 %v382
      %428 = vmatprep.subr.bf16.mxu0 0
      %429 = vmatpush1.bf16.msra.mxu0 %v383
      %430 = vmatprep.subr.bf16.mxu0 0
      %431 = vmatpush1.bf16.msra.mxu0 %v384
      %432 = vmatprep.subr.bf16.mxu0 0
      %433 = vmatpush1.bf16.msra.mxu0 %v385
      %434 = vmatprep.mubr.bf16.mxu0 %v303
      %435 = vmatmul.mubr.bf16.gmra.mrb[0].mxu0 %v302
      %v436 = vpop.f32.mrb[0].mxu0
      %v437 = vadd.f32 0.0, %v436
      %v438 = vpop.f32.mrb[0].mxu0
      %v439 = vpop.f32.mrb[0].mxu0
      %v440 = vpop.f32.mrb[0].mxu0
      %441 = vdwg.mxu0
      %v442 = vadd.f32 %v265, %v437
      %443 = vst [vmem:[#allocation2] sm:$0xff] %v442
      %p444 = scmp.eq.s32.totalorder %s21, 4
      // Predicated region
      $region37: #{dcnn_forward.8} parent=31 // pred_check
        %p445 = pneg %p444
      $region38: #{dcnn_forward.8} parent=31 // pred_check_branch
        %447 = sbr.rel (%p445) target = $region40
      $region39: #{dcnn_forward.8} parent=31 // pred_region
        %v448 = vld [vmem:[#allocation2] sm:$0xff]
        %v449 = vld [vmem:[%s251] sm:$0x1]
        %v451 = vlaneseq
        %v452 = vshrl.u32 %v451, 7
        %v453 = vsub.s32 0, %v452
        %v454 = vrot.slane %v449, %v453
        %v456 = vadd.f32 %v448, %v454
        %457 = vst [vmem:[%s258] sm:$0xff] %v456
      $region40: #{dcnn_forward.8} parent=31 // pred_fallthru
        _
      %p458 = scmp.lt.s32.totalorder %s19, 0
      %s459 = scalar_select %p458, %s19, 0
      %p460 = scmp.lt.s32.totalorder %s20, 0
      %s461 = scalar_select %p460, %s20, 0
      %s462 = sadd.s32 %s461, %s459
      %s463 = smul.addr %s462, 8
      %s464 = scalar_lea.vmem %s3, %s463
      // Predicated region
      $region41: #{dcnn_forward.8} parent=31 // pred_check
        %p465 = pneg %p135
      $region42: #{dcnn_forward.8} parent=31 // pred_check_branch
        %467 = sbr.rel (%p465) target = $region44
      $region43: #{dcnn_forward.8} parent=31 // pred_region
        _
      $region44: #{dcnn_forward.8} parent=31 // pred_fallthru
        _
      // Predicated region
      $region45: #{dcnn_forward.8} parent=31 // pred_check
        %p468 = pneg %p135
      $region46: #{dcnn_forward.8} parent=31 // pred_check_branch
        %470 = sbr.rel (%p468) target = $region48
      $region47: #{dcnn_forward.8} parent=31 // pred_region
        %p471 = scmp.lt.s32.totalorder %s19, 0
        %s472 = scalar_select %p471, %s19, 0
        %p473 = scmp.lt.s32.totalorder %s20, 0
        %s474 = scalar_select %p473, %s20, 0
        %s475 = sadd.s32 %s474, %s472
        %s476 = smul.addr %s475, 8
        %s477 = scalar_lea.vmem %s3, %s476
      $region48: #{dcnn_forward.8} parent=31 // pred_fallthru
        _
    $region32: #{dcnn_forward.8} parent=5 // pred_fallthru
      _
    %p478 = scmp.le.s32.totalorder 2, %s9
    // Predicated region
    $region49: #{dcnn_forward.8} parent=5 // pred_check
      %p479 = pneg %p478
    $region50: #{dcnn_forward.8} parent=5 // pred_check_branch
      %481 = sbr.rel (%p479) target = $region52
    $region51: #{dcnn_forward.8} parent=5 // pred_region
      %s482 = ssub.s32 %s9, 2
    $region52: #{dcnn_forward.8} parent=5 // pred_fallthru
      _
  $region6: #{dcnn_forward.8} parent=0 // loop_footer
    %s13 = sadd.s32 1, %s9
  $region7: #{dcnn_forward.8} parent=0 // loop_footer_branch
    %8 = sbr.rel target = $region3
  $region8: #{dcnn_forward.8} parent=0 // loop_exit
    _

// kernel: dcnn_forward.7
$region0: #{dcnn_forward.7}
  #allocation0 [shape = 'u32[]', space=smem, size = 0x4, offset = 0x4, fixed_abs, tag = 'smem constant byte address 0x4 - core index']
  #allocation1 [shape = 'u32[144,128]{1,0:T(1,128)}', space=vmem, size = 0x12000, scoped, tag = 'internal scratch']
  #allocation2 [shape = 'f32[2,256]{1,0:T(2,128)}', space=vmem, size = 0x800, scoped, tag = 'scratch operand']
  %s0 = inlined_call_operand.vmem [shape: bf16[2,64,64], index: 0, kind: input, shape index: {}]
  %s1 = inlined_call_operand.vmem [shape: bf16[64,1280], index: 1, kind: input, shape index: {}]
  %s2 = inlined_call_operand.vmem [shape: f32[1,1280], index: 2, kind: input, shape index: {}]
  %s3 = inlined_call_operand.vmem [shape: f32[2,1280], index: 3, kind: output, shape index: {}]
  %s4 = sld [smem:[#allocation0]]
  $region91: #{dcnn_forward.7} parent=0
    _
  %s6 = ssub.s32 1, %s4
  %s7 = scalar_select 0, %s6, %s4
  $region1: #{dcnn_forward.7} parent=0
    #allocation3 [shape = 'u8[65536]{0}', space=vmem, size = 0x10000, scoped, tag = 'input window, operand 1']
    loop: start=0, step=1, limit=7
    $region2: #{dcnn_forward.7} parent=1 // loop_pre_header
      _
    $region3: #{dcnn_forward.7} parent=1 // loop_header
      %s9 = sphi 0, %s13
      %p10 = scmp.ge.s32.totalorder %s9, 7
      %s16 = sphi 0, %s28
      %s17 = sphi 0, %s24
      %s18 = sphi 0, %s16
      %s19 = sphi 0, %s17
      %s20 = sphi 0, %s18
      %s21 = sphi 0, %s19
      %s31 = sphi 0, %s33
      %s34 = sphi 0, %s31
      %s35 = sphi 0, %s34
      %s51 = sphi 0, %s35
      %s57 = sphi 0, %s59
      %s60 = sphi 0, %s57
      %s61 = sphi 0, %s60
      %s77 = sphi 0, %s61
      %s83 = sphi 0, %s85
      %s86 = sphi 0, %s83
      %s87 = sphi 0, %s86
      %s103 = sphi 0, %s87
      %s109 = sphi 0, %s111
      %s112 = sphi 0, %s109
      %s113 = sphi 0, %s112
      %s129 = sphi 0, %s113
    $region4: #{dcnn_forward.7} parent=1 // loop_header_branch
      %12 = sbr.rel (%p10) target = $region8
    $region5: #{dcnn_forward.7} parent=1 // loop_body
      %s14 = ssub.s32 %s9, 1
      %s15 = ssub.s32 %s9, 2
      %s22 = sadd.s32 1, %s17
      %p23 = scmp.ge.s32.totalorder %s22, 1
      %s24 = scalar_select %p23, 0, %s22
      %s25 = sadd.s32 1, %s16
      %s26 = scalar_select %p23, %s25, %s16
      %p27 = scmp.ge.s32.totalorder %s26, 5
      %s28 = scalar_select %p27, 0, %s26
      %s29 = ssub.s32 %s17, %s24
      %p30 = scmp.eq.s32.totalorder %s29, 0
      %s32 = sadd.s32 %s31, 1
      %s33 = scalar_select %p30, %s31, %s32
      %p36 = pneg %p30
      %p37 = scmp.eq.s32.totalorder %s9, 4
      %p38 = por %p36, %p37
      %p39 = scmp.ne.s32.totalorder %s31, %s34
      %p40 = scmp.eq.s32.totalorder %s9, 0
      %p41 = por %p39, %p40
      %p42 = scmp.ne.s32.totalorder %s31, %s34
      %p43 = scmp.eq.s32.totalorder %s14, 4
      %p44 = por %p42, %p43
      %p45 = scmp.ne.s32.totalorder %s34, %s35
      %p46 = scmp.eq.s32.totalorder %s14, 0
      %p47 = por %p45, %p46
      %p48 = scmp.ne.s32.totalorder %s34, %s35
      %p49 = scmp.eq.s32.totalorder %s15, 4
      %p50 = por %p48, %p49
      %p52 = scmp.ne.s32.totalorder %s35, %s51
      %p53 = scmp.eq.s32.totalorder %s15, 0
      %p54 = por %p52, %p53
      %s55 = ssub.s32 %s16, %s28
      %p56 = scmp.eq.s32.totalorder %s55, 0
      %s58 = sadd.s32 %s57, 1
      %s59 = scalar_select %p56, %s57, %s58
      %p62 = pneg %p56
      %p63 = scmp.eq.s32.totalorder %s9, 4
      %p64 = por %p62, %p63
      %p65 = scmp.ne.s32.totalorder %s57, %s60
      %p66 = scmp.eq.s32.totalorder %s9, 0
      %p67 = por %p65, %p66
      %p68 = scmp.ne.s32.totalorder %s57, %s60
      %p69 = scmp.eq.s32.totalorder %s14, 4
      %p70 = por %p68, %p69
      %p71 = scmp.ne.s32.totalorder %s60, %s61
      %p72 = scmp.eq.s32.totalorder %s14, 0
      %p73 = por %p71, %p72
      %p74 = scmp.ne.s32.totalorder %s60, %s61
      %p75 = scmp.eq.s32.totalorder %s15, 4
      %p76 = por %p74, %p75
      %p78 = scmp.ne.s32.totalorder %s61, %s77
      %p79 = scmp.eq.s32.totalorder %s15, 0
      %p80 = por %p78, %p79
      %s81 = ssub.s32 %s16, %s28
      %p82 = scmp.eq.s32.totalorder %s81, 0
      %s84 = sadd.s32 %s83, 1
      %s85 = scalar_select %p82, %s83, %s84
      %p88 = pneg %p82
      %p89 = scmp.eq.s32.totalorder %s9, 4
      %p90 = por %p88, %p89
      %p91 = scmp.ne.s32.totalorder %s83, %s86
      %p92 = scmp.eq.s32.totalorder %s9, 0
      %p93 = por %p91, %p92
      %p94 = scmp.ne.s32.totalorder %s83, %s86
      %p95 = scmp.eq.s32.totalorder %s14, 4
      %p96 = por %p94, %p95
      %p97 = scmp.ne.s32.totalorder %s86, %s87
      %p98 = scmp.eq.s32.totalorder %s14, 0
      %p99 = por %p97, %p98
      %p100 = scmp.ne.s32.totalorder %s86, %s87
      %p101 = scmp.eq.s32.totalorder %s15, 4
      %p102 = por %p100, %p101
      %p104 = scmp.ne.s32.totalorder %s87, %s103
      %p105 = scmp.eq.s32.totalorder %s15, 0
      %p106 = por %p104, %p105
      %s107 = ssub.s32 %s16, %s28
      %p108 = scmp.eq.s32.totalorder %s107, 0
      %s110 = sadd.s32 %s109, 1
      %s111 = scalar_select %p108, %s109, %s110
      %p114 = pneg %p108
      %p115 = scmp.eq.s32.totalorder %s9, 4
      %p116 = por %p114, %p115
      %p117 = scmp.ne.s32.totalorder %s109, %s112
      %p118 = scmp.eq.s32.totalorder %s9, 0
      %p119 = por %p117, %p118
      %p120 = scmp.ne.s32.totalorder %s109, %s112
      %p121 = scmp.eq.s32.totalorder %s14, 4
      %p122 = por %p120, %p121
      %p123 = scmp.ne.s32.totalorder %s112, %s113
      %p124 = scmp.eq.s32.totalorder %s14, 0
      %p125 = por %p123, %p124
      %p126 = scmp.ne.s32.totalorder %s112, %s113
      %p127 = scmp.eq.s32.totalorder %s15, 4
      %p128 = por %p126, %p127
      %p130 = scmp.ne.s32.totalorder %s113, %s129
      %p131 = scmp.eq.s32.totalorder %s15, 0
      %p132 = por %p130, %p131
      %p133 = scmp.le.s32.totalorder 1, %s9
      %p134 = scmp.lt.s32.totalorder %s9, 6
      %p135 = pnand %p133, %p134
      %p136 = pneg %p135
      // Predicated region
      $region9: #{dcnn_forward.7} parent=5 // pred_check
        _
      $region10: #{dcnn_forward.7} parent=5 // pred_check_branch
        %138 = sbr.rel (%p135) target = $region12
      $region11: #{dcnn_forward.7} parent=5 // pred_region
        %s139 = ssub.s32 %s9, 1
        // Predicated region
        $region13: #{dcnn_forward.7} parent=11 // pred_check
          %p140 = pneg %p47
        $region14: #{dcnn_forward.7} parent=11 // pred_check_branch
          %142 = sbr.rel (%p140) target = $region16
        $region15: #{dcnn_forward.7} parent=11 // pred_region
          %s143 = smul.u32 8, %s19
          %p144 = scmp.lt.s32.totalorder %s143, 7
          %s145 = scalar_select %p144, %s143, 7
          %s146 = smul.addr %s145, 4
          %s147 = scalar_lea.vmem %s0, %s146
          %s148 = smul.u32 8, %s19
        $region16: #{dcnn_forward.7} parent=11 // pred_fallthru
          _
      $region12: #{dcnn_forward.7} parent=5 // pred_fallthru
        _
      %p149 = scmp.lt.s32.totalorder %s9, 5
      // Predicated region
      $region17: #{dcnn_forward.7} parent=5 // pred_check
        %p150 = pneg %p149
      $region18: #{dcnn_forward.7} parent=5 // pred_check_branch
        %152 = sbr.rel (%p150) target = $region20
      $region19: #{dcnn_forward.7} parent=5 // pred_region
        // Predicated region
        $region21: #{dcnn_forward.7} parent=19 // pred_check
          %p153 = pneg %p67
        $region22: #{dcnn_forward.7} parent=19 // pred_check_branch
          %155 = sbr.rel (%p153) target = $region24
        $region23: #{dcnn_forward.7} parent=19 // pred_region
          %s156 = sand.u32 %s57, 1
          %s157 = sand.u32 %s57, 1
          %s158 = smul.addr %s157, 64
          %s159 = scalar_lea.vmem [#allocation3], %s158
          %s160 = smul.u32 2, %s16
          %s161 = smul.addr %s160, 4
          %s162 = scalar_lea.vmem %s1, %s161
          // Predicated region
          $region25: #{dcnn_forward.7} parent=23 // pred_check
            _
          $region26: #{dcnn_forward.7} parent=23 // pred_check_branch
            %164 = sbr.rel (0) target = $region28
          $region27: #{dcnn_forward.7} parent=23 // pred_region
            // Predicated region
            $region29: #{dcnn_forward.7} parent=27 // pred_check
              _
            $region30: #{dcnn_forward.7} parent=27 // pred_check_branch
              %166 = sbr.rel (0) target = $region32
            $region31: #{dcnn_forward.7} parent=27 // pred_region
              // Predicated region
              $region44: #{dcnn_forward.7} parent=31 // pred_check
                _
              $region45: #{dcnn_forward.7} parent=31 // pred_check_branch
                %195 = sbr.rel (0) target = $region47
              $region46: #{dcnn_forward.7} parent=31 // pred_region
                loop: start=0, step=1, limit=1
                $region48: #{dcnn_forward.7} parent=46 // loop_pre_header
                  _
                $region49: #{dcnn_forward.7} parent=46 // loop_header
                  %s197 = sphi 0, %s201
                  %p198 = scmp.ge.s32.totalorder %s197, 1
                  %s202 = sphi %s162, %s162
                  %s203 = sphi %s159, %s159
                $region50: #{dcnn_forward.7} parent=46 // loop_header_branch
                  %200 = sbr.rel (%p198) target = $region54
                $region51: #{dcnn_forward.7} parent=46 // loop_body
                  %v204 = vld [vmem:[%s202] sm:$0xff]
                  %205 = vst [vmem:[%s203] sm:$0xff] %v204
                  %v206 = vld [vmem:[%s202 + $0x28] sm:$0xff]
                  %207 = vst [vmem:[%s203 + $0x8] sm:$0xff] %v206
                  %v208 = vld [vmem:[%s202 + $0x50] sm:$0xff]
                  %209 = vst [vmem:[%s203 + $0x10] sm:$0xff] %v208
                  %v210 = vld [vmem:[%s202 + $0x78] sm:$0xff]
                  %211 = vst [vmem:[%s203 + $0x18] sm:$0xff] %v210
                  %v212 = vld [vmem:[%s202 + $0xa0] sm:$0xff]
                  %213 = vst [vmem:[%s203 + $0x20] sm:$0xff] %v212
                  %v214 = vld [vmem:[%s202 + $0xc8] sm:$0xff]
                  %215 = vst [vmem:[%s203 + $0x28] sm:$0xff] %v214
                  %v216 = vld [vmem:[%s202 + $0xf0] sm:$0xff]
                  %217 = vst [vmem:[%s203 + $0x30] sm:$0xff] %v216
                  %v218 = vld [vmem:[%s202 + $0x118] sm:$0xff]
                  %219 = vst [vmem:[%s203 + $0x38] sm:$0xff] %v218
                $region52: #{dcnn_forward.7} parent=46 // loop_footer
                  %s201 = sadd.s32 1, %s197
                $region53: #{dcnn_forward.7} parent=46 // loop_footer_branch
                  %196 = sbr.rel target = $region49
                $region54: #{dcnn_forward.7} parent=46 // loop_exit
                  _
              $region47: #{dcnn_forward.7} parent=31 // pred_fallthru
                _
              // Predicated region
              $region55: #{dcnn_forward.7} parent=31 // pred_check
                _
              $region56: #{dcnn_forward.7} parent=31 // pred_check_branch
                %221 = sbr.rel target = $region58
              $region57: #{dcnn_forward.7} parent=31 // pred_region
                _
              $region58: #{dcnn_forward.7} parent=31 // pred_fallthru
                _
            $region32: #{dcnn_forward.7} parent=27 // pred_fallthru
              _
            // Predicated region
            $region33: #{dcnn_forward.7} parent=27 // pred_check
              _
            $region34: #{dcnn_forward.7} parent=27 // pred_check_branch
              %168 = sbr.rel target = $region36
            $region35: #{dcnn_forward.7} parent=27 // pred_region
              loop: start=0, step=1, limit=1
              $region37: #{dcnn_forward.7} parent=35 // loop_pre_header
                _
              $region38: #{dcnn_forward.7} parent=35 // loop_header
                %s171 = sphi 0, %s175
                %p172 = scmp.ge.s32.totalorder %s171, 1
                %s176 = sphi %s162, %s162
                %s177 = sphi %s159, %s159
              $region39: #{dcnn_forward.7} parent=35 // loop_header_branch
                %174 = sbr.rel (%p172) target = $region43
              $region40: #{dcnn_forward.7} parent=35 // loop_body
                %v178 = vld [vmem:[%s176] sm:$0xff]
                %179 = vst [vmem:[%s177] sm:$0xff] %v178
                %v180 = vld [vmem:[%s176 + $0x28] sm:$0xff]
                %181 = vst [vmem:[%s177 + $0x8] sm:$0xff] %v180
                %v182 = vld [vmem:[%s176 + $0x50] sm:$0xff]
                %183 = vst [vmem:[%s177 + $0x10] sm:$0xff] %v182
                %v184 = vld [vmem:[%s176 + $0x78] sm:$0xff]
                %185 = vst [vmem:[%s177 + $0x18] sm:$0xff] %v184
                %v186 = vld [vmem:[%s176 + $0xa0] sm:$0xff]
                %187 = vst [vmem:[%s177 + $0x20] sm:$0xff] %v186
                %v188 = vld [vmem:[%s176 + $0xc8] sm:$0xff]
                %189 = vst [vmem:[%s177 + $0x28] sm:$0xff] %v188
                %v190 = vld [vmem:[%s176 + $0xf0] sm:$0xff]
                %191 = vst [vmem:[%s177 + $0x30] sm:$0xff] %v190
                %v192 = vld [vmem:[%s176 + $0x118] sm:$0xff]
                %193 = vst [vmem:[%s177 + $0x38] sm:$0xff] %v192
              $region41: #{dcnn_forward.7} parent=35 // loop_footer
                %s175 = sadd.s32 1, %s171
              $region42: #{dcnn_forward.7} parent=35 // loop_footer_branch
                %170 = sbr.rel target = $region38
              $region43: #{dcnn_forward.7} parent=35 // loop_exit
                _
            $region36: #{dcnn_forward.7} parent=27 // pred_fallthru
              _
          $region28: #{dcnn_forward.7} parent=23 // pred_fallthru
            _
          %222 = vnop
        $region24: #{dcnn_forward.7} parent=19 // pred_fallthru
          _
        // Predicated region
        $region59: #{dcnn_forward.7} parent=19 // pred_check
          %p223 = pneg %p93
        $region60: #{dcnn_forward.7} parent=19 // pred_check_branch
          %225 = sbr.rel (%p223) target = $region62
        $region61: #{dcnn_forward.7} parent=19 // pred_region
          %s226 = smul.u32 2, %s16
          %p227 = scmp.lt.s32.totalorder %s226, 9
          %s228 = scalar_select %p227, %s226, 9
          %s229 = scalar_lea.vmem %s2, %s228
          %s230 = smul.u32 2, %s16
        $region62: #{dcnn_forward.7} parent=19 // pred_fallthru
          _
      $region20: #{dcnn_forward.7} parent=5 // pred_fallthru
        _
      %p231 = scmp.le.s32.totalorder 1, %s9
      %p232 = scmp.lt.s32.totalorder %s9, 6
      %p233 = pnand %p231, %p232
      %p234 = pneg %p233
      // Predicated region
      $region63: #{dcnn_forward.7} parent=5 // pred_check
        _
      $region64: #{dcnn_forward.7} parent=5 // pred_check_branch
        %236 = sbr.rel (%p233) target = $region66
      $region65: #{dcnn_forward.7} parent=5 // pred_region
        %s237 = ssub.s32 %s9, 1
        %s238 = sand.u32 %s60, 1
        %s239 = sand.u32 %s60, 1
        %s240 = smul.addr %s239, 64
        %s241 = scalar_lea.vmem [#allocation3], %s240
        // Predicated region
        $region67: #{dcnn_forward.7} parent=65 // pred_check
          %p242 = pneg %p73
        $region68: #{dcnn_forward.7} parent=65 // pred_check_branch
          %244 = sbr.rel (%p242) target = $region70
        $region69: #{dcnn_forward.7} parent=65 // pred_region
          _
        $region70: #{dcnn_forward.7} parent=65 // pred_fallthru
          _
        %s245 = smul.u32 8, %s19
        %p246 = scmp.lt.s32.totalorder %s245, 7
        %s247 = scalar_select %p246, %s245, 7
        %s248 = smul.addr %s247, 4
        %s249 = scalar_lea.vmem %s0, %s248
        %p250 = pneg %p47
        %p251 = pneg %p44
        %s252 = sand.u32 %s60, 1
        %s253 = sand.u32 %s60, 1
        %s254 = smul.addr %s253, 64
        %s255 = scalar_lea.vmem [#allocation3], %s254
        %p256 = pneg %p73
        %p257 = pneg %p70
        %s258 = smul.u32 2, %s18
        %p259 = scmp.lt.s32.totalorder %s258, 9
        %s260 = scalar_select %p259, %s258, 9
        %s261 = scalar_lea.vmem %s2, %s260
        %p262 = pneg %p99
        %p263 = pneg %p96
        %p264 = pneg %p125
        %p265 = pneg %p122
        %s266 = smul.u32 2, %s18
        %p267 = scmp.lt.s32.totalorder %s266, 9
        %s268 = scalar_select %p267, %s266, 9
        %s269 = smul.addr %s268, 2
        %s270 = scalar_lea.vmem %s3, %s269
        %s271 = smul.u32 8, %s19
        %p272 = scmp.lt.s32.totalorder %s271, 7
        %s273 = scalar_select %p272, %s271, 7
        %s274 = smul.addr %s273, 4
        %s275 = scalar_lea.vmem %s0, %s274
        %s276 = smul.u32 8, %s19
        %s277 = smul.u32 2, %s18
        %s278 = smul.u32 2, %s18
        %p279 = scmp.lt.s32.totalorder %s278, 9
        %s280 = scalar_select %p279, %s278, 9
        %s281 = scalar_lea.vmem %s2, %s280
        %s282 = smul.u32 2, %s18
        %s283 = smul.u32 2, %s18
        %p284 = scmp.lt.s32.totalorder %s283, 9
        %s285 = scalar_select %p284, %s283, 9
        %s286 = smul.addr %s285, 2
        %s287 = scalar_lea.vmem %s3, %s286
        %s288 = smul.u32 2, %s18
        %p290 = scmp.eq.s32.totalorder %s19, 0
        // Predicated region
        $region71: #{dcnn_forward.7} parent=65 // pred_check
          %p291 = pneg %p290
        $region72: #{dcnn_forward.7} parent=65 // pred_check_branch
          %293 = sbr.rel (%p291) target = $region74
        $region73: #{dcnn_forward.7} parent=65 // pred_region
          %294 = vst [vmem:[#allocation2] sm:$0xf] 0.0
        $region74: #{dcnn_forward.7} parent=65 // pred_fallthru
          _
        %v295 = vld [vmem:[%s275] sm:$0xf]
        %v296 = vld [vmem:[%s275 + $0x4] sm:$0xf]
        %v297 = vld [vmem:[%s275 + $0x8] sm:$0xf]
        %v298 = vld [vmem:[%s275 + $0xc] sm:$0xf]
        %v299 = vld [vmem:[%s275 + $0x10] sm:$0xf]
        %v300 = vld [vmem:[%s275 + $0x14] sm:$0xf]
        %v301 = vld [vmem:[%s275 + $0x18] sm:$0xf]
        %v302 = vld [vmem:[%s275 + $0x1c] sm:$0xf]
        %v303 = vld [vmem:[%s275 + $0x20] sm:$0xf]
        %v304 = vld [vmem:[%s275 + $0x24] sm:$0xf]
        %v305 = vld [vmem:[%s275 + $0x28] sm:$0xf]
        %v306 = vld [vmem:[%s275 + $0x2c] sm:$0xf]
        %v307 = vld [vmem:[%s275 + $0x30] sm:$0xf]
        %v308 = vld [vmem:[%s275 + $0x34] sm:$0xf]
        %v309 = vld [vmem:[%s275 + $0x38] sm:$0xf]
        %v310 = vld [vmem:[%s275 + $0x3c] sm:$0xf]
        %v311 = vld [vmem:[%s241] sm:$0xff]
        %v312 = vld [vmem:[%s241 + $0x8] sm:$0xff]
        %v313 = vld [vmem:[%s241 + $0x10] sm:$0xff]
        %v314 = vld [vmem:[%s241 + $0x18] sm:$0xff]
        %v315 = vld [vmem:[%s241 + $0x20] sm:$0xff]
        %v316 = vld [vmem:[%s241 + $0x28] sm:$0xff]
        %v317 = vld [vmem:[%s241 + $0x30] sm:$0xff]
        %v318 = vld [vmem:[%s241 + $0x38] sm:$0xff]
        %v319 = vld [vmem:[%s281] sm:$0x3]
        %v321 = vlaneseq
        %v322 = vshrl.u32 %v321, 7
        %v323 = vsub.s32 0, %v322
        %v324 = vrot.slane %v319, %v323
        %v325 = vlaneseq
        %v326 = vshrl.u32 %v325, 7
        %v327 = vsub.s32 1, %v326
        %v328 = vrot.slane %v319, %v327
        %v347 = vunpack.c.l.b16 %v295
        %v348 = vunpack.c.l.b16 %v296
        %v349 = vunpack.c.l.b16 %v297
        %v350 = vunpack.c.l.b16 %v298
        %v351 = vunpack.c.l.b16 %v299
        %v352 = vunpack.c.l.b16 %v300
        %v353 = vunpack.c.l.b16 %v301
        %v354 = vunpack.c.l.b16 %v302
        %v355 = vunpack.c.l.b16 %v303
        %v356 = vunpack.c.l.b16 %v304
        %v357 = vunpack.c.l.b16 %v305
        %v358 = vunpack.c.l.b16 %v306
        %v359 = vunpack.c.l.b16 %v307
        %v360 = vunpack.c.l.b16 %v308
        %v361 = vunpack.c.l.b16 %v309
        %v362 = vunpack.c.l.b16 %v310
        %v363 = vpack.c.b16 %v348, %v347
        %v364 = vpack.c.b16 %v350, %v349
        %v365 = vpack.c.b16 %v352, %v351
        %v366 = vpack.c.b16 %v354, %v353
        %v367 = vpack.c.b16 %v356, %v355
        %v368 = vpack.c.b16 %v358, %v357
        %v369 = vpack.c.b16 %v360, %v359
        %v370 = vpack.c.b16 %v362, %v361
        %v379 = vunpack.c.l.b16 %v311
        %v380 = vunpack.c.h.b16 %v311
        %v381 = vunpack.c.l.b16 %v312
        %v382 = vunpack.c.h.b16 %v312
        %v383 = vunpack.c.l.b16 %v313
        %v384 = vunpack.c.h.b16 %v313
        %v385 = vunpack.c.l.b16 %v314
        %v386 = vunpack.c.h.b16 %v314
        %v387 = vunpack.c.l.b16 %v315
        %v388 = vunpack.c.h.b16 %v315
        %v389 = vunpack.c.l.b16 %v316
        %v390 = vunpack.c.h.b16 %v316
        %v391 = vunpack.c.l.b16 %v317
        %v392 = vunpack.c.h.b16 %v317
        %v393 = vunpack.c.l.b16 %v318
        %v394 = vunpack.c.h.b16 %v318
        %v395 = vpack.c.b16 %v381, %v379
        %v396 = vpack.c.b16 %v382, %v380
        %v397 = vpack.c.b16 %v385, %v383
        %v398 = vpack.c.b16 %v386, %v384
        %v399 = vpack.c.b16 %v389, %v387
        %v400 = vpack.c.b16 %v390, %v388
        %v401 = vpack.c.b16 %v393, %v391
        %v402 = vpack.c.b16 %v394, %v392
        %vm411 = vcmask 523264
        %v413 = vsel %vm411, %v363, 0
        %v416 = vsel %vm411, %v364, 0
        %v419 = vsel %vm411, %v365, 0
        %v422 = vsel %vm411, %v366, 0
        %v425 = vsel %vm411, %v367, 0
        %v428 = vsel %vm411, %v368, 0
        %v431 = vsel %vm411, %v369, 0
        %v434 = vsel %vm411, %v370, 0
        %436 = vmatprep.subr.bf16.mxu0 %v396
        %437 = vmatpush1.bf16.msra.mxu0 %v395
        %438 = vmatprep.subr.bf16.mxu0 %v398
        %439 = vmatpush1.bf16.msra.mxu0 %v397
        %440 = vmatprep.subr.bf16.mxu0 %v400
        %441 = vmatpush1.bf16.msra.mxu0 %v399
        %442 = vmatprep.subr.bf16.mxu0 %v402
        %443 = vmatpush1.bf16.msra.mxu0 %v401
        %444 = vmatprep.subr.bf16.mxu0 0
        %445 = vmatpush1.bf16.msra.mxu0 0
        %446 = vmatprep.subr.bf16.mxu0 0
        %447 = vmatpush1.bf16.msra.mxu0 0
        %448 = vmatprep.subr.bf16.mxu0 0
        %449 = vmatpush1.bf16.msra.mxu0 0
        %450 = vmatprep.subr.bf16.mxu0 0
        %451 = vmatpush1.bf16.msra.mxu0 0
        %452 = vmatprep.subr.bf16.mxu0 0
        %453 = vmatpush1.bf16.msra.mxu0 0
        %454 = vmatprep.subr.bf16.mxu0 0
        %455 = vmatpush1.bf16.msra.mxu0 0
        %456 = vmatprep.subr.bf16.mxu0 0
        %457 = vmatpush1.bf16.msra.mxu0 0
        %458 = vmatprep.subr.bf16.mxu0 0
        %459 = vmatpush1.bf16.msra.mxu0 0
        %460 = vmatprep.subr.bf16.mxu0 0
        %461 = vmatpush1.bf16.msra.mxu0 0
        %462 = vmatprep.subr.bf16.mxu0 0
        %463 = vmatpush1.bf16.msra.mxu0 0
        %464 = vmatprep.subr.bf16.mxu0 0
        %465 = vmatpush1.bf16.msra.mxu0 0
        %466 = vmatprep.subr.bf16.mxu0 0
        %467 = vmatpush1.bf16.msra.mxu0 0
        %468 = vmatprep.mubr.bf16.mxu0 0
        %469 = vmatmul.mubr.bf16.gmra.mrb[0].mxu0 %v413
        %v470 = vpop.f32.mrb[0].mxu0
        %v471 = vadd.f32 %v324, %v470
        %v472 = vpop.f32.mrb[0].mxu0
        %v473 = vadd.f32 %v328, %v472
        %v474 = vpop.f32.mrb[0].mxu0
        %v475 = vadd.f32 %v324, %v474
        %v476 = vpop.f32.mrb[0].mxu0
        %v477 = vadd.f32 %v328, %v476
        %478 = vmatprep.mubr.bf16.mxu0 0
        %479 = vmatmul.mubr.bf16.gmra.mrb[0].mxu0 %v416
        %v480 = vpop.f32.mrb[0].mxu0
        %v481 = vadd.f32 %v324, %v480
        %v482 = vpop.f32.mrb[0].mxu0
        %v483 = vadd.f32 %v328, %v482
        %v484 = vpop.f32.mrb[0].mxu0
        %v485 = vadd.f32 %v324, %v484
        %v486 = vpop.f32.mrb[0].mxu0
        %v487 = vadd.f32 %v328, %v486
        %488 = vmatprep.mubr.bf16.mxu0 0
        %489 = vmatmul.mubr.bf16.gmra.mrb[0].mxu0 %v419
        %v490 = vpop.f32.mrb[0].mxu0
        %v491 = vadd.f32 %v324, %v490
        %v492 = vpop.f32.mrb[0].mxu0
        %v493 = vadd.f32 %v328, %v492
        %v494 = vpop.f32.mrb[0].mxu0
        %v495 = vadd.f32 %v324, %v494
        %v496 = vpop.f32.mrb[0].mxu0
        %v497 = vadd.f32 %v328, %v496
        %498 = vmatprep.mubr.bf16.mxu0 0
        %499 = vmatmul.mubr.bf16.gmra.mrb[0].mxu0 %v422
        %v500 = vpop.f32.mrb[0].mxu0
        %v501 = vadd.f32 %v324, %v500
        %v502 = vpop.f32.mrb[0].mxu0
        %v503 = vadd.f32 %v328, %v502
        %v504 = vpop.f32.mrb[0].mxu0
        %v505 = vadd.f32 %v324, %v504
        %v506 = vpop.f32.mrb[0].mxu0
        %v507 = vadd.f32 %v328, %v506
        %508 = vmatprep.mubr.bf16.mxu0 0
        %509 = vmatmul.mubr.bf16.gmra.mrb[0].mxu0 %v425
        %v510 = vpop.f32.mrb[0].mxu0
        %v511 = vadd.f32 %v324, %v510
        %v512 = vpop.f32.mrb[0].mxu0
        %v513 = vadd.f32 %v328, %v512
        %v514 = vpop.f32.mrb[0].mxu0
        %v515 = vadd.f32 %v324, %v514
        %v516 = vpop.f32.mrb[0].mxu0
        %v517 = vadd.f32 %v328, %v516
        %518 = vmatprep.mubr.bf16.mxu0 0
        %519 = vmatmul.mubr.bf16.gmra.mrb[0].mxu0 %v428
        %v520 = vpop.f32.mrb[0].mxu0
        %v521 = vadd.f32 %v324, %v520
        %v522 = vpop.f32.mrb[0].mxu0
        %v523 = vadd.f32 %v328, %v522
        %v524 = vpop.f32.mrb[0].mxu0
        %v525 = vadd.f32 %v324, %v524
        %v526 = vpop.f32.mrb[0].mxu0
        %v527 = vadd.f32 %v328, %v526
        %528 = vmatprep.mubr.bf16.mxu0 0
        %529 = vmatmul.mubr.bf16.gmra.mrb[0].mxu0 %v431
        %v530 = vpop.f32.mrb[0].mxu0
        %v531 = vadd.f32 %v324, %v530
        %v532 = vpop.f32.mrb[0].mxu0
        %v533 = vadd.f32 %v328, %v532
        %v534 = vpop.f32.mrb[0].mxu0
        %v535 = vadd.f32 %v324, %v534
        %v536 = vpop.f32.mrb[0].mxu0
        %v537 = vadd.f32 %v328, %v536
        %538 = vmatprep.mubr.bf16.mxu0 0
        %539 = vmatmul.mubr.bf16.gmra.mrb[0].mxu0 %v434
        %v540 = vpop.f32.mrb[0].mxu0
        %v541 = vadd.f32 %v324, %v540
        %v542 = vpop.f32.mrb[0].mxu0
        %v543 = vadd.f32 %v328, %v542
        %v544 = vpop.f32.mrb[0].mxu0
        %v545 = vadd.f32 %v324, %v544
        %v546 = vpop.f32.mrb[0].mxu0
        %v547 = vadd.f32 %v328, %v546
        %548 = vdwg.mxu0
        %v549 = vsub.f32 0.0, %v471
        %v550 = vsub.f32 0.0, %v473
        %v551 = vsub.f32 0.0, %v475
        %v552 = vsub.f32 0.0, %v477
        %v553 = vsub.f32 0.0, %v481
        %v554 = vsub.f32 0.0, %v483
        %v555 = vsub.f32 0.0, %v485
        %v556 = vsub.f32 0.0, %v487
        %v557 = vsub.f32 0.0, %v491
        %v558 = vsub.f32 0.0, %v493
        %v559 = vsub.f32 0.0, %v495
        %v560 = vsub.f32 0.0, %v497
        %v561 = vsub.f32 0.0, %v501
        %v562 = vsub.f32 0.0, %v503
        %v563 = vsub.f32 0.0, %v505
        %v564 = vsub.f32 0.0, %v507
        %v565 = vsub.f32 0.0, %v511
        %v566 = vsub.f32 0.0, %v513
        %v567 = vsub.f32 0.0, %v515
        %v568 = vsub.f32 0.0, %v517
        %v569 = vsub.f32 0.0, %v521
        %v570 = vsub.f32 0.0, %v523
        %v571 = vsub.f32 0.0, %v525
        %v572 = vsub.f32 0.0, %v527
        %v573 = vsub.f32 0.0, %v531
        %v574 = vsub.f32 0.0, %v533
        %v575 = vsub.f32 0.0, %v535
        %v576 = vsub.f32 0.0, %v537
        %v577 = vsub.f32 0.0, %v541
        %v578 = vsub.f32 0.0, %v543
        %v579 = vsub.f32 0.0, %v545
        %v580 = vsub.f32 0.0, %v547
        %v581 = vmul.f32 %v549, 1.442695
        %v582 = vpow.pop %v581
        %v583 = vmul.f32 %v550, 1.442695
        %v584 = vpow.pop %v583
        %v585 = vmul.f32 %v551, 1.442695
        %v586 = vpow.pop %v585
        %v587 = vmul.f32 %v552, 1.442695
        %v588 = vpow.pop %v587
        %v589 = vmul.f32 %v553, 1.442695
        %v590 = vpow.pop %v589
        %v591 = vmul.f32 %v554, 1.442695
        %v592 = vpow.pop %v591
        %v593 = vmul.f32 %v555, 1.442695
        %v594 = vpow.pop %v593
        %v595 = vmul.f32 %v556, 1.442695
        %v596 = vpow.pop %v595
        %v597 = vmul.f32 %v557, 1.442695
        %v598 = vpow.pop %v597
        %v599 = vmul.f32 %v558, 1.442695
        %v600 = vpow.pop %v599
        %v601 = vmul.f32 %v559, 1.442695
        %v602 = vpow.pop %v601
        %v603 = vmul.f32 %v560, 1.442695
        %v604 = vpow.pop %v603
        %v605 = vmul.f32 %v561, 1.442695
        %v606 = vpow.pop %v605
        %v607 = vmul.f32 %v562, 1.442695
        %v608 = vpow.pop %v607
        %v609 = vmul.f32 %v563, 1.442695
        %v610 = vpow.pop %v609
        %v611 = vmul.f32 %v564, 1.442695
        %v612 = vpow.pop %v611
        %v613 = vmul.f32 %v565, 1.442695
        %v614 = vpow.pop %v613
        %v615 = vmul.f32 %v566, 1.442695
        %v616 = vpow.pop %v615
        %v617 = vmul.f32 %v567, 1.442695
        %v618 = vpow.pop %v617
        %v619 = vmul.f32 %v568, 1.442695
        %v620 = vpow.pop %v619
        %v621 = vmul.f32 %v569, 1.442695
        %v622 = vpow.pop %v621
        %v623 = vmul.f32 %v570, 1.442695
        %v624 = vpow.pop %v623
        %v625 = vmul.f32 %v571, 1.442695
        %v626 = vpow.pop %v625
        %v627 = vmul.f32 %v572, 1.442695
        %v628 = vpow.pop %v627
        %v629 = vmul.f32 %v573, 1.442695
        %v630 = vpow.pop %v629
        %v631 = vmul.f32 %v574, 1.442695
        %v632 = vpow.pop %v631
        %v633 = vmul.f32 %v575, 1.442695
        %v634 = vpow.pop %v633
        %v635 = vmul.f32 %v576, 1.442695
        %v636 = vpow.pop %v635
        %v637 = vmul.f32 %v577, 1.442695
        %v638 = vpow.pop %v637
        %v639 = vmul.f32 %v578, 1.442695
        %v640 = vpow.pop %v639
        %v641 = vmul.f32 %v579, 1.442695
        %v642 = vpow.pop %v641
        %v643 = vmul.f32 %v580, 1.442695
        %v644 = vpow.pop %v643
        %v645 = vadd.f32 %v582, 1.0
        %v646 = vadd.f32 %v584, 1.0
        %v647 = vadd.f32 %v586, 1.0
        %v648 = vadd.f32 %v588, 1.0
        %v649 = vadd.f32 %v590, 1.0
        %v650 = vadd.f32 %v592, 1.0
        %v651 = vadd.f32 %v594, 1.0
        %v652 = vadd.f32 %v596, 1.0
        %v653 = vadd.f32 %v598, 1.0
        %v654 = vadd.f32 %v600, 1.0
        %v655 = vadd.f32 %v602, 1.0
        %v656 = vadd.f32 %v604, 1.0
        %v657 = vadd.f32 %v606, 1.0
        %v658 = vadd.f32 %v608, 1.0
        %v659 = vadd.f32 %v610, 1.0
        %v660 = vadd.f32 %v612, 1.0
        %v661 = vadd.f32 %v614, 1.0
        %v662 = vadd.f32 %v616, 1.0
        %v663 = vadd.f32 %v618, 1.0
        %v664 = vadd.f32 %v620, 1.0
        %v665 = vadd.f32 %v622, 1.0
        %v666 = vadd.f32 %v624, 1.0
        %v667 = vadd.f32 %v626, 1.0
        %v668 = vadd.f32 %v628, 1.0
        %v669 = vadd.f32 %v630, 1.0
        %v670 = vadd.f32 %v632, 1.0
        %v671 = vadd.f32 %v634, 1.0
        %v672 = vadd.f32 %v636, 1.0
        %v673 = vadd.f32 %v638, 1.0
        %v674 = vadd.f32 %v640, 1.0
        %v675 = vadd.f32 %v642, 1.0
        %v676 = vadd.f32 %v644, 1.0
        %v677 = vrcp.pop %v645
        %v678 = vmul.f32 1.0, %v677
        %v679 = vrcp.pop %v646
        %v680 = vmul.f32 1.0, %v679
        %v681 = vrcp.pop %v647
        %v682 = vmul.f32 1.0, %v681
        %v683 = vrcp.pop %v648
        %v684 = vmul.f32 1.0, %v683
        %v685 = vrcp.pop %v649
        %v686 = vmul.f32 1.0, %v685
        %v687 = vrcp.pop %v650
        %v688 = vmul.f32 1.0, %v687
        %v689 = vrcp.pop %v651
        %v690 = vmul.f32 1.0, %v689
        %v691 = vrcp.pop %v652
        %v692 = vmul.f32 1.0, %v691
        %v693 = vrcp.pop %v653
        %v694 = vmul.f32 1.0, %v693
        %v695 = vrcp.pop %v654
        %v696 = vmul.f32 1.0, %v695
        %v697 = vrcp.pop %v655
        %v698 = vmul.f32 1.0, %v697
        %v699 = vrcp.pop %v656
        %v700 = vmul.f32 1.0, %v699
        %v701 = vrcp.pop %v657
        %v702 = vmul.f32 1.0, %v701
        %v703 = vrcp.pop %v658
        %v704 = vmul.f32 1.0, %v703
        %v705 = vrcp.pop %v659
        %v706 = vmul.f32 1.0, %v705
        %v707 = vrcp.pop %v660
        %v708 = vmul.f32 1.0, %v707
        %v709 = vrcp.pop %v661
        %v710 = vmul.f32 1.0, %v709
        %v711 = vrcp.pop %v662
        %v712 = vmul.f32 1.0, %v711
        %v713 = vrcp.pop %v663
        %v714 = vmul.f32 1.0, %v713
        %v715 = vrcp.pop %v664
        %v716 = vmul.f32 1.0, %v715
        %v717 = vrcp.pop %v665
        %v718 = vmul.f32 1.0, %v717
        %v719 = vrcp.pop %v666
        %v720 = vmul.f32 1.0, %v719
        %v721 = vrcp.pop %v667
        %v722 = vmul.f32 1.0, %v721
        %v723 = vrcp.pop %v668
        %v724 = vmul.f32 1.0, %v723
        %v725 = vrcp.pop %v669
        %v726 = vmul.f32 1.0, %v725
        %v727 = vrcp.pop %v670
        %v728 = vmul.f32 1.0, %v727
        %v729 = vrcp.pop %v671
        %v730 = vmul.f32 1.0, %v729
        %v731 = vrcp.pop %v672
        %v732 = vmul.f32 1.0, %v731
        %v733 = vrcp.pop %v673
        %v734 = vmul.f32 1.0, %v733
        %v735 = vrcp.pop %v674
        %v736 = vmul.f32 1.0, %v735
        %v737 = vrcp.pop %v675
        %v738 = vmul.f32 1.0, %v737
        %v739 = vrcp.pop %v676
        %v740 = vmul.f32 1.0, %v739
        %v741 = vmul.f32 %v471, %v678
        %v742 = vmul.f32 %v473, %v680
        %v743 = vmul.f32 %v475, %v682
        %v744 = vmul.f32 %v477, %v684
        %v745 = vmul.f32 %v481, %v686
        %v746 = vmul.f32 %v483, %v688
        %v747 = vmul.f32 %v485, %v690
        %v748 = vmul.f32 %v487, %v692
        %v749 = vmul.f32 %v491, %v694
        %v750 = vmul.f32 %v493, %v696
        %v751 = vmul.f32 %v495, %v698
        %v752 = vmul.f32 %v497, %v700
        %v753 = vmul.f32 %v501, %v702
        %v754 = vmul.f32 %v503, %v704
        %v755 = vmul.f32 %v505, %v706
        %v756 = vmul.f32 %v507, %v708
        %v757 = vmul.f32 %v511, %v710
        %v758 = vmul.f32 %v513, %v712
        %v759 = vmul.f32 %v515, %v714
        %v760 = vmul.f32 %v517, %v716
        %v761 = vmul.f32 %v521, %v718
        %v762 = vmul.f32 %v523, %v720
        %v763 = vmul.f32 %v525, %v722
        %v764 = vmul.f32 %v527, %v724
        %v765 = vmul.f32 %v531, %v726
        %v766 = vmul.f32 %v533, %v728
        %v767 = vmul.f32 %v535, %v730
        %v768 = vmul.f32 %v537, %v732
        %v769 = vmul.f32 %v541, %v734
        %v770 = vmul.f32 %v543, %v736
        %v771 = vmul.f32 %v545, %v738
        %v772 = vmul.f32 %v547, %v740
        %v773 = vld [vmem:[#allocation2] sm:$0xf]
        %v774 = vadd.f32 %v741, %v743
        %v775 = vadd.f32 %v774, %v745
        %v776 = vadd.f32 %v775, %v747
        %v777 = vadd.f32 %v776, %v749
        %v778 = vadd.f32 %v777, %v751
        %v779 = vadd.f32 %v778, %v753
        %v780 = vadd.f32 %v779, %v755
        %v781 = vrot.slane %v780, 4
        %v782 = vadd.f32 %v780, %v781
        %v783 = vrot.slane %v782, 2
        %v784 = vadd.f32 %v782, %v783
        %v785 = vrot.slane %v784, 1
        %v786 = vadd.f32 %v784, %v785
        %v787 = vadd.f32 %v742, %v744
        %v788 = vadd.f32 %v787, %v746
        %v789 = vadd.f32 %v788, %v748
        %v790 = vadd.f32 %v789, %v750
        %v791 = vadd.f32 %v790, %v752
        %v792 = vadd.f32 %v791, %v754
        %v793 = vadd.f32 %v792, %v756
        %v794 = vrot.slane %v793, 4
        %v795 = vadd.f32 %v793, %v794
        %v796 = vrot.slane %v795, 2
        %v797 = vadd.f32 %v795, %v796
        %v798 = vrot.slane %v797, 1
        %v799 = vadd.f32 %v797, %v798
        %v800 = vadd.f32 %v757, %v759
        %v801 = vadd.f32 %v800, %v761
        %v802 = vadd.f32 %v801, %v763
        %v803 = vadd.f32 %v802, %v765
        %v804 = vadd.f32 %v803, %v767
        %v805 = vadd.f32 %v804, %v769
        %v806 = vadd.f32 %v805, %v771
        %v807 = vrot.slane %v806, 4
        %v808 = vadd.f32 %v806, %v807
        %v809 = vrot.slane %v808, 2
        %v810 = vadd.f32 %v808, %v809
        %v811 = vrot.slane %v810, 1
        %v812 = vadd.f32 %v810, %v811
        %v813 = vadd.f32 %v758, %v760
        %v814 = vadd.f32 %v813, %v762
        %v815 = vadd.f32 %v814, %v764
        %v816 = vadd.f32 %v815, %v766
        %v817 = vadd.f32 %v816, %v768
        %v818 = vadd.f32 %v817, %v770
        %v819 = vadd.f32 %v818, %v772
        %v820 = vrot.slane %v819, 4
        %v821 = vadd.f32 %v819, %v820
        %v822 = vrot.slane %v821, 2
        %v823 = vadd.f32 %v821, %v822
        %v824 = vrot.slane %v823, 1
        %v825 = vadd.f32 %v823, %v824
        %v830 = vcombine.low %v786, %v799
        %v832 = vunpack.c.l.s4 1983009808
        %v833 = vunpack.c.0.s8 %v832
        %v834 = vlaneseq
        %v835 = vshrl.u32 %v834, 7
        %v836 = vsub.s32 %v833, %v835
        %v837 = vrot.slane %v830, %v836
        %v838 = vcombine.low %v812, %v825
        %v840 = vunpack.c.l.s4 1983009808
        %v841 = vunpack.c.0.s8 %v840
        %v842 = vlaneseq
        %v843 = vshrl.u32 %v842, 7
        %v844 = vsub.s32 %v841, %v843
        %v845 = vrot.slane %v838, %v844
        %vm846 = vcmask 1044484
        %v847 = vsel %vm846, %v837, %v837
        %vm848 = vcmask 1046534
        %v849 = vsel %vm848, %v837, %v847
        %v850 = vrot.slane %v845, 7
        %vm851 = vcmask 1041409
        %v852 = vsel %vm851, %v850, %v849
        %vm853 = vcmask 1043459
        %v854 = vsel %vm853, %v850, %v852
        %vm855 = vcmask 1045509
        %v856 = vsel %vm855, %v850, %v854
        %vm857 = vcmask 1047559
        %v858 = vsel %vm857, %v850, %v856
        %v860 = vadd.f32 %v773, %v858
        %861 = vst [vmem:[#allocation2] sm:$0xf] %v860
        // Predicated region
        $region75: #{dcnn_forward.7} parent=65 // pred_check
          %p862 = pneg %p290
        $region76: #{dcnn_forward.7} parent=65 // pred_check_branch
          %864 = sbr.rel (%p862) target = $region78
        $region77: #{dcnn_forward.7} parent=65 // pred_region
          %v865 = vld [vmem:[#allocation2] sm:$0xf]
          %v866 = vmul.f32 %v865, 0.015625
          %867 = vst [vmem:[%s287] sm:$0xf] %v866
        $region78: #{dcnn_forward.7} parent=65 // pred_fallthru
          _
        %s868 = smul.u32 2, %s18
        %p869 = scmp.lt.s32.totalorder %s868, 9
        %s870 = scalar_select %p869, %s868, 9
        %s871 = smul.addr %s870, 2
        %s872 = scalar_lea.vmem %s3, %s871
        // Predicated region
        $region79: #{dcnn_forward.7} parent=65 // pred_check
          %p873 = pneg %p122
        $region80: #{dcnn_forward.7} parent=65 // pred_check_branch
          %875 = sbr.rel (%p873) target = $region82
        $region81: #{dcnn_forward.7} parent=65 // pred_region
          %s876 = smul.u32 2, %s18
        $region82: #{dcnn_forward.7} parent=65 // pred_fallthru
          _
      $region66: #{dcnn_forward.7} parent=5 // pred_fallthru
        _
      %p877 = scmp.le.s32.totalorder 2, %s9
      // Predicated region
      $region83: #{dcnn_forward.7} parent=5 // pred_check
        %p878 = pneg %p877
      $region84: #{dcnn_forward.7} parent=5 // pred_check_branch
        %880 = sbr.rel (%p878) target = $region86
      $region85: #{dcnn_forward.7} parent=5 // pred_region
        %s881 = ssub.s32 %s9, 2
        // Predicated region
        $region87: #{dcnn_forward.7} parent=85 // pred_check
          %p882 = pneg %p128
        $region88: #{dcnn_forward.7} parent=85 // pred_check_branch
          %884 = sbr.rel (%p882) target = $region90
        $region89: #{dcnn_forward.7} parent=85 // pred_region
          %s885 = smul.u32 2, %s20
          %p886 = scmp.lt.s32.totalorder %s885, 9
          %s887 = scalar_select %p886, %s885, 9
          %s888 = smul.addr %s887, 2
          %s889 = scalar_lea.vmem %s3, %s888
        $region90: #{dcnn_forward.7} parent=85 // pred_fallthru
          _
      $region86: #{dcnn_forward.7} parent=5 // pred_fallthru
        _
    $region6: #{dcnn_forward.7} parent=1 // loop_footer
      %s13 = sadd.s32 1, %s9
    $region7: #{dcnn_forward.7} parent=1 // loop_footer_branch
      %8 = sbr.rel target = $region3
    $region8: #{dcnn_forward.7} parent=1 // loop_exit
      _

// kernel: dcnn_forward.9
$region0: #{dcnn_forward.9}
  #allocation0 [shape = 'u32[]', space=smem, size = 0x4, offset = 0x4, fixed_abs, tag = 'smem constant byte address 0x4 - core index']
  #allocation1 [shape = 'u32[144,128]{1,0:T(1,128)}', space=vmem, size = 0x12000, scoped, tag = 'internal scratch']
  #allocation2 [shape = 'f32[1,1]{1,0:T(1,128)S(1)}', space=vmem, size = 0x200, scoped, tag = 'scoped memory for dcnn_forward.9']
  %s0 = inlined_call_operand.vmem [shape: f32[2,32], index: 0, kind: input, shape index: {}]
  %s1 = inlined_call_operand.vmem [shape: f32[32,32], index: 1, kind: input, shape index: {}]
  %s2 = inlined_call_operand.vmem [shape: f32[1,32], index: 2, kind: input, shape index: {}]
  %s3 = inlined_call_operand.vmem [shape: f32[32,1], index: 3, kind: input, shape index: {}]
  %s4 = inlined_call_operand.<no memory space> [shape: f32[1,1], index: 4, kind: input, shape index: {}]
  %s5 = inlined_call_operand.vmem [shape: f32[2,1], index: 5, kind: output, shape index: {}]
  %s6 = sld [smem:[#allocation0]]
  $region30: #{dcnn_forward.9} parent=0
    _
  %s8 = ssub.s32 1, %s6
  %s9 = scalar_select 0, %s8, %s6
  %v10 = vstv %s4
  %11 = vst [vmem:[#allocation2] sm:$0x1] %v10
  // Predicated region
  $region2: #{dcnn_forward.9} parent=0 // pred_check
    _
  $region3: #{dcnn_forward.9} parent=0 // pred_check_branch
    %13 = sbr.rel (0) target = $region5
  $region4: #{dcnn_forward.9} parent=0 // pred_region
    _
  $region5: #{dcnn_forward.9} parent=0 // pred_fallthru
    _
  // Predicated region
  $region6: #{dcnn_forward.9} parent=0 // pred_check
    _
  $region7: #{dcnn_forward.9} parent=0 // pred_check_branch
    %15 = sbr.rel (0) target = $region9
  $region8: #{dcnn_forward.9} parent=0 // pred_region
    _
  $region9: #{dcnn_forward.9} parent=0 // pred_fallthru
    _
  // Predicated region
  $region10: #{dcnn_forward.9} parent=0 // pred_check
    _
  $region11: #{dcnn_forward.9} parent=0 // pred_check_branch
    %17 = sbr.rel (0) target = $region13
  $region12: #{dcnn_forward.9} parent=0 // pred_region
    _
  $region13: #{dcnn_forward.9} parent=0 // pred_fallthru
    _
  // Predicated region
  $region14: #{dcnn_forward.9} parent=0 // pred_check
    _
  $region15: #{dcnn_forward.9} parent=0 // pred_check_branch
    %19 = sbr.rel (0) target = $region17
  $region16: #{dcnn_forward.9} parent=0 // pred_region
    _
  $region17: #{dcnn_forward.9} parent=0 // pred_fallthru
    _
  // Predicated region
  $region18: #{dcnn_forward.9} parent=0 // pred_check
    _
  $region19: #{dcnn_forward.9} parent=0 // pred_check_branch
    %21 = sbr.rel (0) target = $region21
  $region20: #{dcnn_forward.9} parent=0 // pred_region
    _
  $region21: #{dcnn_forward.9} parent=0 // pred_fallthru
    _
  %v22 = vld [vmem:[%s0] sm:$0x3]
  %v23 = vmax.f32 %v22, 0.0
  %v24 = vand.u32 2147483647, %v22
  %v25 = vsub.f32 0.0, %v24
  %v26 = vmul.f32 %v25, 1.442695
  %v27 = vpow.pop %v26
  %v28 = vadd.f32 %v27, 1.0
  %v29 = vlog2.pop %v28
  %v30 = vmul.f32 %v29, 0.6931472
  %v31 = vmul.f32 -0.5, %v27
  %v32 = vadd.f32 %v31, 1.0
  %v33 = vmul.f32 %v32, %v27
  %v34 = vand.u32 2147483647, %v27
  %vm35 = vcmp.lt.f32.partialorder %v34, 0.0004427343
  %v36 = vsel %vm35, %v33, %v30
  %v37 = vadd.f32 %v23, %v36
  %v38 = vtanh.pop %v37
  %v39 = vmul.f32 %v22, %v38
  %v40 = vld [vmem:[%s1] sm:$0xff]
  %v41 = vld [vmem:[%s1 + $0x8] sm:$0xff]
  %v42 = vld [vmem:[%s1 + $0x10] sm:$0xff]
  %v43 = vld [vmem:[%s1 + $0x18] sm:$0xff]
  %v44 = vld [vmem:[%s2] sm:$0x1]
  %v46 = vlaneseq
  %v47 = vshrl.u32 %v46, 7
  %v48 = vsub.s32 0, %v47
  %v49 = vrot.slane %v44, %v48
  %vm51 = vcmask 261120
  %v53 = vsel %vm51, %v39, 0
  %55 = vmatprep.subr.mxu0 0.0
  %56 = vmatpush1.msra.mxu0 %v40
  %57 = vmatprep.subr.mxu0 0.0
  %58 = vmatpush1.msra.mxu0 %v41
  %59 = vmatprep.subr.mxu0 0.0
  %60 = vmatpush1.msra.mxu0 %v42
  %61 = vmatprep.subr.mxu0 0.0
  %62 = vmatpush1.msra.mxu0 %v43
  %63 = vmatprep.subr.mxu0 0.0
  %64 = vmatpush1.msra.mxu0 0.0
  %65 = vmatprep.subr.mxu0 0.0
  %66 = vmatpush1.msra.mxu0 0.0
  %67 = vmatprep.subr.mxu0 0.0
  %68 = vmatpush1.msra.mxu0 0.0
  %69 = vmatprep.subr.mxu0 0.0
  %70 = vmatpush1.msra.mxu0 0.0
  %71 = vmatprep.subr.mxu0 0.0
  %72 = vmatpush1.msra.mxu0 0.0
  %73 = vmatprep.subr.mxu0 0.0
  %74 = vmatpush1.msra.mxu0 0.0
  %75 = vmatprep.subr.mxu0 0.0
  %76 = vmatpush1.msra.mxu0 0.0
  %77 = vmatprep.subr.mxu0 0.0
  %78 = vmatpush1.msra.mxu0 0.0
  %79 = vmatprep.subr.mxu0 0.0
  %80 = vmatpush1.msra.mxu0 0.0
  %81 = vmatprep.subr.mxu0 0.0
  %82 = vmatpush1.msra.mxu0 0.0
  %83 = vmatprep.subr.mxu0 0.0
  %84 = vmatpush1.msra.mxu0 0.0
  %85 = vmatprep.subr.mxu0 0.0
  %86 = vmatpush1.msra.mxu0 0.0
  %87 = vmatprep.subr.mxu0 0.0
  %88 = vmatpush1.msra.mxu0 0.0
  %89 = vmatprep.subr.mxu0 0.0
  %90 = vmatpush1.msra.mxu0 0.0
  %91 = vmatprep.subr.mxu0 0.0
  %92 = vmatpush1.msra.mxu0 0.0
  %93 = vmatprep.subr.mxu0 0.0
  %94 = vmatpush1.msra.mxu0 0.0
  %95 = vmatprep.subr.mxu0 0.0
  %96 = vmatpush1.msra.mxu0 0.0
  %97 = vmatprep.subr.mxu0 0.0
  %98 = vmatpush1.msra.mxu0 0.0
  %99 = vmatprep.subr.mxu0 0.0
  %100 = vmatpush1.msra.mxu0 0.0
  %101 = vmatprep.subr.mxu0 0.0
  %102 = vmatpush1.msra.mxu0 0.0
  %103 = vmatprep.subr.mxu0 0.0
  %104 = vmatpush1.msra.mxu0 0.0
  %105 = vmatprep.subr.mxu0 0.0
  %106 = vmatpush1.msra.mxu0 0.0
  %107 = vmatprep.subr.mxu0 0.0
  %108 = vmatpush1.msra.mxu0 0.0
  %109 = vmatprep.subr.mxu0 0.0
  %110 = vmatpush1.msra.mxu0 0.0
  %111 = vmatprep.subr.mxu0 0.0
  %112 = vmatpush1.msra.mxu0 0.0
  %113 = vmatprep.subr.mxu0 0.0
  %114 = vmatpush1.msra.mxu0 0.0
  %115 = vmatprep.subr.mxu0 0.0
  %116 = vmatpush1.msra.mxu0 0.0
  %117 = vmatprep.subr.mxu0 0.0
  %118 = vmatpush1.msra.mxu0 0.0
  %119 = vmatprep.mubr.f32.mxu0 0.0
  %120 = vmatmul.mubr.f32.gmra.mrb[0].mxu0 %v53
  %v121 = vpop.f32.mrb[0].mxu0
  %v122 = vadd.f32 %v49, %v121
  %v123 = vpop.f32.mrb[0].mxu0
  %124 = vdwg.mxu0
  %v125 = vmax.f32 %v122, 0.0
  %v126 = vand.u32 2147483647, %v122
  %v127 = vsub.f32 0.0, %v126
  %v128 = vmul.f32 %v127, 1.442695
  %v129 = vpow.pop %v128
  %v130 = vadd.f32 %v129, 1.0
  %v131 = vlog2.pop %v130
  %v132 = vmul.f32 %v131, 0.6931472
  %v133 = vmul.f32 -0.5, %v129
  %v134 = vadd.f32 %v133, 1.0
  %v135 = vmul.f32 %v134, %v129
  %v136 = vand.u32 2147483647, %v129
  %vm137 = vcmp.lt.f32.partialorder %v136, 0.0004427343
  %v138 = vsel %vm137, %v135, %v132
  %v139 = vadd.f32 %v125, %v138
  %v140 = vtanh.pop %v139
  %v141 = vmul.f32 %v122, %v140
  %v142 = vld [vmem:[%s3] sm:$0xff]
  %v143 = vld [vmem:[%s3 + $0x8] sm:$0xff]
  %v144 = vld [vmem:[%s3 + $0x10] sm:$0xff]
  %v145 = vld [vmem:[%s3 + $0x18] sm:$0xff]
  %v146 = vld [vmem:[#allocation2] sm:$0x1]
  %v148 = vlaneseq
  %v149 = vshrl.u32 %v148, 7
  %v150 = vsub.s32 0, %v149
  %v151 = vrot.slane %v146, %v150
  %v154 = vsel %vm51, %v141, 0
  %156 = vmatprep.subr.mxu0 0.0
  %157 = vmatpush1.msra.mxu0 %v142
  %158 = vmatprep.subr.mxu0 0.0
  %159 = vmatpush1.msra.mxu0 %v143
  %160 = vmatprep.subr.mxu0 0.0
  %161 = vmatpush1.msra.mxu0 %v144
  %162 = vmatprep.subr.mxu0 0.0
  %163 = vmatpush1.msra.mxu0 %v145
  %164 = vmatprep.subr.mxu0 0.0
  %165 = vmatpush1.msra.mxu0 0.0
  %166 = vmatprep.subr.mxu0 0.0
  %167 = vmatpush1.msra.mxu0 0.0
  %168 = vmatprep.subr.mxu0 0.0
  %169 = vmatpush1.msra.mxu0 0.0
  %170 = vmatprep.subr.mxu0 0.0
  %171 = vmatpush1.msra.mxu0 0.0
  %172 = vmatprep.subr.mxu0 0.0
  %173 = vmatpush1.msra.mxu0 0.0
  %174 = vmatprep.subr.mxu0 0.0
  %175 = vmatpush1.msra.mxu0 0.0
  %176 = vmatprep.subr.mxu0 0.0
  %177 = vmatpush1.msra.mxu0 0.0
  %178 = vmatprep.subr.mxu0 0.0
  %179 = vmatpush1.msra.mxu0 0.0
  %180 = vmatprep.subr.mxu0 0.0
  %181 = vmatpush1.msra.mxu0 0.0
  %182 = vmatprep.subr.mxu0 0.0
  %183 = vmatpush1.msra.mxu0 0.0
  %184 = vmatprep.subr.mxu0 0.0
  %185 = vmatpush1.msra.mxu0 0.0
  %186 = vmatprep.subr.mxu0 0.0
  %187 = vmatpush1.msra.mxu0 0.0
  %188 = vmatprep.subr.mxu0 0.0
  %189 = vmatpush1.msra.mxu0 0.0
  %190 = vmatprep.subr.mxu0 0.0
  %191 = vmatpush1.msra.mxu0 0.0
  %192 = vmatprep.subr.mxu0 0.0
  %193 = vmatpush1.msra.mxu0 0.0
  %194 = vmatprep.subr.mxu0 0.0
  %195 = vmatpush1.msra.mxu0 0.0
  %196 = vmatprep.subr.mxu0 0.0
  %197 = vmatpush1.msra.mxu0 0.0
  %198 = vmatprep.subr.mxu0 0.0
  %199 = vmatpush1.msra.mxu0 0.0
  %200 = vmatprep.subr.mxu0 0.0
  %201 = vmatpush1.msra.mxu0 0.0
  %202 = vmatprep.subr.mxu0 0.0
  %203 = vmatpush1.msra.mxu0 0.0
  %204 = vmatprep.subr.mxu0 0.0
  %205 = vmatpush1.msra.mxu0 0.0
  %206 = vmatprep.subr.mxu0 0.0
  %207 = vmatpush1.msra.mxu0 0.0
  %208 = vmatprep.subr.mxu0 0.0
  %209 = vmatpush1.msra.mxu0 0.0
  %210 = vmatprep.subr.mxu0 0.0
  %211 = vmatpush1.msra.mxu0 0.0
  %212 = vmatprep.subr.mxu0 0.0
  %213 = vmatpush1.msra.mxu0 0.0
  %214 = vmatprep.subr.mxu0 0.0
  %215 = vmatpush1.msra.mxu0 0.0
  %216 = vmatprep.subr.mxu0 0.0
  %217 = vmatpush1.msra.mxu0 0.0
  %218 = vmatprep.subr.mxu0 0.0
  %219 = vmatpush1.msra.mxu0 0.0
  %220 = vmatprep.mubr.f32.mxu0 0.0
  %221 = vmatmul.mubr.f32.gmra.mrb[0].mxu0 %v154
  %v222 = vpop.f32.mrb[0].mxu0
  %v223 = vadd.f32 %v151, %v222
  %v224 = vpop.f32.mrb[0].mxu0
  %225 = vdwg.mxu0
  %vm226 = vcmask 1024
  %227 = vst.msk [vmem:[%s5] sm:$0x3] %vm226, %v223
  // Predicated region
  $region22: #{dcnn_forward.9} parent=0 // pred_check
    _
  $region23: #{dcnn_forward.9} parent=0 // pred_check_branch
    %229 = sbr.rel (0) target = $region25
  $region24: #{dcnn_forward.9} parent=0 // pred_region
    _
  $region25: #{dcnn_forward.9} parent=0 // pred_fallthru
    _
  // Predicated region
  $region26: #{dcnn_forward.9} parent=0 // pred_check
    _
  $region27: #{dcnn_forward.9} parent=0 // pred_check_branch
    %231 = sbr.rel (0) target = $region29
  $region28: #{dcnn_forward.9} parent=0 // pred_region
    _
  $region29: #{dcnn_forward.9} parent=0 // pred_fallthru
    _

</llo_original>
